<compile_context>
chip_gen: v7x
topology: tpu7x:2x2x1
jax: 0.10.0
libtpu: 0.0.40
codegen_flags: <defaults>
</compile_context>

<pallas_src>
import math
import functools

import jax
import jax.numpy as jnp
from jax import lax
from jax.experimental import pallas as pl
from jax.experimental.pallas import tpu as pltpu

# ----------------------------- model dims (small synthetic, lane-dense) ------
D = 128            # hidden size (stands in for 512 / n_embd), multiple of 128
H = 4              # attention heads
DH = D // H        # head dim
N_LAYERS = 2
MLP = 4 * D
LATENT = D         # vq latent dim (== in_proj in/out)
VOCAB = 6000
MAX_POS = 64
LN_EPS = 1e-5
NEG_INF = -1e9


def _compiler_params(**kw):
    cp = getattr(pltpu, "CompilerParams", None)
    if cp is None:                       # older JAX fallback
        cp = pltpu.TPUCompilerParams
    return cp(**kw)


# ----------------------------- in-kernel helpers ------------------------------
def _layernorm(x, g, b):
    mu = jnp.mean(x, axis=-1, keepdims=True)
    var = jnp.mean((x - mu) ** 2, axis=-1, keepdims=True)
    return (x - mu) * lax.rsqrt(var + LN_EPS) * g + b


def _dot(a, w_bf16):
    """bf16 MXU matmul with f32 accumulation (weights are stored bf16)."""
    return jnp.dot(a.astype(jnp.bfloat16), w_bf16,
                   preferred_element_type=jnp.float32)


# ----------------------------- fused forward kernel ---------------------------
def fused_forward_kernel(
    # scalar prefetch (SMEM)
    slen_ref,
    # inputs
    base_ref, latpad_ref, inw_ref,
    ln1g_ref, ln1b_ref, wqkv_ref, bqkv_ref, wo_ref, bo_ref,
    ln2g_ref, ln2b_ref, w1_ref, b1_ref, w2_ref, b2_ref,
    lnfg_ref, lnfb_ref, wlat_ref, blat_ref, wstop_ref, bstop_ref,
    # outputs
    lat_out_ref, stop_out_ref,
    # scratch
    ctx_ref,
    *, S, Tt, Ts,
):
    b = pl.program_id(0)

    # ---- embedding splice (no seq-axis concat): latent rows are zero-padded
    # over the text region; in_proj bias was folded into `base` speech rows.
    base = base_ref[0]                                  # (S, D)   f32
    lat = latpad_ref[0]                                 # (S, LATENT) f32
    x = base + _dot(lat, inw_ref[...])                  # (S, D)

    # ---- causal + key-padding bias rebuilt in-kernel from the prefetched
    # length (hoisted out of the layer loop) -- no (B,S,S) HBM tensor.
    valid_len = Tt + slen_ref[b]                        # scalar int32
    row = lax.broadcasted_iota(jnp.int32, (S, S), 0)
    col = lax.broadcasted_iota(jnp.int32, (S, S), 1)
    keep = (col <= row) & (col < valid_len)
    bias = jnp.where(keep, 0.0, NEG_INF).astype(jnp.float32)   # (S, S)

    # ---- transformer stack (hidden stays resident across layers) -------------
    for l in range(N_LAYERS):        # N_LAYERS == 2: static unroll is fine
        # --- attention ---
        hln = _layernorm(x, ln1g_ref[l], ln1b_ref[l])
        qkv = _dot(hln, wqkv_ref[l]) + bqkv_ref[l]      # (S, 3D), one K=128 matmul
        # 128-lane-aligned q/k/v splits (offsets 0, D, 2D)
        q = qkv[:, 0:D].astype(jnp.bfloat16)            # 1/sqrt(DH) folded into W_q
        k = qkv[:, D:2 * D].astype(jnp.bfloat16)
        v = qkv[:, 2 * D:3 * D].astype(jnp.bfloat16)

        for hd in range(H):
            qh = q[:, hd * DH:(hd + 1) * DH]
            kh = k[:, hd * DH:(hd + 1) * DH]
            vh = v[:, hd * DH:(hd + 1) * DH]
            # "nt" matmul via dot_general: no transpose materialized.
            s = lax.dot_general(qh, kh, (((1,), (1,)), ((), ())),
                                preferred_element_type=jnp.float32)   # (S, S)
            s = s + bias
            m = jnp.max(s, axis=-1, keepdims=True)
            p = jnp.exp(s - m)                           # f32 softmax math
            denom = jnp.sum(p, axis=-1, keepdims=True)
            ch = jnp.dot(p.astype(jnp.bfloat16), vh,
                         preferred_element_type=jnp.float32)          # (S, DH)
            ch = ch * pl.reciprocal(denom, approx=True)  # EUP reciprocal
            # assemble lane-dense (S, D) context in VMEM scratch
            ctx_ref[:, hd * DH:(hd + 1) * DH] = ch

        ctx = ctx_ref[...]                               # (S, D) lane-dense
        attn = _dot(ctx, wo_ref[l]) + bo_ref[l]          # ONE K=128 W_o matmul
        x = x + attn

        # --- MLP ---
        h2 = _layernorm(x, ln2g_ref[l], ln2b_ref[l])
        mm = _dot(h2, w1_ref[l]) + b1_ref[l]
        mm = jax.nn.gelu(mm, approximate=True)           # GPT-2 "gelu_new"
        x = x + _dot(mm, w2_ref[l]) + b2_ref[l]

    # ---- final LN + split head over the speech region -----------------------
    hs = x[Tt:, :]                                       # (Ts, D); Tt multiple of 8
    hf = _layernorm(hs, lnfg_ref[...], lnfb_ref[...])
    lat_out_ref[0] = _dot(hf, wlat_ref[...]) + blat_ref[...]          # (Ts, LATENT)
    stop = jnp.sum(hf * wstop_ref[...], axis=-1, keepdims=True) + bstop_ref[...]
    stop_out_ref[0] = stop                                            # (Ts, 1)


# ----------------------------- parameters ------------------------------------
def init_params(key):
    ks = iter(jax.random.split(key, 16))

    def nrm(shape):
        return jax.random.normal(next(ks), shape, jnp.float32) * 0.02

    w_qkv = nrm((N_LAYERS, D, 3 * D))
    # fold the 1/sqrt(DH) attention scale into the Q block of W_qkv
    # (b_qkv is zero-initialized, so its Q block needs no scaling here)
    w_qkv = w_qkv.at[:, :, :D].multiply(1.0 / math.sqrt(DH))

    return {
        # embeddings (plain-JAX gathers in the wrapper)
        "wte": nrm((VOCAB, D)),
        "wpe": nrm((MAX_POS, D)),
        # in_proj (nn.Linear(512,512) analogue)
        "in_proj_w": nrm((LATENT, D)).astype(jnp.bfloat16),
        "in_proj_b": jnp.zeros((1, D), jnp.float32),
        # stacked per-layer weights (leading axis = layer)
        "ln1_g": jnp.ones((N_LAYERS, 1, D), jnp.float32),
        "ln1_b": jnp.zeros((N_LAYERS, 1, D), jnp.float32),
        "w_qkv": w_qkv.astype(jnp.bfloat16),
        "b_qkv": jnp.zeros((N_LAYERS, 1, 3 * D), jnp.float32),
        "w_o": nrm((N_LAYERS, D, D)).astype(jnp.bfloat16),
        "b_o": jnp.zeros((N_LAYERS, 1, D), jnp.float32),
        "ln2_g": jnp.ones((N_LAYERS, 1, D), jnp.float32),
        "ln2_b": jnp.zeros((N_LAYERS, 1, D), jnp.float32),
        "w_mlp1": nrm((N_LAYERS, D, MLP)).astype(jnp.bfloat16),
        "b_mlp1": jnp.zeros((N_LAYERS, 1, MLP), jnp.float32),
        "w_mlp2": nrm((N_LAYERS, MLP, D)).astype(jnp.bfloat16),
        "b_mlp2": jnp.zeros((N_LAYERS, 1, D), jnp.float32),
        # final LN + split head: lane-dense latent block + 1-wide stop logit
        "ln_f_g": jnp.ones((1, D), jnp.float32),
        "ln_f_b": jnp.zeros((1, D), jnp.float32),
        "head_w_lat": nrm((D, LATENT)).astype(jnp.bfloat16),
        "head_b_lat": jnp.zeros((1, LATENT), jnp.float32),
        "head_w_stop": nrm((1, D)),
        "head_b_stop": jnp.zeros((1, 1), jnp.float32),
    }


# ----------------------------- forward ----------------------------------------
def tts_latent_gpt_forward(params, src_tokens, speech_latent, speech_length):
    B, Tt = src_tokens.shape
    Ts = speech_latent.shape[1]
    S = Tt + Ts

    # src_tokens_with_pad = cat(src_tokens, zeros); token/pos embedding gathers
    # stay in plain JAX.  Speech rows carry the positional embedding plus the
    # in_proj bias (folded here so the in-kernel splice needs no region mask).
    tok = params["wte"][src_tokens]                                   # (B, Tt, D)
    base_text = tok + params["wpe"][None, :Tt, :]
    base_speech = jnp.broadcast_to(
        params["wpe"][None, Tt:S, :] + params["in_proj_b"][None, :, :], (B, Ts, D))
    base = jnp.concatenate([base_text, base_speech], axis=1).astype(jnp.float32)

    # zero-pad the latent over the text region (contributes exactly 0 there)
    lat_pad = jnp.concatenate(
        [jnp.zeros((B, Tt, LATENT), jnp.float32), speech_latent.astype(jnp.float32)],
        axis=1)                                                       # (B, S, LATENT)

    bmap = lambda b, sl: (b, 0, 0)      # per-batch activation blocks
    w2 = lambda b, sl: (0, 0)           # resident 2-D weights
    w3 = lambda b, sl: (0, 0, 0)        # resident stacked per-layer weights

    grid_spec = pltpu.PrefetchScalarGridSpec(
        num_scalar_prefetch=1,          # speech_length -> SMEM
        grid=(B,),
        in_specs=[
            pl.BlockSpec((1, S, D), bmap),            # base
            pl.BlockSpec((1, S, LATENT), bmap),       # latent (zero-padded)
            pl.BlockSpec((LATENT, D), w2),            # in_proj_w
            pl.BlockSpec((N_LAYERS, 1, D), w3),       # ln1_g
            pl.BlockSpec((N_LAYERS, 1, D), w3),       # ln1_b
            pl.BlockSpec((N_LAYERS, D, 3 * D), w3),   # w_qkv
            pl.BlockSpec((N_LAYERS, 1, 3 * D), w3),   # b_qkv
            pl.BlockSpec((N_LAYERS, D, D), w3),       # w_o
            pl.BlockSpec((N_LAYERS, 1, D), w3),       # b_o
            pl.BlockSpec((N_LAYERS, 1, D), w3),       # ln2_g
            pl.BlockSpec((N_LAYERS, 1, D), w3),       # ln2_b
            pl.BlockSpec((N_LAYERS, D, MLP), w3),     # w_mlp1
            pl.BlockSpec((N_LAYERS, 1, MLP), w3),     # b_mlp1
            pl.BlockSpec((N_LAYERS, MLP, D), w3),     # w_mlp2
            pl.BlockSpec((N_LAYERS, 1, D), w3),       # b_mlp2
            pl.BlockSpec((1, D), w2),                 # ln_f_g
            pl.BlockSpec((1, D), w2),                 # ln_f_b
            pl.BlockSpec((D, LATENT), w2),            # head_w_lat
            pl.BlockSpec((1, LATENT), w2),            # head_b_lat
            pl.BlockSpec((1, D), w2),                 # head_w_stop
            pl.BlockSpec((1, 1), w2),                 # head_b_stop
        ],
        out_specs=[
            pl.BlockSpec((1, Ts, LATENT), bmap),      # pred latent (lane-dense)
            pl.BlockSpec((1, Ts, 1), bmap),           # stop logits
        ],
        scratch_shapes=[pltpu.VMEM((S, D), jnp.float32)],   # assembled attn context
    )

    kernel = functools.partial(fused_forward_kernel, S=S, Tt=Tt, Ts=Ts)
    pred_latent, stop = pl.pallas_call(
        kernel,
        grid_spec=grid_spec,
        out_shape=(jax.ShapeDtypeStruct((B, Ts, LATENT), jnp.float32),
                   jax.ShapeDtypeStruct((B, Ts, 1), jnp.float32)),
        compiler_params=_compiler_params(
            dimension_semantics=("parallel",),        # v7x: batch across both TCs
            vmem_limit_bytes=32 * 1024 * 1024),
    )(
        speech_length.astype(jnp.int32),
        base, lat_pad,
        params["in_proj_w"],
        params["ln1_g"], params["ln1_b"], params["w_qkv"], params["b_qkv"],
        params["w_o"], params["b_o"],
        params["ln2_g"], params["ln2_b"], params["w_mlp1"], params["b_mlp1"],
        params["w_mlp2"], params["b_mlp2"],
        params["ln_f_g"], params["ln_f_b"],
        params["head_w_lat"], params["head_b_lat"],
        params["head_w_stop"], params["head_b_stop"],
    )
    return pred_latent, stop[..., 0]


# ----------------------------- main -------------------------------------------
if __name__ == "__main__":
    key = jax.random.PRNGKey(0)
    k_par, k_tok, k_lat = jax.random.split(key, 3)

    B, Tt, Ts = 2, 8, 8
    params = init_params(k_par)

    src_tokens = jax.random.randint(k_tok, (B, Tt), 0, VOCAB, dtype=jnp.int32)
    speech_latent = jax.random.normal(k_lat, (B, Ts, LATENT), jnp.float32)
    speech_length = jnp.array([Ts, Ts - 2], dtype=jnp.int32)

    fwd = jax.jit(tts_latent_gpt_forward)
    pred_latent, stop_logits = fwd(params, src_tokens, speech_latent, speech_length)
    jax.block_until_ready((pred_latent, stop_logits))

    assert pred_latent.shape == (B, Ts, LATENT)
    assert stop_logits.shape == (B, Ts)
    assert bool(jnp.all(jnp.isfinite(pred_latent)))
    assert bool(jnp.all(jnp.isfinite(stop_logits)))
    print("KERNEL_OK")
</pallas_src>

<mosaic_0001>
module attributes {stable_mosaic.version = 11 : i64} {
  func.func @fused_forward_kernel(%arg0: i32, %arg1: memref<2xi32, #tpu.memory_space<smem>>, %arg2: memref<1x16x128xf32, #tpu.memory_space<vmem>>, %arg3: memref<1x16x128xf32, #tpu.memory_space<vmem>>, %arg4: memref<128x128xbf16, #tpu.memory_space<vmem>>, %arg5: memref<2x1x128xf32, #tpu.memory_space<vmem>>, %arg6: memref<2x1x128xf32, #tpu.memory_space<vmem>>, %arg7: memref<2x128x384xbf16, #tpu.memory_space<vmem>>, %arg8: memref<2x1x384xf32, #tpu.memory_space<vmem>>, %arg9: memref<2x128x128xbf16, #tpu.memory_space<vmem>>, %arg10: memref<2x1x128xf32, #tpu.memory_space<vmem>>, %arg11: memref<2x1x128xf32, #tpu.memory_space<vmem>>, %arg12: memref<2x1x128xf32, #tpu.memory_space<vmem>>, %arg13: memref<2x128x512xbf16, #tpu.memory_space<vmem>>, %arg14: memref<2x1x512xf32, #tpu.memory_space<vmem>>, %arg15: memref<2x512x128xbf16, #tpu.memory_space<vmem>>, %arg16: memref<2x1x128xf32, #tpu.memory_space<vmem>>, %arg17: memref<1x128xf32, #tpu.memory_space<vmem>>, %arg18: memref<1x128xf32, #tpu.memory_space<vmem>>, %arg19: memref<128x128xbf16, #tpu.memory_space<vmem>>, %arg20: memref<1x128xf32, #tpu.memory_space<vmem>>, %arg21: memref<1x128xf32, #tpu.memory_space<vmem>>, %arg22: memref<1x1xf32, #tpu.memory_space<vmem>>, %arg23: memref<1x8x128xf32, #tpu.memory_space<vmem>>, %arg24: memref<1x8x1xf32, #tpu.memory_space<vmem>>, %arg25: memref<16x128xf32, #tpu.memory_space<vmem>>) attributes {dimension_semantics = [#tpu.dimension_semantics<parallel>], iteration_bounds = array<i64: 2>, scalar_prefetch = 1 : i64, scratch_operands = 1 : i64, tpu.core_type = #tpu.core_type<tc>, window_params = [{transform_indices = @transform_0, window_bounds = array<i64: 1, 16, 128>}, {transform_indices = @transform_1, window_bounds = array<i64: 1, 16, 128>}, {pipeline_mode = #tpu.pipeline_mode<synchronous>, transform_indices = @transform_2, window_bounds = array<i64: 128, 128>}, {pipeline_mode = #tpu.pipeline_mode<synchronous>, transform_indices = @transform_3, window_bounds = array<i64: 2, 1, 128>}, {pipeline_mode = #tpu.pipeline_mode<synchronous>, transform_indices = @transform_4, window_bounds = array<i64: 2, 1, 128>}, {pipeline_mode = #tpu.pipeline_mode<synchronous>, transform_indices = @transform_5, window_bounds = array<i64: 2, 128, 384>}, {pipeline_mode = #tpu.pipeline_mode<synchronous>, transform_indices = @transform_6, window_bounds = array<i64: 2, 1, 384>}, {pipeline_mode = #tpu.pipeline_mode<synchronous>, transform_indices = @transform_7, window_bounds = array<i64: 2, 128, 128>}, {pipeline_mode = #tpu.pipeline_mode<synchronous>, transform_indices = @transform_8, window_bounds = array<i64: 2, 1, 128>}, {pipeline_mode = #tpu.pipeline_mode<synchronous>, transform_indices = @transform_9, window_bounds = array<i64: 2, 1, 128>}, {pipeline_mode = #tpu.pipeline_mode<synchronous>, transform_indices = @transform_10, window_bounds = array<i64: 2, 1, 128>}, {pipeline_mode = #tpu.pipeline_mode<synchronous>, transform_indices = @transform_11, window_bounds = array<i64: 2, 128, 512>}, {pipeline_mode = #tpu.pipeline_mode<synchronous>, transform_indices = @transform_12, window_bounds = array<i64: 2, 1, 512>}, {pipeline_mode = #tpu.pipeline_mode<synchronous>, transform_indices = @transform_13, window_bounds = array<i64: 2, 512, 128>}, {pipeline_mode = #tpu.pipeline_mode<synchronous>, transform_indices = @transform_14, window_bounds = array<i64: 2, 1, 128>}, {pipeline_mode = #tpu.pipeline_mode<synchronous>, transform_indices = @transform_15, window_bounds = array<i64: 1, 128>}, {pipeline_mode = #tpu.pipeline_mode<synchronous>, transform_indices = @transform_16, window_bounds = array<i64: 1, 128>}, {pipeline_mode = #tpu.pipeline_mode<synchronous>, transform_indices = @transform_17, window_bounds = array<i64: 128, 128>}, {pipeline_mode = #tpu.pipeline_mode<synchronous>, transform_indices = @transform_18, window_bounds = array<i64: 1, 128>}, {pipeline_mode = #tpu.pipeline_mode<synchronous>, transform_indices = @transform_19, window_bounds = array<i64: 1, 128>}, {pipeline_mode = #tpu.pipeline_mode<synchronous>, transform_indices = @transform_20, window_bounds = array<i64: 1, 1>}, {transform_indices = @transform_21, window_bounds = array<i64: 1, 8, 128>}, {transform_indices = @transform_22, window_bounds = array<i64: 1, 8, 1>}]} {
    %c0 = arith.constant 0 : index
    %c0_0 = arith.constant 0 : index
    %c0_1 = arith.constant 0 : index
    %0 = vector.load %arg2[%c0, %c0_0, %c0_1] : memref<1x16x128xf32, #tpu.memory_space<vmem>>, vector<1x16x128xf32>
    %1 = vector.shape_cast %0 : vector<1x16x128xf32> to vector<16x128xf32>
    %c0_2 = arith.constant 0 : index
    %c0_3 = arith.constant 0 : index
    %c0_4 = arith.constant 0 : index
    %2 = vector.load %arg3[%c0_2, %c0_3, %c0_4] : memref<1x16x128xf32, #tpu.memory_space<vmem>>, vector<1x16x128xf32>
    %3 = vector.shape_cast %2 : vector<1x16x128xf32> to vector<16x128xf32>
    %c0_5 = arith.constant 0 : index
    %c0_6 = arith.constant 0 : index
    %4 = vector.load %arg4[%c0_5, %c0_6] : memref<128x128xbf16, #tpu.memory_space<vmem>>, vector<128x128xbf16>
    %5 = arith.truncf %3 : vector<16x128xf32> to vector<16x128xbf16>
    %cst = arith.constant dense<0.000000e+00> : vector<16x128xf32>
    %6 = tpu.matmul %5, %4, %cst {dimension_numbers = #tpu.dot_dimension_numbers<[1], [0], [0], [1], [0, 0, 1, 1], [], []>} : vector<16x128xbf16>, vector<128x128xbf16>, vector<16x128xf32> -> vector<16x128xf32>
    %7 = arith.addf %1, %6 : vector<16x128xf32>
    %8 = arith.index_cast %arg0 : i32 to index
    %9 = memref.load %arg1[%8] : memref<2xi32, #tpu.memory_space<smem>>
    %c8_i32 = arith.constant 8 : i32
    %10 = arith.addi %c8_i32, %9 : i32
    %11 = tpu.iota {dimensions = array<i32: 0>} : vector<16x16xi32>
    %12 = tpu.iota {dimensions = array<i32: 1>} : vector<16x16xi32>
    %13 = arith.cmpi sle, %12, %11 : vector<16x16xi32>
    %14 = vector.broadcast %10 : i32 to vector<16x16xi32>
    %15 = arith.cmpi slt, %12, %14 : vector<16x16xi32>
    %16 = arith.andi %13, %15 : vector<16x16xi1>
    %cst_7 = arith.constant 0.000000e+00 : f32
    %cst_8 = arith.constant -1.000000e+09 : f32
    %17 = vector.broadcast %cst_7 : f32 to vector<16x16xf32>
    %18 = vector.broadcast %cst_8 : f32 to vector<16x16xf32>
    %19 = arith.select %16, %17, %18 : vector<16x16xi1>, vector<16x16xf32>
    %c0_9 = arith.constant 0 : index
    %c0_10 = arith.constant 0 : index
    %c0_11 = arith.constant 0 : index
    %20 = vector.load %arg5[%c0_9, %c0_10, %c0_11] : memref<2x1x128xf32, #tpu.memory_space<vmem>>, vector<1x1x128xf32>
    %21 = vector.shape_cast %20 : vector<1x1x128xf32> to vector<1x128xf32>
    %c0_12 = arith.constant 0 : index
    %c0_13 = arith.constant 0 : index
    %c0_14 = arith.constant 0 : index
    %22 = vector.load %arg6[%c0_12, %c0_13, %c0_14] : memref<2x1x128xf32, #tpu.memory_space<vmem>>, vector<1x1x128xf32>
    %23 = vector.shape_cast %22 : vector<1x1x128xf32> to vector<1x128xf32>
    %cst_15 = arith.constant dense<0.000000e+00> : vector<16xf32>
    %24 = vector.multi_reduction <add>, %7, %cst_15 [1] : vector<16x128xf32> to vector<16xf32>
    %25 = vector.shape_cast %24 : vector<16xf32> to vector<16x1xf32>
    %cst_16 = arith.constant 1.280000e+02 : f32
    %26 = vector.broadcast %cst_16 : f32 to vector<16x1xf32>
    %27 = arith.divf %25, %26 : vector<16x1xf32>
    %28 = vector.broadcast %27 : vector<16x1xf32> to vector<16x128xf32>
    %29 = arith.subf %7, %28 : vector<16x128xf32>
    %30 = arith.mulf %29, %29 : vector<16x128xf32>
    %cst_17 = arith.constant dense<0.000000e+00> : vector<16xf32>
    %31 = vector.multi_reduction <add>, %30, %cst_17 [1] : vector<16x128xf32> to vector<16xf32>
    %32 = vector.shape_cast %31 : vector<16xf32> to vector<16x1xf32>
    %cst_18 = arith.constant 1.280000e+02 : f32
    %33 = vector.broadcast %cst_18 : f32 to vector<16x1xf32>
    %34 = arith.divf %32, %33 : vector<16x1xf32>
    %35 = vector.broadcast %27 : vector<16x1xf32> to vector<16x128xf32>
    %36 = arith.subf %7, %35 : vector<16x128xf32>
    %cst_19 = arith.constant 9.99999974E-6 : f32
    %37 = vector.broadcast %cst_19 : f32 to vector<16x1xf32>
    %38 = arith.addf %34, %37 : vector<16x1xf32>
    %39 = math.rsqrt %38 : vector<16x1xf32>
    %40 = vector.broadcast %39 : vector<16x1xf32> to vector<16x128xf32>
    %41 = arith.mulf %36, %40 : vector<16x128xf32>
    %42 = vector.broadcast %21 : vector<1x128xf32> to vector<16x128xf32>
    %43 = arith.mulf %41, %42 : vector<16x128xf32>
    %44 = vector.broadcast %23 : vector<1x128xf32> to vector<16x128xf32>
    %45 = arith.addf %43, %44 : vector<16x128xf32>
    %c0_20 = arith.constant 0 : index
    %c0_21 = arith.constant 0 : index
    %c0_22 = arith.constant 0 : index
    %46 = vector.load %arg7[%c0_20, %c0_21, %c0_22] : memref<2x128x384xbf16, #tpu.memory_space<vmem>>, vector<1x128x384xbf16>
    %47 = vector.shape_cast %46 : vector<1x128x384xbf16> to vector<128x384xbf16>
    %48 = arith.truncf %45 : vector<16x128xf32> to vector<16x128xbf16>
    %cst_23 = arith.constant dense<0.000000e+00> : vector<16x384xf32>
    %49 = tpu.matmul %48, %47, %cst_23 {dimension_numbers = #tpu.dot_dimension_numbers<[1], [0], [0], [1], [0, 0, 1, 1], [], []>} : vector<16x128xbf16>, vector<128x384xbf16>, vector<16x384xf32> -> vector<16x384xf32>
    %c0_24 = arith.constant 0 : index
    %c0_25 = arith.constant 0 : index
    %c0_26 = arith.constant 0 : index
    %50 = vector.load %arg8[%c0_24, %c0_25, %c0_26] : memref<2x1x384xf32, #tpu.memory_space<vmem>>, vector<1x1x384xf32>
    %51 = vector.shape_cast %50 : vector<1x1x384xf32> to vector<1x384xf32>
    %52 = vector.broadcast %51 : vector<1x384xf32> to vector<16x384xf32>
    %53 = arith.addf %49, %52 : vector<16x384xf32>
    %54 = vector.extract_strided_slice %53 {offsets = [0, 0], sizes = [16, 128], strides = [1, 1]} : vector<16x384xf32> to vector<16x128xf32>
    %55 = arith.truncf %54 : vector<16x128xf32> to vector<16x128xbf16>
    %56 = vector.extract_strided_slice %53 {offsets = [0, 128], sizes = [16, 128], strides = [1, 1]} : vector<16x384xf32> to vector<16x128xf32>
    %57 = arith.truncf %56 : vector<16x128xf32> to vector<16x128xbf16>
    %58 = vector.extract_strided_slice %53 {offsets = [0, 256], sizes = [16, 128], strides = [1, 1]} : vector<16x384xf32> to vector<16x128xf32>
    %59 = arith.truncf %58 : vector<16x128xf32> to vector<16x128xbf16>
    %60 = vector.extract_strided_slice %55 {offsets = [0, 0], sizes = [16, 32], strides = [1, 1]} : vector<16x128xbf16> to vector<16x32xbf16>
    %61 = vector.extract_strided_slice %57 {offsets = [0, 0], sizes = [16, 32], strides = [1, 1]} : vector<16x128xbf16> to vector<16x32xbf16>
    %62 = vector.extract_strided_slice %59 {offsets = [0, 0], sizes = [16, 32], strides = [1, 1]} : vector<16x128xbf16> to vector<16x32xbf16>
    %cst_27 = arith.constant dense<0.000000e+00> : vector<16x16xf32>
    %63 = tpu.matmul %60, %61, %cst_27 {dimension_numbers = #tpu.dot_dimension_numbers<[1], [1], [0], [0], [0, 0, 1, 0], [], []>} : vector<16x32xbf16>, vector<16x32xbf16>, vector<16x16xf32> -> vector<16x16xf32>
    %64 = arith.addf %63, %19 : vector<16x16xf32>
    %cst_28 = arith.constant dense<0xFF800000> : vector<16xf32>
    %65 = vector.multi_reduction <maximumf>, %64, %cst_28 [1] : vector<16x16xf32> to vector<16xf32>
    %66 = vector.shape_cast %65 : vector<16xf32> to vector<16x1xf32>
    %67 = vector.broadcast %66 : vector<16x1xf32> to vector<16x16xf32>
    %68 = arith.subf %64, %67 : vector<16x16xf32>
    %69 = math.exp %68 : vector<16x16xf32>
    %cst_29 = arith.constant dense<0.000000e+00> : vector<16xf32>
    %70 = vector.multi_reduction <add>, %69, %cst_29 [1] : vector<16x16xf32> to vector<16xf32>
    %71 = vector.shape_cast %70 : vector<16xf32> to vector<16x1xf32>
    %72 = arith.truncf %69 : vector<16x16xf32> to vector<16x16xbf16>
    %cst_30 = arith.constant dense<0.000000e+00> : vector<16x32xf32>
    %73 = tpu.matmul %72, %62, %cst_30 {dimension_numbers = #tpu.dot_dimension_numbers<[1], [0], [0], [1], [0, 0, 1, 1], [], []>} : vector<16x16xbf16>, vector<16x32xbf16>, vector<16x32xf32> -> vector<16x32xf32>
    %74 = tpu.reciprocal %71 {approx = true} : vector<16x1xf32> -> vector<16x1xf32>
    %75 = vector.broadcast %74 : vector<16x1xf32> to vector<16x32xf32>
    %76 = arith.mulf %73, %75 : vector<16x32xf32>
    %c0_31 = arith.constant 0 : index
    %c0_32 = arith.constant 0 : index
    %77 = vector.load %arg25[%c0_31, %c0_32] : memref<16x128xf32, #tpu.memory_space<vmem>>, vector<16x32xf32>
    tpu.vector_store %arg25[%c0_31, %c0_32], %76 {strides = array<i32>} : memref<16x128xf32, #tpu.memory_space<vmem>>, vector<16x32xf32>,
    %78 = vector.extract_strided_slice %55 {offsets = [0, 32], sizes = [16, 32], strides = [1, 1]} : vector<16x128xbf16> to vector<16x32xbf16>
    %79 = vector.extract_strided_slice %57 {offsets = [0, 32], sizes = [16, 32], strides = [1, 1]} : vector<16x128xbf16> to vector<16x32xbf16>
    %80 = vector.extract_strided_slice %59 {offsets = [0, 32], sizes = [16, 32], strides = [1, 1]} : vector<16x128xbf16> to vector<16x32xbf16>
    %cst_33 = arith.constant dense<0.000000e+00> : vector<16x16xf32>
    %81 = tpu.matmul %78, %79, %cst_33 {dimension_numbers = #tpu.dot_dimension_numbers<[1], [1], [0], [0], [0, 0, 1, 0], [], []>} : vector<16x32xbf16>, vector<16x32xbf16>, vector<16x16xf32> -> vector<16x16xf32>
    %82 = arith.addf %81, %19 : vector<16x16xf32>
    %cst_34 = arith.constant dense<0xFF800000> : vector<16xf32>
    %83 = vector.multi_reduction <maximumf>, %82, %cst_34 [1] : vector<16x16xf32> to vector<16xf32>
    %84 = vector.shape_cast %83 : vector<16xf32> to vector<16x1xf32>
    %85 = vector.broadcast %84 : vector<16x1xf32> to vector<16x16xf32>
    %86 = arith.subf %82, %85 : vector<16x16xf32>
    %87 = math.exp %86 : vector<16x16xf32>
    %cst_35 = arith.constant dense<0.000000e+00> : vector<16xf32>
    %88 = vector.multi_reduction <add>, %87, %cst_35 [1] : vector<16x16xf32> to vector<16xf32>
    %89 = vector.shape_cast %88 : vector<16xf32> to vector<16x1xf32>
    %90 = arith.truncf %87 : vector<16x16xf32> to vector<16x16xbf16>
    %cst_36 = arith.constant dense<0.000000e+00> : vector<16x32xf32>
    %91 = tpu.matmul %90, %80, %cst_36 {dimension_numbers = #tpu.dot_dimension_numbers<[1], [0], [0], [1], [0, 0, 1, 1], [], []>} : vector<16x16xbf16>, vector<16x32xbf16>, vector<16x32xf32> -> vector<16x32xf32>
    %92 = tpu.reciprocal %89 {approx = true} : vector<16x1xf32> -> vector<16x1xf32>
    %93 = vector.broadcast %92 : vector<16x1xf32> to vector<16x32xf32>
    %94 = arith.mulf %91, %93 : vector<16x32xf32>
    %c0_37 = arith.constant 0 : index
    %c32 = arith.constant 32 : index
    %95 = vector.load %arg25[%c0_37, %c32] : memref<16x128xf32, #tpu.memory_space<vmem>>, vector<16x32xf32>
    tpu.vector_store %arg25[%c0_37, %c32], %94 {strides = array<i32>} : memref<16x128xf32, #tpu.memory_space<vmem>>, vector<16x32xf32>,
    %96 = vector.extract_strided_slice %55 {offsets = [0, 64], sizes = [16, 32], strides = [1, 1]} : vector<16x128xbf16> to vector<16x32xbf16>
    %97 = vector.extract_strided_slice %57 {offsets = [0, 64], sizes = [16, 32], strides = [1, 1]} : vector<16x128xbf16> to vector<16x32xbf16>
    %98 = vector.extract_strided_slice %59 {offsets = [0, 64], sizes = [16, 32], strides = [1, 1]} : vector<16x128xbf16> to vector<16x32xbf16>
    %cst_38 = arith.constant dense<0.000000e+00> : vector<16x16xf32>
    %99 = tpu.matmul %96, %97, %cst_38 {dimension_numbers = #tpu.dot_dimension_numbers<[1], [1], [0], [0], [0, 0, 1, 0], [], []>} : vector<16x32xbf16>, vector<16x32xbf16>, vector<16x16xf32> -> vector<16x16xf32>
    %100 = arith.addf %99, %19 : vector<16x16xf32>
    %cst_39 = arith.constant dense<0xFF800000> : vector<16xf32>
    %101 = vector.multi_reduction <maximumf>, %100, %cst_39 [1] : vector<16x16xf32> to vector<16xf32>
    %102 = vector.shape_cast %101 : vector<16xf32> to vector<16x1xf32>
    %103 = vector.broadcast %102 : vector<16x1xf32> to vector<16x16xf32>
    %104 = arith.subf %100, %103 : vector<16x16xf32>
    %105 = math.exp %104 : vector<16x16xf32>
    %cst_40 = arith.constant dense<0.000000e+00> : vector<16xf32>
    %106 = vector.multi_reduction <add>, %105, %cst_40 [1] : vector<16x16xf32> to vector<16xf32>
    %107 = vector.shape_cast %106 : vector<16xf32> to vector<16x1xf32>
    %108 = arith.truncf %105 : vector<16x16xf32> to vector<16x16xbf16>
    %cst_41 = arith.constant dense<0.000000e+00> : vector<16x32xf32>
    %109 = tpu.matmul %108, %98, %cst_41 {dimension_numbers = #tpu.dot_dimension_numbers<[1], [0], [0], [1], [0, 0, 1, 1], [], []>} : vector<16x16xbf16>, vector<16x32xbf16>, vector<16x32xf32> -> vector<16x32xf32>
    %110 = tpu.reciprocal %107 {approx = true} : vector<16x1xf32> -> vector<16x1xf32>
    %111 = vector.broadcast %110 : vector<16x1xf32> to vector<16x32xf32>
    %112 = arith.mulf %109, %111 : vector<16x32xf32>
    %c0_42 = arith.constant 0 : index
    %c64 = arith.constant 64 : index
    %113 = vector.load %arg25[%c0_42, %c64] : memref<16x128xf32, #tpu.memory_space<vmem>>, vector<16x32xf32>
    tpu.vector_store %arg25[%c0_42, %c64], %112 {strides = array<i32>} : memref<16x128xf32, #tpu.memory_space<vmem>>, vector<16x32xf32>,
    %114 = vector.extract_strided_slice %55 {offsets = [0, 96], sizes = [16, 32], strides = [1, 1]} : vector<16x128xbf16> to vector<16x32xbf16>
    %115 = vector.extract_strided_slice %57 {offsets = [0, 96], sizes = [16, 32], strides = [1, 1]} : vector<16x128xbf16> to vector<16x32xbf16>
    %116 = vector.extract_strided_slice %59 {offsets = [0, 96], sizes = [16, 32], strides = [1, 1]} : vector<16x128xbf16> to vector<16x32xbf16>
    %cst_43 = arith.constant dense<0.000000e+00> : vector<16x16xf32>
    %117 = tpu.matmul %114, %115, %cst_43 {dimension_numbers = #tpu.dot_dimension_numbers<[1], [1], [0], [0], [0, 0, 1, 0], [], []>} : vector<16x32xbf16>, vector<16x32xbf16>, vector<16x16xf32> -> vector<16x16xf32>
    %118 = arith.addf %117, %19 : vector<16x16xf32>
    %cst_44 = arith.constant dense<0xFF800000> : vector<16xf32>
    %119 = vector.multi_reduction <maximumf>, %118, %cst_44 [1] : vector<16x16xf32> to vector<16xf32>
    %120 = vector.shape_cast %119 : vector<16xf32> to vector<16x1xf32>
    %121 = vector.broadcast %120 : vector<16x1xf32> to vector<16x16xf32>
    %122 = arith.subf %118, %121 : vector<16x16xf32>
    %123 = math.exp %122 : vector<16x16xf32>
    %cst_45 = arith.constant dense<0.000000e+00> : vector<16xf32>
    %124 = vector.multi_reduction <add>, %123, %cst_45 [1] : vector<16x16xf32> to vector<16xf32>
    %125 = vector.shape_cast %124 : vector<16xf32> to vector<16x1xf32>
    %126 = arith.truncf %123 : vector<16x16xf32> to vector<16x16xbf16>
    %cst_46 = arith.constant dense<0.000000e+00> : vector<16x32xf32>
    %127 = tpu.matmul %126, %116, %cst_46 {dimension_numbers = #tpu.dot_dimension_numbers<[1], [0], [0], [1], [0, 0, 1, 1], [], []>} : vector<16x16xbf16>, vector<16x32xbf16>, vector<16x32xf32> -> vector<16x32xf32>
    %128 = tpu.reciprocal %125 {approx = true} : vector<16x1xf32> -> vector<16x1xf32>
    %129 = vector.broadcast %128 : vector<16x1xf32> to vector<16x32xf32>
    %130 = arith.mulf %127, %129 : vector<16x32xf32>
    %c0_47 = arith.constant 0 : index
    %c96 = arith.constant 96 : index
    %131 = vector.load %arg25[%c0_47, %c96] : memref<16x128xf32, #tpu.memory_space<vmem>>, vector<16x32xf32>
    tpu.vector_store %arg25[%c0_47, %c96], %130 {strides = array<i32>} : memref<16x128xf32, #tpu.memory_space<vmem>>, vector<16x32xf32>,
    %c0_48 = arith.constant 0 : index
    %c0_49 = arith.constant 0 : index
    %132 = vector.load %arg25[%c0_48, %c0_49] : memref<16x128xf32, #tpu.memory_space<vmem>>, vector<16x128xf32>
    %c0_50 = arith.constant 0 : index
    %c0_51 = arith.constant 0 : index
    %c0_52 = arith.constant 0 : index
    %133 = vector.load %arg9[%c0_50, %c0_51, %c0_52] : memref<2x128x128xbf16, #tpu.memory_space<vmem>>, vector<1x128x128xbf16>
    %134 = vector.shape_cast %133 : vector<1x128x128xbf16> to vector<128x128xbf16>
    %135 = arith.truncf %132 : vector<16x128xf32> to vector<16x128xbf16>
    %cst_53 = arith.constant dense<0.000000e+00> : vector<16x128xf32>
    %136 = tpu.matmul %135, %134, %cst_53 {dimension_numbers = #tpu.dot_dimension_numbers<[1], [0], [0], [1], [0, 0, 1, 1], [], []>} : vector<16x128xbf16>, vector<128x128xbf16>, vector<16x128xf32> -> vector<16x128xf32>
    %c0_54 = arith.constant 0 : index
    %c0_55 = arith.constant 0 : index
    %c0_56 = arith.constant 0 : index
    %137 = vector.load %arg10[%c0_54, %c0_55, %c0_56] : memref<2x1x128xf32, #tpu.memory_space<vmem>>, vector<1x1x128xf32>
    %138 = vector.shape_cast %137 : vector<1x1x128xf32> to vector<1x128xf32>
    %139 = vector.broadcast %138 : vector<1x128xf32> to vector<16x128xf32>
    %140 = arith.addf %136, %139 : vector<16x128xf32>
    %141 = arith.addf %7, %140 : vector<16x128xf32>
    %c0_57 = arith.constant 0 : index
    %c0_58 = arith.constant 0 : index
    %c0_59 = arith.constant 0 : index
    %142 = vector.load %arg11[%c0_57, %c0_58, %c0_59] : memref<2x1x128xf32, #tpu.memory_space<vmem>>, vector<1x1x128xf32>
    %143 = vector.shape_cast %142 : vector<1x1x128xf32> to vector<1x128xf32>
    %c0_60 = arith.constant 0 : index
    %c0_61 = arith.constant 0 : index
    %c0_62 = arith.constant 0 : index
    %144 = vector.load %arg12[%c0_60, %c0_61, %c0_62] : memref<2x1x128xf32, #tpu.memory_space<vmem>>, vector<1x1x128xf32>
    %145 = vector.shape_cast %144 : vector<1x1x128xf32> to vector<1x128xf32>
    %cst_63 = arith.constant dense<0.000000e+00> : vector<16xf32>
    %146 = vector.multi_reduction <add>, %141, %cst_63 [1] : vector<16x128xf32> to vector<16xf32>
    %147 = vector.shape_cast %146 : vector<16xf32> to vector<16x1xf32>
    %cst_64 = arith.constant 1.280000e+02 : f32
    %148 = vector.broadcast %cst_64 : f32 to vector<16x1xf32>
    %149 = arith.divf %147, %148 : vector<16x1xf32>
    %150 = vector.broadcast %149 : vector<16x1xf32> to vector<16x128xf32>
    %151 = arith.subf %141, %150 : vector<16x128xf32>
    %152 = arith.mulf %151, %151 : vector<16x128xf32>
    %cst_65 = arith.constant dense<0.000000e+00> : vector<16xf32>
    %153 = vector.multi_reduction <add>, %152, %cst_65 [1] : vector<16x128xf32> to vector<16xf32>
    %154 = vector.shape_cast %153 : vector<16xf32> to vector<16x1xf32>
    %cst_66 = arith.constant 1.280000e+02 : f32
    %155 = vector.broadcast %cst_66 : f32 to vector<16x1xf32>
    %156 = arith.divf %154, %155 : vector<16x1xf32>
    %157 = vector.broadcast %149 : vector<16x1xf32> to vector<16x128xf32>
    %158 = arith.subf %141, %157 : vector<16x128xf32>
    %cst_67 = arith.constant 9.99999974E-6 : f32
    %159 = vector.broadcast %cst_67 : f32 to vector<16x1xf32>
    %160 = arith.addf %156, %159 : vector<16x1xf32>
    %161 = math.rsqrt %160 : vector<16x1xf32>
    %162 = vector.broadcast %161 : vector<16x1xf32> to vector<16x128xf32>
    %163 = arith.mulf %158, %162 : vector<16x128xf32>
    %164 = vector.broadcast %143 : vector<1x128xf32> to vector<16x128xf32>
    %165 = arith.mulf %163, %164 : vector<16x128xf32>
    %166 = vector.broadcast %145 : vector<1x128xf32> to vector<16x128xf32>
    %167 = arith.addf %165, %166 : vector<16x128xf32>
    %c0_68 = arith.constant 0 : index
    %c0_69 = arith.constant 0 : index
    %c0_70 = arith.constant 0 : index
    %168 = vector.load %arg13[%c0_68, %c0_69, %c0_70] : memref<2x128x512xbf16, #tpu.memory_space<vmem>>, vector<1x128x512xbf16>
    %169 = vector.shape_cast %168 : vector<1x128x512xbf16> to vector<128x512xbf16>
    %170 = arith.truncf %167 : vector<16x128xf32> to vector<16x128xbf16>
    %cst_71 = arith.constant dense<0.000000e+00> : vector<16x512xf32>
    %171 = tpu.matmul %170, %169, %cst_71 {dimension_numbers = #tpu.dot_dimension_numbers<[1], [0], [0], [1], [0, 0, 1, 1], [], []>} : vector<16x128xbf16>, vector<128x512xbf16>, vector<16x512xf32> -> vector<16x512xf32>
    %c0_72 = arith.constant 0 : index
    %c0_73 = arith.constant 0 : index
    %c0_74 = arith.constant 0 : index
    %172 = vector.load %arg14[%c0_72, %c0_73, %c0_74] : memref<2x1x512xf32, #tpu.memory_space<vmem>>, vector<1x1x512xf32>
    %173 = vector.shape_cast %172 : vector<1x1x512xf32> to vector<1x512xf32>
    %174 = vector.broadcast %173 : vector<1x512xf32> to vector<16x512xf32>
    %175 = arith.addf %171, %174 : vector<16x512xf32>
    %176 = arith.mulf %175, %175 : vector<16x512xf32>
    %177 = arith.mulf %175, %176 : vector<16x512xf32>
    %cst_75 = arith.constant 4.471500e-02 : f32
    %178 = vector.broadcast %cst_75 : f32 to vector<16x512xf32>
    %179 = arith.mulf %178, %177 : vector<16x512xf32>
    %180 = arith.addf %175, %179 : vector<16x512xf32>
    %cst_76 = arith.constant 0.797884583 : f32
    %181 = vector.broadcast %cst_76 : f32 to vector<16x512xf32>
    %182 = arith.mulf %181, %180 : vector<16x512xf32>
    %183 = math.tanh %182 : vector<16x512xf32>
    %cst_77 = arith.constant 1.000000e+00 : f32
    %184 = vector.broadcast %cst_77 : f32 to vector<16x512xf32>
    %185 = arith.addf %184, %183 : vector<16x512xf32>
    %cst_78 = arith.constant 5.000000e-01 : f32
    %186 = vector.broadcast %cst_78 : f32 to vector<16x512xf32>
    %187 = arith.mulf %186, %185 : vector<16x512xf32>
    %188 = arith.mulf %175, %187 : vector<16x512xf32>
    %c0_79 = arith.constant 0 : index
    %c0_80 = arith.constant 0 : index
    %c0_81 = arith.constant 0 : index
    %189 = vector.load %arg15[%c0_79, %c0_80, %c0_81] : memref<2x512x128xbf16, #tpu.memory_space<vmem>>, vector<1x512x128xbf16>
    %190 = vector.shape_cast %189 : vector<1x512x128xbf16> to vector<512x128xbf16>
    %191 = arith.truncf %188 : vector<16x512xf32> to vector<16x512xbf16>
    %cst_82 = arith.constant dense<0.000000e+00> : vector<16x128xf32>
    %192 = tpu.matmul %191, %190, %cst_82 {dimension_numbers = #tpu.dot_dimension_numbers<[1], [0], [0], [1], [0, 0, 1, 1], [], []>} : vector<16x512xbf16>, vector<512x128xbf16>, vector<16x128xf32> -> vector<16x128xf32>
    %193 = arith.addf %141, %192 : vector<16x128xf32>
    %c0_83 = arith.constant 0 : index
    %c0_84 = arith.constant 0 : index
    %c0_85 = arith.constant 0 : index
    %194 = vector.load %arg16[%c0_83, %c0_84, %c0_85] : memref<2x1x128xf32, #tpu.memory_space<vmem>>, vector<1x1x128xf32>
    %195 = vector.shape_cast %194 : vector<1x1x128xf32> to vector<1x128xf32>
    %196 = vector.broadcast %195 : vector<1x128xf32> to vector<16x128xf32>
    %197 = arith.addf %193, %196 : vector<16x128xf32>
    %c1 = arith.constant 1 : index
    %c0_86 = arith.constant 0 : index
    %c0_87 = arith.constant 0 : index
    %198 = vector.load %arg5[%c1, %c0_86, %c0_87] : memref<2x1x128xf32, #tpu.memory_space<vmem>>, vector<1x1x128xf32>
    %199 = vector.shape_cast %198 : vector<1x1x128xf32> to vector<1x128xf32>
    %c1_88 = arith.constant 1 : index
    %c0_89 = arith.constant 0 : index
    %c0_90 = arith.constant 0 : index
    %200 = vector.load %arg6[%c1_88, %c0_89, %c0_90] : memref<2x1x128xf32, #tpu.memory_space<vmem>>, vector<1x1x128xf32>
    %201 = vector.shape_cast %200 : vector<1x1x128xf32> to vector<1x128xf32>
    %cst_91 = arith.constant dense<0.000000e+00> : vector<16xf32>
    %202 = vector.multi_reduction <add>, %197, %cst_91 [1] : vector<16x128xf32> to vector<16xf32>
    %203 = vector.shape_cast %202 : vector<16xf32> to vector<16x1xf32>
    %cst_92 = arith.constant 1.280000e+02 : f32
    %204 = vector.broadcast %cst_92 : f32 to vector<16x1xf32>
    %205 = arith.divf %203, %204 : vector<16x1xf32>
    %206 = vector.broadcast %205 : vector<16x1xf32> to vector<16x128xf32>
    %207 = arith.subf %197, %206 : vector<16x128xf32>
    %208 = arith.mulf %207, %207 : vector<16x128xf32>
    %cst_93 = arith.constant dense<0.000000e+00> : vector<16xf32>
    %209 = vector.multi_reduction <add>, %208, %cst_93 [1] : vector<16x128xf32> to vector<16xf32>
    %210 = vector.shape_cast %209 : vector<16xf32> to vector<16x1xf32>
    %cst_94 = arith.constant 1.280000e+02 : f32
    %211 = vector.broadcast %cst_94 : f32 to vector<16x1xf32>
    %212 = arith.divf %210, %211 : vector<16x1xf32>
    %213 = vector.broadcast %205 : vector<16x1xf32> to vector<16x128xf32>
    %214 = arith.subf %197, %213 : vector<16x128xf32>
    %cst_95 = arith.constant 9.99999974E-6 : f32
    %215 = vector.broadcast %cst_95 : f32 to vector<16x1xf32>
    %216 = arith.addf %212, %215 : vector<16x1xf32>
    %217 = math.rsqrt %216 : vector<16x1xf32>
    %218 = vector.broadcast %217 : vector<16x1xf32> to vector<16x128xf32>
    %219 = arith.mulf %214, %218 : vector<16x128xf32>
    %220 = vector.broadcast %199 : vector<1x128xf32> to vector<16x128xf32>
    %221 = arith.mulf %219, %220 : vector<16x128xf32>
    %222 = vector.broadcast %201 : vector<1x128xf32> to vector<16x128xf32>
    %223 = arith.addf %221, %222 : vector<16x128xf32>
    %c1_96 = arith.constant 1 : index
    %c0_97 = arith.constant 0 : index
    %c0_98 = arith.constant 0 : index
    %224 = vector.load %arg7[%c1_96, %c0_97, %c0_98] : memref<2x128x384xbf16, #tpu.memory_space<vmem>>, vector<1x128x384xbf16>
    %225 = vector.shape_cast %224 : vector<1x128x384xbf16> to vector<128x384xbf16>
    %226 = arith.truncf %223 : vector<16x128xf32> to vector<16x128xbf16>
    %cst_99 = arith.constant dense<0.000000e+00> : vector<16x384xf32>
    %227 = tpu.matmul %226, %225, %cst_99 {dimension_numbers = #tpu.dot_dimension_numbers<[1], [0], [0], [1], [0, 0, 1, 1], [], []>} : vector<16x128xbf16>, vector<128x384xbf16>, vector<16x384xf32> -> vector<16x384xf32>
    %c1_100 = arith.constant 1 : index
    %c0_101 = arith.constant 0 : index
    %c0_102 = arith.constant 0 : index
    %228 = vector.load %arg8[%c1_100, %c0_101, %c0_102] : memref<2x1x384xf32, #tpu.memory_space<vmem>>, vector<1x1x384xf32>
    %229 = vector.shape_cast %228 : vector<1x1x384xf32> to vector<1x384xf32>
    %230 = vector.broadcast %229 : vector<1x384xf32> to vector<16x384xf32>
    %231 = arith.addf %227, %230 : vector<16x384xf32>
    %232 = vector.extract_strided_slice %231 {offsets = [0, 0], sizes = [16, 128], strides = [1, 1]} : vector<16x384xf32> to vector<16x128xf32>
    %233 = arith.truncf %232 : vector<16x128xf32> to vector<16x128xbf16>
    %234 = vector.extract_strided_slice %231 {offsets = [0, 128], sizes = [16, 128], strides = [1, 1]} : vector<16x384xf32> to vector<16x128xf32>
    %235 = arith.truncf %234 : vector<16x128xf32> to vector<16x128xbf16>
    %236 = vector.extract_strided_slice %231 {offsets = [0, 256], sizes = [16, 128], strides = [1, 1]} : vector<16x384xf32> to vector<16x128xf32>
    %237 = arith.truncf %236 : vector<16x128xf32> to vector<16x128xbf16>
    %238 = vector.extract_strided_slice %233 {offsets = [0, 0], sizes = [16, 32], strides = [1, 1]} : vector<16x128xbf16> to vector<16x32xbf16>
    %239 = vector.extract_strided_slice %235 {offsets = [0, 0], sizes = [16, 32], strides = [1, 1]} : vector<16x128xbf16> to vector<16x32xbf16>
    %240 = vector.extract_strided_slice %237 {offsets = [0, 0], sizes = [16, 32], strides = [1, 1]} : vector<16x128xbf16> to vector<16x32xbf16>
    %cst_103 = arith.constant dense<0.000000e+00> : vector<16x16xf32>
    %241 = tpu.matmul %238, %239, %cst_103 {dimension_numbers = #tpu.dot_dimension_numbers<[1], [1], [0], [0], [0, 0, 1, 0], [], []>} : vector<16x32xbf16>, vector<16x32xbf16>, vector<16x16xf32> -> vector<16x16xf32>
    %242 = arith.addf %241, %19 : vector<16x16xf32>
    %cst_104 = arith.constant dense<0xFF800000> : vector<16xf32>
    %243 = vector.multi_reduction <maximumf>, %242, %cst_104 [1] : vector<16x16xf32> to vector<16xf32>
    %244 = vector.shape_cast %243 : vector<16xf32> to vector<16x1xf32>
    %245 = vector.broadcast %244 : vector<16x1xf32> to vector<16x16xf32>
    %246 = arith.subf %242, %245 : vector<16x16xf32>
    %247 = math.exp %246 : vector<16x16xf32>
    %cst_105 = arith.constant dense<0.000000e+00> : vector<16xf32>
    %248 = vector.multi_reduction <add>, %247, %cst_105 [1] : vector<16x16xf32> to vector<16xf32>
    %249 = vector.shape_cast %248 : vector<16xf32> to vector<16x1xf32>
    %250 = arith.truncf %247 : vector<16x16xf32> to vector<16x16xbf16>
    %cst_106 = arith.constant dense<0.000000e+00> : vector<16x32xf32>
    %251 = tpu.matmul %250, %240, %cst_106 {dimension_numbers = #tpu.dot_dimension_numbers<[1], [0], [0], [1], [0, 0, 1, 1], [], []>} : vector<16x16xbf16>, vector<16x32xbf16>, vector<16x32xf32> -> vector<16x32xf32>
    %252 = tpu.reciprocal %249 {approx = true} : vector<16x1xf32> -> vector<16x1xf32>
    %253 = vector.broadcast %252 : vector<16x1xf32> to vector<16x32xf32>
    %254 = arith.mulf %251, %253 : vector<16x32xf32>
    %c0_107 = arith.constant 0 : index
    %c0_108 = arith.constant 0 : index
    %255 = vector.load %arg25[%c0_107, %c0_108] : memref<16x128xf32, #tpu.memory_space<vmem>>, vector<16x32xf32>
    tpu.vector_store %arg25[%c0_107, %c0_108], %254 {strides = array<i32>} : memref<16x128xf32, #tpu.memory_space<vmem>>, vector<16x32xf32>,
    %256 = vector.extract_strided_slice %233 {offsets = [0, 32], sizes = [16, 32], strides = [1, 1]} : vector<16x128xbf16> to vector<16x32xbf16>
    %257 = vector.extract_strided_slice %235 {offsets = [0, 32], sizes = [16, 32], strides = [1, 1]} : vector<16x128xbf16> to vector<16x32xbf16>
    %258 = vector.extract_strided_slice %237 {offsets = [0, 32], sizes = [16, 32], strides = [1, 1]} : vector<16x128xbf16> to vector<16x32xbf16>
    %cst_109 = arith.constant dense<0.000000e+00> : vector<16x16xf32>
    %259 = tpu.matmul %256, %257, %cst_109 {dimension_numbers = #tpu.dot_dimension_numbers<[1], [1], [0], [0], [0, 0, 1, 0], [], []>} : vector<16x32xbf16>, vector<16x32xbf16>, vector<16x16xf32> -> vector<16x16xf32>
    %260 = arith.addf %259, %19 : vector<16x16xf32>
    %cst_110 = arith.constant dense<0xFF800000> : vector<16xf32>
    %261 = vector.multi_reduction <maximumf>, %260, %cst_110 [1] : vector<16x16xf32> to vector<16xf32>
    %262 = vector.shape_cast %261 : vector<16xf32> to vector<16x1xf32>
    %263 = vector.broadcast %262 : vector<16x1xf32> to vector<16x16xf32>
    %264 = arith.subf %260, %263 : vector<16x16xf32>
    %265 = math.exp %264 : vector<16x16xf32>
    %cst_111 = arith.constant dense<0.000000e+00> : vector<16xf32>
    %266 = vector.multi_reduction <add>, %265, %cst_111 [1] : vector<16x16xf32> to vector<16xf32>
    %267 = vector.shape_cast %266 : vector<16xf32> to vector<16x1xf32>
    %268 = arith.truncf %265 : vector<16x16xf32> to vector<16x16xbf16>
    %cst_112 = arith.constant dense<0.000000e+00> : vector<16x32xf32>
    %269 = tpu.matmul %268, %258, %cst_112 {dimension_numbers = #tpu.dot_dimension_numbers<[1], [0], [0], [1], [0, 0, 1, 1], [], []>} : vector<16x16xbf16>, vector<16x32xbf16>, vector<16x32xf32> -> vector<16x32xf32>
    %270 = tpu.reciprocal %267 {approx = true} : vector<16x1xf32> -> vector<16x1xf32>
    %271 = vector.broadcast %270 : vector<16x1xf32> to vector<16x32xf32>
    %272 = arith.mulf %269, %271 : vector<16x32xf32>
    %c0_113 = arith.constant 0 : index
    %c32_114 = arith.constant 32 : index
    %273 = vector.load %arg25[%c0_113, %c32_114] : memref<16x128xf32, #tpu.memory_space<vmem>>, vector<16x32xf32>
    tpu.vector_store %arg25[%c0_113, %c32_114], %272 {strides = array<i32>} : memref<16x128xf32, #tpu.memory_space<vmem>>, vector<16x32xf32>,
    %274 = vector.extract_strided_slice %233 {offsets = [0, 64], sizes = [16, 32], strides = [1, 1]} : vector<16x128xbf16> to vector<16x32xbf16>
    %275 = vector.extract_strided_slice %235 {offsets = [0, 64], sizes = [16, 32], strides = [1, 1]} : vector<16x128xbf16> to vector<16x32xbf16>
    %276 = vector.extract_strided_slice %237 {offsets = [0, 64], sizes = [16, 32], strides = [1, 1]} : vector<16x128xbf16> to vector<16x32xbf16>
    %cst_115 = arith.constant dense<0.000000e+00> : vector<16x16xf32>
    %277 = tpu.matmul %274, %275, %cst_115 {dimension_numbers = #tpu.dot_dimension_numbers<[1], [1], [0], [0], [0, 0, 1, 0], [], []>} : vector<16x32xbf16>, vector<16x32xbf16>, vector<16x16xf32> -> vector<16x16xf32>
    %278 = arith.addf %277, %19 : vector<16x16xf32>
    %cst_116 = arith.constant dense<0xFF800000> : vector<16xf32>
    %279 = vector.multi_reduction <maximumf>, %278, %cst_116 [1] : vector<16x16xf32> to vector<16xf32>
    %280 = vector.shape_cast %279 : vector<16xf32> to vector<16x1xf32>
    %281 = vector.broadcast %280 : vector<16x1xf32> to vector<16x16xf32>
    %282 = arith.subf %278, %281 : vector<16x16xf32>
    %283 = math.exp %282 : vector<16x16xf32>
    %cst_117 = arith.constant dense<0.000000e+00> : vector<16xf32>
    %284 = vector.multi_reduction <add>, %283, %cst_117 [1] : vector<16x16xf32> to vector<16xf32>
    %285 = vector.shape_cast %284 : vector<16xf32> to vector<16x1xf32>
    %286 = arith.truncf %283 : vector<16x16xf32> to vector<16x16xbf16>
    %cst_118 = arith.constant dense<0.000000e+00> : vector<16x32xf32>
    %287 = tpu.matmul %286, %276, %cst_118 {dimension_numbers = #tpu.dot_dimension_numbers<[1], [0], [0], [1], [0, 0, 1, 1], [], []>} : vector<16x16xbf16>, vector<16x32xbf16>, vector<16x32xf32> -> vector<16x32xf32>
    %288 = tpu.reciprocal %285 {approx = true} : vector<16x1xf32> -> vector<16x1xf32>
    %289 = vector.broadcast %288 : vector<16x1xf32> to vector<16x32xf32>
    %290 = arith.mulf %287, %289 : vector<16x32xf32>
    %c0_119 = arith.constant 0 : index
    %c64_120 = arith.constant 64 : index
    %291 = vector.load %arg25[%c0_119, %c64_120] : memref<16x128xf32, #tpu.memory_space<vmem>>, vector<16x32xf32>
    tpu.vector_store %arg25[%c0_119, %c64_120], %290 {strides = array<i32>} : memref<16x128xf32, #tpu.memory_space<vmem>>, vector<16x32xf32>,
    %292 = vector.extract_strided_slice %233 {offsets = [0, 96], sizes = [16, 32], strides = [1, 1]} : vector<16x128xbf16> to vector<16x32xbf16>
    %293 = vector.extract_strided_slice %235 {offsets = [0, 96], sizes = [16, 32], strides = [1, 1]} : vector<16x128xbf16> to vector<16x32xbf16>
    %294 = vector.extract_strided_slice %237 {offsets = [0, 96], sizes = [16, 32], strides = [1, 1]} : vector<16x128xbf16> to vector<16x32xbf16>
    %cst_121 = arith.constant dense<0.000000e+00> : vector<16x16xf32>
    %295 = tpu.matmul %292, %293, %cst_121 {dimension_numbers = #tpu.dot_dimension_numbers<[1], [1], [0], [0], [0, 0, 1, 0], [], []>} : vector<16x32xbf16>, vector<16x32xbf16>, vector<16x16xf32> -> vector<16x16xf32>
    %296 = arith.addf %295, %19 : vector<16x16xf32>
    %cst_122 = arith.constant dense<0xFF800000> : vector<16xf32>
    %297 = vector.multi_reduction <maximumf>, %296, %cst_122 [1] : vector<16x16xf32> to vector<16xf32>
    %298 = vector.shape_cast %297 : vector<16xf32> to vector<16x1xf32>
    %299 = vector.broadcast %298 : vector<16x1xf32> to vector<16x16xf32>
    %300 = arith.subf %296, %299 : vector<16x16xf32>
    %301 = math.exp %300 : vector<16x16xf32>
    %cst_123 = arith.constant dense<0.000000e+00> : vector<16xf32>
    %302 = vector.multi_reduction <add>, %301, %cst_123 [1] : vector<16x16xf32> to vector<16xf32>
    %303 = vector.shape_cast %302 : vector<16xf32> to vector<16x1xf32>
    %304 = arith.truncf %301 : vector<16x16xf32> to vector<16x16xbf16>
    %cst_124 = arith.constant dense<0.000000e+00> : vector<16x32xf32>
    %305 = tpu.matmul %304, %294, %cst_124 {dimension_numbers = #tpu.dot_dimension_numbers<[1], [0], [0], [1], [0, 0, 1, 1], [], []>} : vector<16x16xbf16>, vector<16x32xbf16>, vector<16x32xf32> -> vector<16x32xf32>
    %306 = tpu.reciprocal %303 {approx = true} : vector<16x1xf32> -> vector<16x1xf32>
    %307 = vector.broadcast %306 : vector<16x1xf32> to vector<16x32xf32>
    %308 = arith.mulf %305, %307 : vector<16x32xf32>
    %c0_125 = arith.constant 0 : index
    %c96_126 = arith.constant 96 : index
    %309 = vector.load %arg25[%c0_125, %c96_126] : memref<16x128xf32, #tpu.memory_space<vmem>>, vector<16x32xf32>
    tpu.vector_store %arg25[%c0_125, %c96_126], %308 {strides = array<i32>} : memref<16x128xf32, #tpu.memory_space<vmem>>, vector<16x32xf32>,
    %c0_127 = arith.constant 0 : index
    %c0_128 = arith.constant 0 : index
    %310 = vector.load %arg25[%c0_127, %c0_128] : memref<16x128xf32, #tpu.memory_space<vmem>>, vector<16x128xf32>
    %c1_129 = arith.constant 1 : index
    %c0_130 = arith.constant 0 : index
    %c0_131 = arith.constant 0 : index
    %311 = vector.load %arg9[%c1_129, %c0_130, %c0_131] : memref<2x128x128xbf16, #tpu.memory_space<vmem>>, vector<1x128x128xbf16>
    %312 = vector.shape_cast %311 : vector<1x128x128xbf16> to vector<128x128xbf16>
    %313 = arith.truncf %310 : vector<16x128xf32> to vector<16x128xbf16>
    %cst_132 = arith.constant dense<0.000000e+00> : vector<16x128xf32>
    %314 = tpu.matmul %313, %312, %cst_132 {dimension_numbers = #tpu.dot_dimension_numbers<[1], [0], [0], [1], [0, 0, 1, 1], [], []>} : vector<16x128xbf16>, vector<128x128xbf16>, vector<16x128xf32> -> vector<16x128xf32>
    %c1_133 = arith.constant 1 : index
    %c0_134 = arith.constant 0 : index
    %c0_135 = arith.constant 0 : index
    %315 = vector.load %arg10[%c1_133, %c0_134, %c0_135] : memref<2x1x128xf32, #tpu.memory_space<vmem>>, vector<1x1x128xf32>
    %316 = vector.shape_cast %315 : vector<1x1x128xf32> to vector<1x128xf32>
    %317 = vector.broadcast %316 : vector<1x128xf32> to vector<16x128xf32>
    %318 = arith.addf %314, %317 : vector<16x128xf32>
    %319 = arith.addf %197, %318 : vector<16x128xf32>
    %c1_136 = arith.constant 1 : index
    %c0_137 = arith.constant 0 : index
    %c0_138 = arith.constant 0 : index
    %320 = vector.load %arg11[%c1_136, %c0_137, %c0_138] : memref<2x1x128xf32, #tpu.memory_space<vmem>>, vector<1x1x128xf32>
    %321 = vector.shape_cast %320 : vector<1x1x128xf32> to vector<1x128xf32>
    %c1_139 = arith.constant 1 : index
    %c0_140 = arith.constant 0 : index
    %c0_141 = arith.constant 0 : index
    %322 = vector.load %arg12[%c1_139, %c0_140, %c0_141] : memref<2x1x128xf32, #tpu.memory_space<vmem>>, vector<1x1x128xf32>
    %323 = vector.shape_cast %322 : vector<1x1x128xf32> to vector<1x128xf32>
    %cst_142 = arith.constant dense<0.000000e+00> : vector<16xf32>
    %324 = vector.multi_reduction <add>, %319, %cst_142 [1] : vector<16x128xf32> to vector<16xf32>
    %325 = vector.shape_cast %324 : vector<16xf32> to vector<16x1xf32>
    %cst_143 = arith.constant 1.280000e+02 : f32
    %326 = vector.broadcast %cst_143 : f32 to vector<16x1xf32>
    %327 = arith.divf %325, %326 : vector<16x1xf32>
    %328 = vector.broadcast %327 : vector<16x1xf32> to vector<16x128xf32>
    %329 = arith.subf %319, %328 : vector<16x128xf32>
    %330 = arith.mulf %329, %329 : vector<16x128xf32>
    %cst_144 = arith.constant dense<0.000000e+00> : vector<16xf32>
    %331 = vector.multi_reduction <add>, %330, %cst_144 [1] : vector<16x128xf32> to vector<16xf32>
    %332 = vector.shape_cast %331 : vector<16xf32> to vector<16x1xf32>
    %cst_145 = arith.constant 1.280000e+02 : f32
    %333 = vector.broadcast %cst_145 : f32 to vector<16x1xf32>
    %334 = arith.divf %332, %333 : vector<16x1xf32>
    %335 = vector.broadcast %327 : vector<16x1xf32> to vector<16x128xf32>
    %336 = arith.subf %319, %335 : vector<16x128xf32>
    %cst_146 = arith.constant 9.99999974E-6 : f32
    %337 = vector.broadcast %cst_146 : f32 to vector<16x1xf32>
    %338 = arith.addf %334, %337 : vector<16x1xf32>
    %339 = math.rsqrt %338 : vector<16x1xf32>
    %340 = vector.broadcast %339 : vector<16x1xf32> to vector<16x128xf32>
    %341 = arith.mulf %336, %340 : vector<16x128xf32>
    %342 = vector.broadcast %321 : vector<1x128xf32> to vector<16x128xf32>
    %343 = arith.mulf %341, %342 : vector<16x128xf32>
    %344 = vector.broadcast %323 : vector<1x128xf32> to vector<16x128xf32>
    %345 = arith.addf %343, %344 : vector<16x128xf32>
    %c1_147 = arith.constant 1 : index
    %c0_148 = arith.constant 0 : index
    %c0_149 = arith.constant 0 : index
    %346 = vector.load %arg13[%c1_147, %c0_148, %c0_149] : memref<2x128x512xbf16, #tpu.memory_space<vmem>>, vector<1x128x512xbf16>
    %347 = vector.shape_cast %346 : vector<1x128x512xbf16> to vector<128x512xbf16>
    %348 = arith.truncf %345 : vector<16x128xf32> to vector<16x128xbf16>
    %cst_150 = arith.constant dense<0.000000e+00> : vector<16x512xf32>
    %349 = tpu.matmul %348, %347, %cst_150 {dimension_numbers = #tpu.dot_dimension_numbers<[1], [0], [0], [1], [0, 0, 1, 1], [], []>} : vector<16x128xbf16>, vector<128x512xbf16>, vector<16x512xf32> -> vector<16x512xf32>
    %c1_151 = arith.constant 1 : index
    %c0_152 = arith.constant 0 : index
    %c0_153 = arith.constant 0 : index
    %350 = vector.load %arg14[%c1_151, %c0_152, %c0_153] : memref<2x1x512xf32, #tpu.memory_space<vmem>>, vector<1x1x512xf32>
    %351 = vector.shape_cast %350 : vector<1x1x512xf32> to vector<1x512xf32>
    %352 = vector.broadcast %351 : vector<1x512xf32> to vector<16x512xf32>
    %353 = arith.addf %349, %352 : vector<16x512xf32>
    %354 = arith.mulf %353, %353 : vector<16x512xf32>
    %355 = arith.mulf %353, %354 : vector<16x512xf32>
    %cst_154 = arith.constant 4.471500e-02 : f32
    %356 = vector.broadcast %cst_154 : f32 to vector<16x512xf32>
    %357 = arith.mulf %356, %355 : vector<16x512xf32>
    %358 = arith.addf %353, %357 : vector<16x512xf32>
    %cst_155 = arith.constant 0.797884583 : f32
    %359 = vector.broadcast %cst_155 : f32 to vector<16x512xf32>
    %360 = arith.mulf %359, %358 : vector<16x512xf32>
    %361 = math.tanh %360 : vector<16x512xf32>
    %cst_156 = arith.constant 1.000000e+00 : f32
    %362 = vector.broadcast %cst_156 : f32 to vector<16x512xf32>
    %363 = arith.addf %362, %361 : vector<16x512xf32>
    %cst_157 = arith.constant 5.000000e-01 : f32
    %364 = vector.broadcast %cst_157 : f32 to vector<16x512xf32>
    %365 = arith.mulf %364, %363 : vector<16x512xf32>
    %366 = arith.mulf %353, %365 : vector<16x512xf32>
    %c1_158 = arith.constant 1 : index
    %c0_159 = arith.constant 0 : index
    %c0_160 = arith.constant 0 : index
    %367 = vector.load %arg15[%c1_158, %c0_159, %c0_160] : memref<2x512x128xbf16, #tpu.memory_space<vmem>>, vector<1x512x128xbf16>
    %368 = vector.shape_cast %367 : vector<1x512x128xbf16> to vector<512x128xbf16>
    %369 = arith.truncf %366 : vector<16x512xf32> to vector<16x512xbf16>
    %cst_161 = arith.constant dense<0.000000e+00> : vector<16x128xf32>
    %370 = tpu.matmul %369, %368, %cst_161 {dimension_numbers = #tpu.dot_dimension_numbers<[1], [0], [0], [1], [0, 0, 1, 1], [], []>} : vector<16x512xbf16>, vector<512x128xbf16>, vector<16x128xf32> -> vector<16x128xf32>
    %371 = arith.addf %319, %370 : vector<16x128xf32>
    %c1_162 = arith.constant 1 : index
    %c0_163 = arith.constant 0 : index
    %c0_164 = arith.constant 0 : index
    %372 = vector.load %arg16[%c1_162, %c0_163, %c0_164] : memref<2x1x128xf32, #tpu.memory_space<vmem>>, vector<1x1x128xf32>
    %373 = vector.shape_cast %372 : vector<1x1x128xf32> to vector<1x128xf32>
    %374 = vector.broadcast %373 : vector<1x128xf32> to vector<16x128xf32>
    %375 = arith.addf %371, %374 : vector<16x128xf32>
    %376 = vector.extract_strided_slice %375 {offsets = [8, 0], sizes = [8, 128], strides = [1, 1]} : vector<16x128xf32> to vector<8x128xf32>
    %c0_165 = arith.constant 0 : index
    %c0_166 = arith.constant 0 : index
    %377 = vector.load %arg17[%c0_165, %c0_166] : memref<1x128xf32, #tpu.memory_space<vmem>>, vector<1x128xf32>
    %c0_167 = arith.constant 0 : index
    %c0_168 = arith.constant 0 : index
    %378 = vector.load %arg18[%c0_167, %c0_168] : memref<1x128xf32, #tpu.memory_space<vmem>>, vector<1x128xf32>
    %cst_169 = arith.constant dense<0.000000e+00> : vector<8xf32>
    %379 = vector.multi_reduction <add>, %376, %cst_169 [1] : vector<8x128xf32> to vector<8xf32>
    %380 = vector.shape_cast %379 : vector<8xf32> to vector<8x1xf32>
    %cst_170 = arith.constant 1.280000e+02 : f32
    %381 = vector.broadcast %cst_170 : f32 to vector<8x1xf32>
    %382 = arith.divf %380, %381 : vector<8x1xf32>
    %383 = vector.broadcast %382 : vector<8x1xf32> to vector<8x128xf32>
    %384 = arith.subf %376, %383 : vector<8x128xf32>
    %385 = arith.mulf %384, %384 : vector<8x128xf32>
    %cst_171 = arith.constant dense<0.000000e+00> : vector<8xf32>
    %386 = vector.multi_reduction <add>, %385, %cst_171 [1] : vector<8x128xf32> to vector<8xf32>
    %387 = vector.shape_cast %386 : vector<8xf32> to vector<8x1xf32>
    %cst_172 = arith.constant 1.280000e+02 : f32
    %388 = vector.broadcast %cst_172 : f32 to vector<8x1xf32>
    %389 = arith.divf %387, %388 : vector<8x1xf32>
    %390 = vector.broadcast %382 : vector<8x1xf32> to vector<8x128xf32>
    %391 = arith.subf %376, %390 : vector<8x128xf32>
    %cst_173 = arith.constant 9.99999974E-6 : f32
    %392 = vector.broadcast %cst_173 : f32 to vector<8x1xf32>
    %393 = arith.addf %389, %392 : vector<8x1xf32>
    %394 = math.rsqrt %393 : vector<8x1xf32>
    %395 = vector.broadcast %394 : vector<8x1xf32> to vector<8x128xf32>
    %396 = arith.mulf %391, %395 : vector<8x128xf32>
    %397 = vector.broadcast %377 : vector<1x128xf32> to vector<8x128xf32>
    %398 = arith.mulf %396, %397 : vector<8x128xf32>
    %399 = vector.broadcast %378 : vector<1x128xf32> to vector<8x128xf32>
    %400 = arith.addf %398, %399 : vector<8x128xf32>
    %c0_174 = arith.constant 0 : index
    %c0_175 = arith.constant 0 : index
    %401 = vector.load %arg19[%c0_174, %c0_175] : memref<128x128xbf16, #tpu.memory_space<vmem>>, vector<128x128xbf16>
    %402 = arith.truncf %400 : vector<8x128xf32> to vector<8x128xbf16>
    %cst_176 = arith.constant dense<0.000000e+00> : vector<8x128xf32>
    %403 = tpu.matmul %402, %401, %cst_176 {dimension_numbers = #tpu.dot_dimension_numbers<[1], [0], [0], [1], [0, 0, 1, 1], [], []>} : vector<8x128xbf16>, vector<128x128xbf16>, vector<8x128xf32> -> vector<8x128xf32>
    %c0_177 = arith.constant 0 : index
    %c0_178 = arith.constant 0 : index
    %404 = vector.load %arg20[%c0_177, %c0_178] : memref<1x128xf32, #tpu.memory_space<vmem>>, vector<1x128xf32>
    %405 = vector.broadcast %404 : vector<1x128xf32> to vector<8x128xf32>
    %406 = arith.addf %403, %405 : vector<8x128xf32>
    %c0_179 = arith.constant 0 : index
    %c0_180 = arith.constant 0 : index
    %c0_181 = arith.constant 0 : index
    %407 = vector.load %arg23[%c0_179, %c0_180, %c0_181] : memref<1x8x128xf32, #tpu.memory_space<vmem>>, vector<1x8x128xf32>
    %408 = vector.shape_cast %407 : vector<1x8x128xf32> to vector<8x128xf32>
    %409 = vector.shape_cast %406 : vector<8x128xf32> to vector<1x8x128xf32>
    tpu.vector_store %arg23[%c0_179, %c0_180, %c0_181], %409 {strides = array<i32>} : memref<1x8x128xf32, #tpu.memory_space<vmem>>, vector<1x8x128xf32>,
    %c0_182 = arith.constant 0 : index
    %c0_183 = arith.constant 0 : index
    %410 = vector.load %arg21[%c0_182, %c0_183] : memref<1x128xf32, #tpu.memory_space<vmem>>, vector<1x128xf32>
    %411 = vector.broadcast %410 : vector<1x128xf32> to vector<8x128xf32>
    %412 = arith.mulf %400, %411 : vector<8x128xf32>
    %cst_184 = arith.constant dense<0.000000e+00> : vector<8xf32>
    %413 = vector.multi_reduction <add>, %412, %cst_184 [1] : vector<8x128xf32> to vector<8xf32>
    %414 = vector.shape_cast %413 : vector<8xf32> to vector<8x1xf32>
    %c0_185 = arith.constant 0 : index
    %c0_186 = arith.constant 0 : index
    %415 = vector.load %arg22[%c0_185, %c0_186] : memref<1x1xf32, #tpu.memory_space<vmem>>, vector<1x1xf32>
    %416 = vector.broadcast %415 : vector<1x1xf32> to vector<8x1xf32>
    %417 = arith.addf %414, %416 : vector<8x1xf32>
    %c0_187 = arith.constant 0 : index
    %c0_188 = arith.constant 0 : index
    %c0_189 = arith.constant 0 : index
    %418 = vector.load %arg24[%c0_187, %c0_188, %c0_189] : memref<1x8x1xf32, #tpu.memory_space<vmem>>, vector<1x8x1xf32>
    %419 = vector.shape_cast %418 : vector<1x8x1xf32> to vector<8x1xf32>
    %420 = vector.shape_cast %417 : vector<8x1xf32> to vector<1x8x1xf32>
    tpu.vector_store %arg24[%c0_187, %c0_188, %c0_189], %420 {strides = array<i32>} : memref<1x8x1xf32, #tpu.memory_space<vmem>>, vector<1x8x1xf32>,
    return
  }
  func.func @transform_0(%arg0: i32, %arg1: memref<2xi32, #tpu.memory_space<smem>>) -> (i32, i32, i32) {
    %c0_i32 = arith.constant 0 : i32
    %c0_i32_0 = arith.constant 0 : i32
    %c0_i32_1 = arith.constant 0 : i32
    return %arg0, %c0_i32, %c0_i32_0 : i32, i32, i32
  }
  func.func @transform_1(%arg0: i32, %arg1: memref<2xi32, #tpu.memory_space<smem>>) -> (i32, i32, i32) {
    %c0_i32 = arith.constant 0 : i32
    %c0_i32_0 = arith.constant 0 : i32
    %c0_i32_1 = arith.constant 0 : i32
    return %arg0, %c0_i32, %c0_i32_0 : i32, i32, i32
  }
  func.func @transform_2(%arg0: i32, %arg1: memref<2xi32, #tpu.memory_space<smem>>) -> (i32, i32) {
    %c0_i32 = arith.constant 0 : i32
    %c0_i32_0 = arith.constant 0 : i32
    %c0_i32_1 = arith.constant 0 : i32
    return %c0_i32, %c0_i32_0 : i32, i32
  }
  func.func @transform_3(%arg0: i32, %arg1: memref<2xi32, #tpu.memory_space<smem>>) -> (i32, i32, i32) {
    %c0_i32 = arith.constant 0 : i32
    %c0_i32_0 = arith.constant 0 : i32
    %c0_i32_1 = arith.constant 0 : i32
    %c0_i32_2 = arith.constant 0 : i32
    return %c0_i32, %c0_i32_0, %c0_i32_1 : i32, i32, i32
  }
  func.func @transform_4(%arg0: i32, %arg1: memref<2xi32, #tpu.memory_space<smem>>) -> (i32, i32, i32) {
    %c0_i32 = arith.constant 0 : i32
    %c0_i32_0 = arith.constant 0 : i32
    %c0_i32_1 = arith.constant 0 : i32
    %c0_i32_2 = arith.constant 0 : i32
    return %c0_i32, %c0_i32_0, %c0_i32_1 : i32, i32, i32
  }
  func.func @transform_5(%arg0: i32, %arg1: memref<2xi32, #tpu.memory_space<smem>>) -> (i32, i32, i32) {
    %c0_i32 = arith.constant 0 : i32
    %c0_i32_0 = arith.constant 0 : i32
    %c0_i32_1 = arith.constant 0 : i32
    %c0_i32_2 = arith.constant 0 : i32
    return %c0_i32, %c0_i32_0, %c0_i32_1 : i32, i32, i32
  }
  func.func @transform_6(%arg0: i32, %arg1: memref<2xi32, #tpu.memory_space<smem>>) -> (i32, i32, i32) {
    %c0_i32 = arith.constant 0 : i32
    %c0_i32_0 = arith.constant 0 : i32
    %c0_i32_1 = arith.constant 0 : i32
    %c0_i32_2 = arith.constant 0 : i32
    return %c0_i32, %c0_i32_0, %c0_i32_1 : i32, i32, i32
  }
  func.func @transform_7(%arg0: i32, %arg1: memref<2xi32, #tpu.memory_space<smem>>) -> (i32, i32, i32) {
    %c0_i32 = arith.constant 0 : i32
    %c0_i32_0 = arith.constant 0 : i32
    %c0_i32_1 = arith.constant 0 : i32
    %c0_i32_2 = arith.constant 0 : i32
    return %c0_i32, %c0_i32_0, %c0_i32_1 : i32, i32, i32
  }
  func.func @transform_8(%arg0: i32, %arg1: memref<2xi32, #tpu.memory_space<smem>>) -> (i32, i32, i32) {
    %c0_i32 = arith.constant 0 : i32
    %c0_i32_0 = arith.constant 0 : i32
    %c0_i32_1 = arith.constant 0 : i32
    %c0_i32_2 = arith.constant 0 : i32
    return %c0_i32, %c0_i32_0, %c0_i32_1 : i32, i32, i32
  }
  func.func @transform_9(%arg0: i32, %arg1: memref<2xi32, #tpu.memory_space<smem>>) -> (i32, i32, i32) {
    %c0_i32 = arith.constant 0 : i32
    %c0_i32_0 = arith.constant 0 : i32
    %c0_i32_1 = arith.constant 0 : i32
    %c0_i32_2 = arith.constant 0 : i32
    return %c0_i32, %c0_i32_0, %c0_i32_1 : i32, i32, i32
  }
  func.func @transform_10(%arg0: i32, %arg1: memref<2xi32, #tpu.memory_space<smem>>) -> (i32, i32, i32) {
    %c0_i32 = arith.constant 0 : i32
    %c0_i32_0 = arith.constant 0 : i32
    %c0_i32_1 = arith.constant 0 : i32
    %c0_i32_2 = arith.constant 0 : i32
    return %c0_i32, %c0_i32_0, %c0_i32_1 : i32, i32, i32
  }
  func.func @transform_11(%arg0: i32, %arg1: memref<2xi32, #tpu.memory_space<smem>>) -> (i32, i32, i32) {
    %c0_i32 = arith.constant 0 : i32
    %c0_i32_0 = arith.constant 0 : i32
    %c0_i32_1 = arith.constant 0 : i32
    %c0_i32_2 = arith.constant 0 : i32
    return %c0_i32, %c0_i32_0, %c0_i32_1 : i32, i32, i32
  }
  func.func @transform_12(%arg0: i32, %arg1: memref<2xi32, #tpu.memory_space<smem>>) -> (i32, i32, i32) {
    %c0_i32 = arith.constant 0 : i32
    %c0_i32_0 = arith.constant 0 : i32
    %c0_i32_1 = arith.constant 0 : i32
    %c0_i32_2 = arith.constant 0 : i32
    return %c0_i32, %c0_i32_0, %c0_i32_1 : i32, i32, i32
  }
  func.func @transform_13(%arg0: i32, %arg1: memref<2xi32, #tpu.memory_space<smem>>) -> (i32, i32, i32) {
    %c0_i32 = arith.constant 0 : i32
    %c0_i32_0 = arith.constant 0 : i32
    %c0_i32_1 = arith.constant 0 : i32
    %c0_i32_2 = arith.constant 0 : i32
    return %c0_i32, %c0_i32_0, %c0_i32_1 : i32, i32, i32
  }
  func.func @transform_14(%arg0: i32, %arg1: memref<2xi32, #tpu.memory_space<smem>>) -> (i32, i32, i32) {
    %c0_i32 = arith.constant 0 : i32
    %c0_i32_0 = arith.constant 0 : i32
    %c0_i32_1 = arith.constant 0 : i32
    %c0_i32_2 = arith.constant 0 : i32
    return %c0_i32, %c0_i32_0, %c0_i32_1 : i32, i32, i32
  }
  func.func @transform_15(%arg0: i32, %arg1: memref<2xi32, #tpu.memory_space<smem>>) -> (i32, i32) {
    %c0_i32 = arith.constant 0 : i32
    %c0_i32_0 = arith.constant 0 : i32
    %c0_i32_1 = arith.constant 0 : i32
    return %c0_i32, %c0_i32_0 : i32, i32
  }
  func.func @transform_16(%arg0: i32, %arg1: memref<2xi32, #tpu.memory_space<smem>>) -> (i32, i32) {
    %c0_i32 = arith.constant 0 : i32
    %c0_i32_0 = arith.constant 0 : i32
    %c0_i32_1 = arith.constant 0 : i32
    return %c0_i32, %c0_i32_0 : i32, i32
  }
  func.func @transform_17(%arg0: i32, %arg1: memref<2xi32, #tpu.memory_space<smem>>) -> (i32, i32) {
    %c0_i32 = arith.constant 0 : i32
    %c0_i32_0 = arith.constant 0 : i32
    %c0_i32_1 = arith.constant 0 : i32
    return %c0_i32, %c0_i32_0 : i32, i32
  }
  func.func @transform_18(%arg0: i32, %arg1: memref<2xi32, #tpu.memory_space<smem>>) -> (i32, i32) {
    %c0_i32 = arith.constant 0 : i32
    %c0_i32_0 = arith.constant 0 : i32
    %c0_i32_1 = arith.constant 0 : i32
    return %c0_i32, %c0_i32_0 : i32, i32
  }
  func.func @transform_19(%arg0: i32, %arg1: memref<2xi32, #tpu.memory_space<smem>>) -> (i32, i32) {
    %c0_i32 = arith.constant 0 : i32
    %c0_i32_0 = arith.constant 0 : i32
    %c0_i32_1 = arith.constant 0 : i32
    return %c0_i32, %c0_i32_0 : i32, i32
  }
  func.func @transform_20(%arg0: i32, %arg1: memref<2xi32, #tpu.memory_space<smem>>) -> (i32, i32) {
    %c0_i32 = arith.constant 0 : i32
    %c0_i32_0 = arith.constant 0 : i32
    %c0_i32_1 = arith.constant 0 : i32
    return %c0_i32, %c0_i32_0 : i32, i32
  }
  func.func @transform_21(%arg0: i32, %arg1: memref<2xi32, #tpu.memory_space<smem>>) -> (i32, i32, i32) {
    %c0_i32 = arith.constant 0 : i32
    %c0_i32_0 = arith.constant 0 : i32
    %c0_i32_1 = arith.constant 0 : i32
    return %arg0, %c0_i32, %c0_i32_0 : i32, i32, i32
  }
  func.func @transform_22(%arg0: i32, %arg1: memref<2xi32, #tpu.memory_space<smem>>) -> (i32, i32, i32) {
    %c0_i32 = arith.constant 0 : i32
    %c0_i32_0 = arith.constant 0 : i32
    %c0_i32_1 = arith.constant 0 : i32
    return %arg0, %c0_i32, %c0_i32_0 : i32, i32, i32
  }
}

</mosaic_0001>

<llo_original>
// kernel: tts_latent_gpt_forward.1
$region0: #{tts_latent_gpt_forward.1}
  #allocation0 [shape = 'u32[]', space=smem, size = 0x4, offset = 0x4, fixed_abs, tag = 'smem constant byte address 0x4 - core index']
  #allocation1 [shape = 'u32[144,128]{1,0:T(1,128)}', space=vmem, size = 0x12000, scoped, tag = 'internal scratch']
  #allocation2 [shape = 'f32[16,128]{1,0:T(8,128)}', space=vmem, size = 0x2000, scoped, tag = 'scratch operand']
  #allocation3 [shape = 's32[1]{0}', space=sflag, size = 0x4, scoped, tag = 'scoped memory for tts_latent_gpt_forward.1']
  #allocation4 [shape = 'u8[512]{0}', space=smem, size = 0x200, scoped, tag = 'prefetched SMEM operand 0']
  #allocation5 [shape = 'f32[1,1]{1,0:T(1,128)S(1)}', space=vmem, size = 0x200, scoped, tag = 'scoped memory for tts_latent_gpt_forward.1']
  %s0 = inlined_call_operand.hbm [shape: s32[2], index: 0, kind: input, shape index: {}]
  %s1 = inlined_call_operand.vmem [shape: f32[2,16,128], index: 1, kind: input, shape index: {}]
  %s2 = inlined_call_operand.vmem [shape: f32[2,16,128], index: 2, kind: input, shape index: {}]
  %s3 = inlined_call_operand.hbm [shape: bf16[128,128], index: 3, kind: input, shape index: {}]
  %s4 = inlined_call_operand.hbm [shape: f32[2,1,128], index: 4, kind: input, shape index: {}]
  %s5 = inlined_call_operand.hbm [shape: f32[2,1,128], index: 5, kind: input, shape index: {}]
  %s6 = inlined_call_operand.hbm [shape: bf16[2,128,384], index: 6, kind: input, shape index: {}]
  %s7 = inlined_call_operand.hbm [shape: f32[2,1,384], index: 7, kind: input, shape index: {}]
  %s8 = inlined_call_operand.hbm [shape: bf16[2,128,128], index: 8, kind: input, shape index: {}]
  %s9 = inlined_call_operand.hbm [shape: f32[2,1,128], index: 9, kind: input, shape index: {}]
  %s10 = inlined_call_operand.hbm [shape: f32[2,1,128], index: 10, kind: input, shape index: {}]
  %s11 = inlined_call_operand.hbm [shape: f32[2,1,128], index: 11, kind: input, shape index: {}]
  %s12 = inlined_call_operand.hbm [shape: bf16[2,128,512], index: 12, kind: input, shape index: {}]
  %s13 = inlined_call_operand.hbm [shape: f32[2,1,512], index: 13, kind: input, shape index: {}]
  %s14 = inlined_call_operand.hbm [shape: bf16[2,512,128], index: 14, kind: input, shape index: {}]
  %s15 = inlined_call_operand.hbm [shape: f32[2,1,128], index: 15, kind: input, shape index: {}]
  %s16 = inlined_call_operand.hbm [shape: f32[1,128], index: 16, kind: input, shape index: {}]
  %s17 = inlined_call_operand.hbm [shape: f32[1,128], index: 17, kind: input, shape index: {}]
  %s18 = inlined_call_operand.hbm [shape: bf16[128,128], index: 18, kind: input, shape index: {}]
  %s19 = inlined_call_operand.hbm [shape: f32[1,128], index: 19, kind: input, shape index: {}]
  %s20 = inlined_call_operand.hbm [shape: f32[1,128], index: 20, kind: input, shape index: {}]
  %s21 = inlined_call_operand.<no memory space> [shape: f32[1,1], index: 21, kind: input, shape index: {}]
  %s22 = inlined_call_operand.hbm [shape: f32[2,8,128], index: 22, kind: output, shape index: {0}]
  %s23 = inlined_call_operand.vmem [shape: f32[2,8,1], index: 23, kind: output, shape index: {1}]
  %24 = xla_tuple %s22, %s23
  %s25 = sld [smem:[#allocation0]]
  $region197: #{tts_latent_gpt_forward.1} parent=0
    _
  %s27 = ssub.s32 1, %s25
  %s28 = scalar_select 0, %s27, %s25
  %30 = dma.hbm_to_smem %s0, 16, [#allocation4], [#allocation3]
  %v31 = vstv %s21
  %32 = vst [vmem:[#allocation5] sm:$0x1] %v31
  %33 = dma.done [#allocation3], 16
  %34 = sfence
  $region1: #{tts_latent_gpt_forward.1} parent=0
    #allocation6 [shape = 'u8[32768]{0}', space=vmem, size = 0x8000, scoped, tag = 'input window, operand 3, single buffered']
    #allocation7 [shape = 's32[2]{0}', space=sflag, size = 0x8, scoped, tag = 'scoped memory for tts_latent_gpt_forward.1']
    #allocation8 [shape = 's32[2]{0}', space=sflag, size = 0x8, scoped, tag = 'scoped memory for tts_latent_gpt_forward.1']
    #allocation9 [shape = 'u8[1024]{0}', space=vmem, size = 0x400, scoped, tag = 'input window, operand 4, single buffered']
    #allocation10 [shape = 's32[1]{0}', space=sflag, size = 0x4, scoped, tag = 'scoped memory for tts_latent_gpt_forward.1']
    #allocation11 [shape = 'u8[1024]{0}', space=vmem, size = 0x400, scoped, tag = 'input window, operand 5, single buffered']
    #allocation12 [shape = 'u8[196608]{0}', space=vmem, size = 0x30000, scoped, tag = 'input window, operand 6, single buffered']
    #allocation13 [shape = 's32[1]{0}', space=sflag, size = 0x4, scoped, tag = 'scoped memory for tts_latent_gpt_forward.1']
    #allocation14 [shape = 'u8[3072]{0}', space=vmem, size = 0xc00, scoped, tag = 'input window, operand 7, single buffered']
    #allocation15 [shape = 'u8[65536]{0}', space=vmem, size = 0x10000, scoped, tag = 'input window, operand 8, single buffered']
    #allocation16 [shape = 's32[1]{0}', space=sflag, size = 0x4, scoped, tag = 'scoped memory for tts_latent_gpt_forward.1']
    #allocation17 [shape = 'u8[1024]{0}', space=vmem, size = 0x400, scoped, tag = 'input window, operand 9, single buffered']
    #allocation18 [shape = 'u8[1024]{0}', space=vmem, size = 0x400, scoped, tag = 'input window, operand 10, single buffered']
    #allocation19 [shape = 's32[1]{0}', space=sflag, size = 0x4, scoped, tag = 'scoped memory for tts_latent_gpt_forward.1']
    #allocation20 [shape = 'u8[1024]{0}', space=vmem, size = 0x400, scoped, tag = 'input window, operand 11, single buffered']
    #allocation21 [shape = 'u8[262144]{0}', space=vmem, size = 0x40000, scoped, tag = 'input window, operand 12, single buffered']
    #allocation22 [shape = 's32[1]{0}', space=sflag, size = 0x4, scoped, tag = 'scoped memory for tts_latent_gpt_forward.1']
    #allocation23 [shape = 'u8[4096]{0}', space=vmem, size = 0x1000, scoped, tag = 'input window, operand 13, single buffered']
    #allocation24 [shape = 'u8[262144]{0}', space=vmem, size = 0x40000, scoped, tag = 'input window, operand 14, single buffered']
    #allocation25 [shape = 's32[1]{0}', space=sflag, size = 0x4, scoped, tag = 'scoped memory for tts_latent_gpt_forward.1']
    #allocation26 [shape = 'u8[1024]{0}', space=vmem, size = 0x400, scoped, tag = 'input window, operand 15, single buffered']
    #allocation27 [shape = 'u8[512]{0}', space=vmem, size = 0x400, scoped, tag = 'input window, operand 16, single buffered']
    #allocation28 [shape = 's32[1]{0}', space=sflag, size = 0x4, scoped, tag = 'scoped memory for tts_latent_gpt_forward.1']
    #allocation29 [shape = 'u8[512]{0}', space=vmem, size = 0x400, scoped, tag = 'input window, operand 17, single buffered']
    #allocation30 [shape = 'u8[32768]{0}', space=vmem, size = 0x8000, scoped, tag = 'input window, operand 18, single buffered']
    #allocation31 [shape = 's32[1]{0}', space=sflag, size = 0x4, scoped, tag = 'scoped memory for tts_latent_gpt_forward.1']
    #allocation32 [shape = 'u8[512]{0}', space=vmem, size = 0x400, scoped, tag = 'input window, operand 19, single buffered']
    #allocation33 [shape = 'u8[512]{0}', space=vmem, size = 0x400, scoped, tag = 'input window, operand 20, single buffered']
    #allocation34 [shape = 's32[1]{0}', space=sflag, size = 0x4, scoped, tag = 'scoped memory for tts_latent_gpt_forward.1']
    #allocation35 [shape = 'u8[8192]{0}', space=vmem, size = 0x2000, scoped, tag = 'output window, operand 0']
    %35 = vsyncpa [#allocation7], 0
    %36 = vsyncpa [#allocation10], 0
    %37 = vsyncpa [#allocation13], 0
    %38 = vsyncpa [#allocation16], 0
    %39 = vsyncpa [#allocation19], 0
    %40 = vsyncpa [#allocation22], 0
    %41 = vsyncpa [#allocation25], 0
    %42 = vsyncpa [#allocation28], 0
    %43 = vsyncpa [#allocation31], 0
    %44 = vsyncpa [#allocation34], 0
    %45 = vsyncpa [#allocation8], 0
    %s46 = scalar_lea.sflag [#allocation8], 1
    %47 = vsyncpa %s46, 0
    loop: start=0, step=1, limit=4
    $region2: #{tts_latent_gpt_forward.1} parent=1 // loop_pre_header
      _
    $region3: #{tts_latent_gpt_forward.1} parent=1 // loop_header
      %s49 = sphi 0, %s53
      %p50 = scmp.ge.s32.totalorder %s49, 4
      %s59 = sphi 0, %s61
      %s62 = sphi 0, %s59
      %s63 = sphi 0, %s62
      %s79 = sphi 0, %s63
      %s85 = sphi 0, %s87
      %s88 = sphi 0, %s85
      %s89 = sphi 0, %s88
      %s105 = sphi 0, %s89
      %s109 = sphi 0, %s109
      %s111 = sphi 0, %s109
      %s112 = sphi 0, %s111
      %s126 = sphi 0, %s112
      %s130 = sphi 0, %s130
      %s132 = sphi 0, %s130
      %s133 = sphi 0, %s132
      %s147 = sphi 0, %s133
      %s151 = sphi 0, %s151
      %s153 = sphi 0, %s151
      %s154 = sphi 0, %s153
      %s168 = sphi 0, %s154
      %s172 = sphi 0, %s172
      %s174 = sphi 0, %s172
      %s175 = sphi 0, %s174
      %s189 = sphi 0, %s175
      %s193 = sphi 0, %s193
      %s195 = sphi 0, %s193
      %s196 = sphi 0, %s195
      %s210 = sphi 0, %s196
      %s214 = sphi 0, %s214
      %s216 = sphi 0, %s214
      %s217 = sphi 0, %s216
      %s231 = sphi 0, %s217
      %s235 = sphi 0, %s235
      %s237 = sphi 0, %s235
      %s238 = sphi 0, %s237
      %s252 = sphi 0, %s238
      %s256 = sphi 0, %s256
      %s258 = sphi 0, %s256
      %s259 = sphi 0, %s258
      %s273 = sphi 0, %s259
      %s277 = sphi 0, %s277
      %s279 = sphi 0, %s277
      %s280 = sphi 0, %s279
      %s294 = sphi 0, %s280
      %s298 = sphi 0, %s298
      %s300 = sphi 0, %s298
      %s301 = sphi 0, %s300
      %s315 = sphi 0, %s301
      %s319 = sphi 0, %s319
      %s321 = sphi 0, %s319
      %s322 = sphi 0, %s321
      %s336 = sphi 0, %s322
      %s340 = sphi 0, %s340
      %s342 = sphi 0, %s340
      %s343 = sphi 0, %s342
      %s357 = sphi 0, %s343
      %s361 = sphi 0, %s361
      %s363 = sphi 0, %s361
      %s364 = sphi 0, %s363
      %s378 = sphi 0, %s364
      %s382 = sphi 0, %s382
      %s384 = sphi 0, %s382
      %s385 = sphi 0, %s384
      %s399 = sphi 0, %s385
      %s403 = sphi 0, %s403
      %s405 = sphi 0, %s403
      %s406 = sphi 0, %s405
      %s420 = sphi 0, %s406
      %s424 = sphi 0, %s424
      %s426 = sphi 0, %s424
      %s427 = sphi 0, %s426
      %s441 = sphi 0, %s427
      %s445 = sphi 0, %s445
      %s447 = sphi 0, %s445
      %s448 = sphi 0, %s447
      %s462 = sphi 0, %s448
      %s466 = sphi 0, %s466
      %s468 = sphi 0, %s466
      %s469 = sphi 0, %s468
      %s483 = sphi 0, %s469
      %s487 = sphi 0, %s487
      %s489 = sphi 0, %s487
      %s490 = sphi 0, %s489
      %s504 = sphi 0, %s490
      %s510 = sphi 0, %s512
      %s513 = sphi 0, %s510
      %s514 = sphi 0, %s513
      %s530 = sphi 0, %s514
      %s536 = sphi 0, %s538
      %s539 = sphi 0, %s536
      %s540 = sphi 0, %s539
      %s556 = sphi 0, %s540
    $region4: #{tts_latent_gpt_forward.1} parent=1 // loop_header_branch
      %52 = sbr.rel (%p50) target = $region8
    $region5: #{tts_latent_gpt_forward.1} parent=1 // loop_body
      %s54 = ssub.s32 %s49, 1
      %s55 = ssub.s32 %s49, 2
      %s56 = sadd.s32 %s49, 1
      %s57 = ssub.s32 %s49, %s56
      %p58 = scmp.eq.s32.totalorder %s57, 0
      %s60 = sadd.s32 %s59, 1
      %s61 = scalar_select %p58, %s59, %s60
      %p64 = pneg %p58
      %p65 = scmp.eq.s32.totalorder %s49, 1
      %p66 = por %p64, %p65
      %p67 = scmp.ne.s32.totalorder %s59, %s62
      %p68 = scmp.eq.s32.totalorder %s49, 0
      %p69 = por %p67, %p68
      %p70 = scmp.ne.s32.totalorder %s59, %s62
      %p71 = scmp.eq.s32.totalorder %s54, 1
      %p72 = por %p70, %p71
      %p73 = scmp.ne.s32.totalorder %s62, %s63
      %p74 = scmp.eq.s32.totalorder %s54, 0
      %p75 = por %p73, %p74
      %p76 = scmp.ne.s32.totalorder %s62, %s63
      %p77 = scmp.eq.s32.totalorder %s55, 1
      %p78 = por %p76, %p77
      %p80 = scmp.ne.s32.totalorder %s63, %s79
      %p81 = scmp.eq.s32.totalorder %s55, 0
      %p82 = por %p80, %p81
      %s83 = ssub.s32 %s49, %s56
      %p84 = scmp.eq.s32.totalorder %s83, 0
      %s86 = sadd.s32 %s85, 1
      %s87 = scalar_select %p84, %s85, %s86
      %p90 = pneg %p84
      %p91 = scmp.eq.s32.totalorder %s49, 1
      %p92 = por %p90, %p91
      %p93 = scmp.ne.s32.totalorder %s85, %s88
      %p94 = scmp.eq.s32.totalorder %s49, 0
      %p95 = por %p93, %p94
      %p96 = scmp.ne.s32.totalorder %s85, %s88
      %p97 = scmp.eq.s32.totalorder %s54, 1
      %p98 = por %p96, %p97
      %p99 = scmp.ne.s32.totalorder %s88, %s89
      %p100 = scmp.eq.s32.totalorder %s54, 0
      %p101 = por %p99, %p100
      %p102 = scmp.ne.s32.totalorder %s88, %s89
      %p103 = scmp.eq.s32.totalorder %s55, 1
      %p104 = por %p102, %p103
      %p106 = scmp.ne.s32.totalorder %s89, %s105
      %p107 = scmp.eq.s32.totalorder %s55, 0
      %p108 = por %p106, %p107
      %s110 = sadd.s32 %s109, 1
      %p113 = scmp.eq.s32.totalorder %s49, 1
      %p114 = scmp.ne.s32.totalorder %s109, %s111
      %p115 = scmp.eq.s32.totalorder %s49, 0
      %p116 = por %p114, %p115
      %p117 = scmp.ne.s32.totalorder %s109, %s111
      %p118 = scmp.eq.s32.totalorder %s54, 1
      %p119 = por %p117, %p118
      %p120 = scmp.ne.s32.totalorder %s111, %s112
      %p121 = scmp.eq.s32.totalorder %s54, 0
      %p122 = por %p120, %p121
      %p123 = scmp.ne.s32.totalorder %s111, %s112
      %p124 = scmp.eq.s32.totalorder %s55, 1
      %p125 = por %p123, %p124
      %p127 = scmp.ne.s32.totalorder %s112, %s126
      %p128 = scmp.eq.s32.totalorder %s55, 0
      %p129 = por %p127, %p128
      %s131 = sadd.s32 %s130, 1
      %p134 = scmp.eq.s32.totalorder %s49, 1
      %p135 = scmp.ne.s32.totalorder %s130, %s132
      %p136 = scmp.eq.s32.totalorder %s49, 0
      %p137 = por %p135, %p136
      %p138 = scmp.ne.s32.totalorder %s130, %s132
      %p139 = scmp.eq.s32.totalorder %s54, 1
      %p140 = por %p138, %p139
      %p141 = scmp.ne.s32.totalorder %s132, %s133
      %p142 = scmp.eq.s32.totalorder %s54, 0
      %p143 = por %p141, %p142
      %p144 = scmp.ne.s32.totalorder %s132, %s133
      %p145 = scmp.eq.s32.totalorder %s55, 1
      %p146 = por %p144, %p145
      %p148 = scmp.ne.s32.totalorder %s133, %s147
      %p149 = scmp.eq.s32.totalorder %s55, 0
      %p150 = por %p148, %p149
      %s152 = sadd.s32 %s151, 1
      %p155 = scmp.eq.s32.totalorder %s49, 1
      %p156 = scmp.ne.s32.totalorder %s151, %s153
      %p157 = scmp.eq.s32.totalorder %s49, 0
      %p158 = por %p156, %p157
      %p159 = scmp.ne.s32.totalorder %s151, %s153
      %p160 = scmp.eq.s32.totalorder %s54, 1
      %p161 = por %p159, %p160
      %p162 = scmp.ne.s32.totalorder %s153, %s154
      %p163 = scmp.eq.s32.totalorder %s54, 0
      %p164 = por %p162, %p163
      %p165 = scmp.ne.s32.totalorder %s153, %s154
      %p166 = scmp.eq.s32.totalorder %s55, 1
      %p167 = por %p165, %p166
      %p169 = scmp.ne.s32.totalorder %s154, %s168
      %p170 = scmp.eq.s32.totalorder %s55, 0
      %p171 = por %p169, %p170
      %s173 = sadd.s32 %s172, 1
      %p176 = scmp.eq.s32.totalorder %s49, 1
      %p177 = scmp.ne.s32.totalorder %s172, %s174
      %p178 = scmp.eq.s32.totalorder %s49, 0
      %p179 = por %p177, %p178
      %p180 = scmp.ne.s32.totalorder %s172, %s174
      %p181 = scmp.eq.s32.totalorder %s54, 1
      %p182 = por %p180, %p181
      %p183 = scmp.ne.s32.totalorder %s174, %s175
      %p184 = scmp.eq.s32.totalorder %s54, 0
      %p185 = por %p183, %p184
      %p186 = scmp.ne.s32.totalorder %s174, %s175
      %p187 = scmp.eq.s32.totalorder %s55, 1
      %p188 = por %p186, %p187
      %p190 = scmp.ne.s32.totalorder %s175, %s189
      %p191 = scmp.eq.s32.totalorder %s55, 0
      %p192 = por %p190, %p191
      %s194 = sadd.s32 %s193, 1
      %p197 = scmp.eq.s32.totalorder %s49, 1
      %p198 = scmp.ne.s32.totalorder %s193, %s195
      %p199 = scmp.eq.s32.totalorder %s49, 0
      %p200 = por %p198, %p199
      %p201 = scmp.ne.s32.totalorder %s193, %s195
      %p202 = scmp.eq.s32.totalorder %s54, 1
      %p203 = por %p201, %p202
      %p204 = scmp.ne.s32.totalorder %s195, %s196
      %p205 = scmp.eq.s32.totalorder %s54, 0
      %p206 = por %p204, %p205
      %p207 = scmp.ne.s32.totalorder %s195, %s196
      %p208 = scmp.eq.s32.totalorder %s55, 1
      %p209 = por %p207, %p208
      %p211 = scmp.ne.s32.totalorder %s196, %s210
      %p212 = scmp.eq.s32.totalorder %s55, 0
      %p213 = por %p211, %p212
      %s215 = sadd.s32 %s214, 1
      %p218 = scmp.eq.s32.totalorder %s49, 1
      %p219 = scmp.ne.s32.totalorder %s214, %s216
      %p220 = scmp.eq.s32.totalorder %s49, 0
      %p221 = por %p219, %p220
      %p222 = scmp.ne.s32.totalorder %s214, %s216
      %p223 = scmp.eq.s32.totalorder %s54, 1
      %p224 = por %p222, %p223
      %p225 = scmp.ne.s32.totalorder %s216, %s217
      %p226 = scmp.eq.s32.totalorder %s54, 0
      %p227 = por %p225, %p226
      %p228 = scmp.ne.s32.totalorder %s216, %s217
      %p229 = scmp.eq.s32.totalorder %s55, 1
      %p230 = por %p228, %p229
      %p232 = scmp.ne.s32.totalorder %s217, %s231
      %p233 = scmp.eq.s32.totalorder %s55, 0
      %p234 = por %p232, %p233
      %s236 = sadd.s32 %s235, 1
      %p239 = scmp.eq.s32.totalorder %s49, 1
      %p240 = scmp.ne.s32.totalorder %s235, %s237
      %p241 = scmp.eq.s32.totalorder %s49, 0
      %p242 = por %p240, %p241
      %p243 = scmp.ne.s32.totalorder %s235, %s237
      %p244 = scmp.eq.s32.totalorder %s54, 1
      %p245 = por %p243, %p244
      %p246 = scmp.ne.s32.totalorder %s237, %s238
      %p247 = scmp.eq.s32.totalorder %s54, 0
      %p248 = por %p246, %p247
      %p249 = scmp.ne.s32.totalorder %s237, %s238
      %p250 = scmp.eq.s32.totalorder %s55, 1
      %p251 = por %p249, %p250
      %p253 = scmp.ne.s32.totalorder %s238, %s252
      %p254 = scmp.eq.s32.totalorder %s55, 0
      %p255 = por %p253, %p254
      %s257 = sadd.s32 %s256, 1
      %p260 = scmp.eq.s32.totalorder %s49, 1
      %p261 = scmp.ne.s32.totalorder %s256, %s258
      %p262 = scmp.eq.s32.totalorder %s49, 0
      %p263 = por %p261, %p262
      %p264 = scmp.ne.s32.totalorder %s256, %s258
      %p265 = scmp.eq.s32.totalorder %s54, 1
      %p266 = por %p264, %p265
      %p267 = scmp.ne.s32.totalorder %s258, %s259
      %p268 = scmp.eq.s32.totalorder %s54, 0
      %p269 = por %p267, %p268
      %p270 = scmp.ne.s32.totalorder %s258, %s259
      %p271 = scmp.eq.s32.totalorder %s55, 1
      %p272 = por %p270, %p271
      %p274 = scmp.ne.s32.totalorder %s259, %s273
      %p275 = scmp.eq.s32.totalorder %s55, 0
      %p276 = por %p274, %p275
      %s278 = sadd.s32 %s277, 1
      %p281 = scmp.eq.s32.totalorder %s49, 1
      %p282 = scmp.ne.s32.totalorder %s277, %s279
      %p283 = scmp.eq.s32.totalorder %s49, 0
      %p284 = por %p282, %p283
      %p285 = scmp.ne.s32.totalorder %s277, %s279
      %p286 = scmp.eq.s32.totalorder %s54, 1
      %p287 = por %p285, %p286
      %p288 = scmp.ne.s32.totalorder %s279, %s280
      %p289 = scmp.eq.s32.totalorder %s54, 0
      %p290 = por %p288, %p289
      %p291 = scmp.ne.s32.totalorder %s279, %s280
      %p292 = scmp.eq.s32.totalorder %s55, 1
      %p293 = por %p291, %p292
      %p295 = scmp.ne.s32.totalorder %s280, %s294
      %p296 = scmp.eq.s32.totalorder %s55, 0
      %p297 = por %p295, %p296
      %s299 = sadd.s32 %s298, 1
      %p302 = scmp.eq.s32.totalorder %s49, 1
      %p303 = scmp.ne.s32.totalorder %s298, %s300
      %p304 = scmp.eq.s32.totalorder %s49, 0
      %p305 = por %p303, %p304
      %p306 = scmp.ne.s32.totalorder %s298, %s300
      %p307 = scmp.eq.s32.totalorder %s54, 1
      %p308 = por %p306, %p307
      %p309 = scmp.ne.s32.totalorder %s300, %s301
      %p310 = scmp.eq.s32.totalorder %s54, 0
      %p311 = por %p309, %p310
      %p312 = scmp.ne.s32.totalorder %s300, %s301
      %p313 = scmp.eq.s32.totalorder %s55, 1
      %p314 = por %p312, %p313
      %p316 = scmp.ne.s32.totalorder %s301, %s315
      %p317 = scmp.eq.s32.totalorder %s55, 0
      %p318 = por %p316, %p317
      %s320 = sadd.s32 %s319, 1
      %p323 = scmp.eq.s32.totalorder %s49, 1
      %p324 = scmp.ne.s32.totalorder %s319, %s321
      %p325 = scmp.eq.s32.totalorder %s49, 0
      %p326 = por %p324, %p325
      %p327 = scmp.ne.s32.totalorder %s319, %s321
      %p328 = scmp.eq.s32.totalorder %s54, 1
      %p329 = por %p327, %p328
      %p330 = scmp.ne.s32.totalorder %s321, %s322
      %p331 = scmp.eq.s32.totalorder %s54, 0
      %p332 = por %p330, %p331
      %p333 = scmp.ne.s32.totalorder %s321, %s322
      %p334 = scmp.eq.s32.totalorder %s55, 1
      %p335 = por %p333, %p334
      %p337 = scmp.ne.s32.totalorder %s322, %s336
      %p338 = scmp.eq.s32.totalorder %s55, 0
      %p339 = por %p337, %p338
      %s341 = sadd.s32 %s340, 1
      %p344 = scmp.eq.s32.totalorder %s49, 1
      %p345 = scmp.ne.s32.totalorder %s340, %s342
      %p346 = scmp.eq.s32.totalorder %s49, 0
      %p347 = por %p345, %p346
      %p348 = scmp.ne.s32.totalorder %s340, %s342
      %p349 = scmp.eq.s32.totalorder %s54, 1
      %p350 = por %p348, %p349
      %p351 = scmp.ne.s32.totalorder %s342, %s343
      %p352 = scmp.eq.s32.totalorder %s54, 0
      %p353 = por %p351, %p352
      %p354 = scmp.ne.s32.totalorder %s342, %s343
      %p355 = scmp.eq.s32.totalorder %s55, 1
      %p356 = por %p354, %p355
      %p358 = scmp.ne.s32.totalorder %s343, %s357
      %p359 = scmp.eq.s32.totalorder %s55, 0
      %p360 = por %p358, %p359
      %s362 = sadd.s32 %s361, 1
      %p365 = scmp.eq.s32.totalorder %s49, 1
      %p366 = scmp.ne.s32.totalorder %s361, %s363
      %p367 = scmp.eq.s32.totalorder %s49, 0
      %p368 = por %p366, %p367
      %p369 = scmp.ne.s32.totalorder %s361, %s363
      %p370 = scmp.eq.s32.totalorder %s54, 1
      %p371 = por %p369, %p370
      %p372 = scmp.ne.s32.totalorder %s363, %s364
      %p373 = scmp.eq.s32.totalorder %s54, 0
      %p374 = por %p372, %p373
      %p375 = scmp.ne.s32.totalorder %s363, %s364
      %p376 = scmp.eq.s32.totalorder %s55, 1
      %p377 = por %p375, %p376
      %p379 = scmp.ne.s32.totalorder %s364, %s378
      %p380 = scmp.eq.s32.totalorder %s55, 0
      %p381 = por %p379, %p380
      %s383 = sadd.s32 %s382, 1
      %p386 = scmp.eq.s32.totalorder %s49, 1
      %p387 = scmp.ne.s32.totalorder %s382, %s384
      %p388 = scmp.eq.s32.totalorder %s49, 0
      %p389 = por %p387, %p388
      %p390 = scmp.ne.s32.totalorder %s382, %s384
      %p391 = scmp.eq.s32.totalorder %s54, 1
      %p392 = por %p390, %p391
      %p393 = scmp.ne.s32.totalorder %s384, %s385
      %p394 = scmp.eq.s32.totalorder %s54, 0
      %p395 = por %p393, %p394
      %p396 = scmp.ne.s32.totalorder %s384, %s385
      %p397 = scmp.eq.s32.totalorder %s55, 1
      %p398 = por %p396, %p397
      %p400 = scmp.ne.s32.totalorder %s385, %s399
      %p401 = scmp.eq.s32.totalorder %s55, 0
      %p402 = por %p400, %p401
      %s404 = sadd.s32 %s403, 1
      %p407 = scmp.eq.s32.totalorder %s49, 1
      %p408 = scmp.ne.s32.totalorder %s403, %s405
      %p409 = scmp.eq.s32.totalorder %s49, 0
      %p410 = por %p408, %p409
      %p411 = scmp.ne.s32.totalorder %s403, %s405
      %p412 = scmp.eq.s32.totalorder %s54, 1
      %p413 = por %p411, %p412
      %p414 = scmp.ne.s32.totalorder %s405, %s406
      %p415 = scmp.eq.s32.totalorder %s54, 0
      %p416 = por %p414, %p415
      %p417 = scmp.ne.s32.totalorder %s405, %s406
      %p418 = scmp.eq.s32.totalorder %s55, 1
      %p419 = por %p417, %p418
      %p421 = scmp.ne.s32.totalorder %s406, %s420
      %p422 = scmp.eq.s32.totalorder %s55, 0
      %p423 = por %p421, %p422
      %s425 = sadd.s32 %s424, 1
      %p428 = scmp.eq.s32.totalorder %s49, 1
      %p429 = scmp.ne.s32.totalorder %s424, %s426
      %p430 = scmp.eq.s32.totalorder %s49, 0
      %p431 = por %p429, %p430
      %p432 = scmp.ne.s32.totalorder %s424, %s426
      %p433 = scmp.eq.s32.totalorder %s54, 1
      %p434 = por %p432, %p433
      %p435 = scmp.ne.s32.totalorder %s426, %s427
      %p436 = scmp.eq.s32.totalorder %s54, 0
      %p437 = por %p435, %p436
      %p438 = scmp.ne.s32.totalorder %s426, %s427
      %p439 = scmp.eq.s32.totalorder %s55, 1
      %p440 = por %p438, %p439
      %p442 = scmp.ne.s32.totalorder %s427, %s441
      %p443 = scmp.eq.s32.totalorder %s55, 0
      %p444 = por %p442, %p443
      %s446 = sadd.s32 %s445, 1
      %p449 = scmp.eq.s32.totalorder %s49, 1
      %p450 = scmp.ne.s32.totalorder %s445, %s447
      %p451 = scmp.eq.s32.totalorder %s49, 0
      %p452 = por %p450, %p451
      %p453 = scmp.ne.s32.totalorder %s445, %s447
      %p454 = scmp.eq.s32.totalorder %s54, 1
      %p455 = por %p453, %p454
      %p456 = scmp.ne.s32.totalorder %s447, %s448
      %p457 = scmp.eq.s32.totalorder %s54, 0
      %p458 = por %p456, %p457
      %p459 = scmp.ne.s32.totalorder %s447, %s448
      %p460 = scmp.eq.s32.totalorder %s55, 1
      %p461 = por %p459, %p460
      %p463 = scmp.ne.s32.totalorder %s448, %s462
      %p464 = scmp.eq.s32.totalorder %s55, 0
      %p465 = por %p463, %p464
      %s467 = sadd.s32 %s466, 1
      %p470 = scmp.eq.s32.totalorder %s49, 1
      %p471 = scmp.ne.s32.totalorder %s466, %s468
      %p472 = scmp.eq.s32.totalorder %s49, 0
      %p473 = por %p471, %p472
      %p474 = scmp.ne.s32.totalorder %s466, %s468
      %p475 = scmp.eq.s32.totalorder %s54, 1
      %p476 = por %p474, %p475
      %p477 = scmp.ne.s32.totalorder %s468, %s469
      %p478 = scmp.eq.s32.totalorder %s54, 0
      %p479 = por %p477, %p478
      %p480 = scmp.ne.s32.totalorder %s468, %s469
      %p481 = scmp.eq.s32.totalorder %s55, 1
      %p482 = por %p480, %p481
      %p484 = scmp.ne.s32.totalorder %s469, %s483
      %p485 = scmp.eq.s32.totalorder %s55, 0
      %p486 = por %p484, %p485
      %s488 = sadd.s32 %s487, 1
      %p491 = scmp.eq.s32.totalorder %s49, 1
      %p492 = scmp.ne.s32.totalorder %s487, %s489
      %p493 = scmp.eq.s32.totalorder %s49, 0
      %p494 = por %p492, %p493
      %p495 = scmp.ne.s32.totalorder %s487, %s489
      %p496 = scmp.eq.s32.totalorder %s54, 1
      %p497 = por %p495, %p496
      %p498 = scmp.ne.s32.totalorder %s489, %s490
      %p499 = scmp.eq.s32.totalorder %s54, 0
      %p500 = por %p498, %p499
      %p501 = scmp.ne.s32.totalorder %s489, %s490
      %p502 = scmp.eq.s32.totalorder %s55, 1
      %p503 = por %p501, %p502
      %p505 = scmp.ne.s32.totalorder %s490, %s504
      %p506 = scmp.eq.s32.totalorder %s55, 0
      %p507 = por %p505, %p506
      %s508 = ssub.s32 %s49, %s56
      %p509 = scmp.eq.s32.totalorder %s508, 0
      %s511 = sadd.s32 %s510, 1
      %s512 = scalar_select %p509, %s510, %s511
      %p515 = pneg %p509
      %p516 = scmp.eq.s32.totalorder %s49, 1
      %p517 = por %p515, %p516
      %p518 = scmp.ne.s32.totalorder %s510, %s513
      %p519 = scmp.eq.s32.totalorder %s49, 0
      %p520 = por %p518, %p519
      %p521 = scmp.ne.s32.totalorder %s510, %s513
      %p522 = scmp.eq.s32.totalorder %s54, 1
      %p523 = por %p521, %p522
      %p524 = scmp.ne.s32.totalorder %s513, %s514
      %p525 = scmp.eq.s32.totalorder %s54, 0
      %p526 = por %p524, %p525
      %p527 = scmp.ne.s32.totalorder %s513, %s514
      %p528 = scmp.eq.s32.totalorder %s55, 1
      %p529 = por %p527, %p528
      %p531 = scmp.ne.s32.totalorder %s514, %s530
      %p532 = scmp.eq.s32.totalorder %s55, 0
      %p533 = por %p531, %p532
      %s534 = ssub.s32 %s49, %s56
      %p535 = scmp.eq.s32.totalorder %s534, 0
      %s537 = sadd.s32 %s536, 1
      %s538 = scalar_select %p535, %s536, %s537
      %p541 = pneg %p535
      %p542 = scmp.eq.s32.totalorder %s49, 1
      %p543 = por %p541, %p542
      %p544 = scmp.ne.s32.totalorder %s536, %s539
      %p545 = scmp.eq.s32.totalorder %s49, 0
      %p546 = por %p544, %p545
      %p547 = scmp.ne.s32.totalorder %s536, %s539
      %p548 = scmp.eq.s32.totalorder %s54, 1
      %p549 = por %p547, %p548
      %p550 = scmp.ne.s32.totalorder %s539, %s540
      %p551 = scmp.eq.s32.totalorder %s54, 0
      %p552 = por %p550, %p551
      %p553 = scmp.ne.s32.totalorder %s539, %s540
      %p554 = scmp.eq.s32.totalorder %s55, 1
      %p555 = por %p553, %p554
      %p557 = scmp.ne.s32.totalorder %s540, %s556
      %p558 = scmp.eq.s32.totalorder %s55, 0
      %p559 = por %p557, %p558
      %p560 = scmp.le.s32.totalorder 1, %s49
      %p561 = scmp.lt.s32.totalorder %s49, 3
      %p562 = pnand %p560, %p561
      %p563 = pneg %p562
      // Predicated region
      $region9: #{tts_latent_gpt_forward.1} parent=5 // pred_check
        _
      $region10: #{tts_latent_gpt_forward.1} parent=5 // pred_check_branch
        %565 = sbr.rel (%p562) target = $region12
      $region11: #{tts_latent_gpt_forward.1} parent=5 // pred_region
        %s566 = ssub.s32 %s49, 1
        // Predicated region
        $region13: #{tts_latent_gpt_forward.1} parent=11 // pred_check
          %p567 = pneg %p122
        $region14: #{tts_latent_gpt_forward.1} parent=11 // pred_check_branch
          %569 = sbr.rel (%p567) target = $region16
        $region15: #{tts_latent_gpt_forward.1} parent=11 // pred_region
          %s571 = ssub.s32 1024, 1024
          %572 = vsyncadd [#allocation7], %s571
          %s573 = sshll.u32 [#allocation6], 4
          %s574 = int_to_ptr.vmem [resolvable:$true] %s573
          %579 = dma.hbm_to_vmem [thread:$0]  %s3, 1024, %s574, [#allocation7], 64, 64, 4
        $region16: #{tts_latent_gpt_forward.1} parent=11 // pred_fallthru
          _
        // Predicated region
        $region17: #{tts_latent_gpt_forward.1} parent=11 // pred_check
          %p580 = pneg %p143
        $region18: #{tts_latent_gpt_forward.1} parent=11 // pred_check_branch
          %582 = sbr.rel (%p580) target = $region20
        $region19: #{tts_latent_gpt_forward.1} parent=11 // pred_region
          %s584 = ssub.s32 32, 32
          %585 = vsyncadd [#allocation10], %s584
          %s586 = sshll.u32 [#allocation9], 4
          %s587 = int_to_ptr.vmem [resolvable:$true] %s586
          %592 = dma.hbm_to_vmem [thread:$0]  %s4, 32, %s587, [#allocation10], 16, 16, 1
        $region20: #{tts_latent_gpt_forward.1} parent=11 // pred_fallthru
          _
        // Predicated region
        $region21: #{tts_latent_gpt_forward.1} parent=11 // pred_check
          %p593 = pneg %p164
        $region22: #{tts_latent_gpt_forward.1} parent=11 // pred_check_branch
          %595 = sbr.rel (%p593) target = $region24
        $region23: #{tts_latent_gpt_forward.1} parent=11 // pred_region
          %s597 = ssub.s32 32, 32
          %598 = vsyncadd [#allocation10], %s597
          %s599 = sshll.u32 [#allocation11], 4
          %s600 = int_to_ptr.vmem [resolvable:$true] %s599
          %605 = dma.hbm_to_vmem [thread:$0]  %s5, 32, %s600, [#allocation10], 16, 16, 1
        $region24: #{tts_latent_gpt_forward.1} parent=11 // pred_fallthru
          _
        // Predicated region
        $region25: #{tts_latent_gpt_forward.1} parent=11 // pred_check
          %p606 = pneg %p185
        $region26: #{tts_latent_gpt_forward.1} parent=11 // pred_check_branch
          %608 = sbr.rel (%p606) target = $region28
        $region27: #{tts_latent_gpt_forward.1} parent=11 // pred_region
          %s610 = ssub.s32 6144, 6144
          %611 = vsyncadd [#allocation13], %s610
          %s612 = sshll.u32 [#allocation12], 4
          %s613 = int_to_ptr.vmem [resolvable:$true] %s612
          %618 = dma.hbm_to_vmem [thread:$0]  %s6, 6144, %s613, [#allocation13], 192, 192, 12
        $region28: #{tts_latent_gpt_forward.1} parent=11 // pred_fallthru
          _
        // Predicated region
        $region29: #{tts_latent_gpt_forward.1} parent=11 // pred_check
          %p619 = pneg %p206
        $region30: #{tts_latent_gpt_forward.1} parent=11 // pred_check_branch
          %621 = sbr.rel (%p619) target = $region32
        $region31: #{tts_latent_gpt_forward.1} parent=11 // pred_region
          %s623 = ssub.s32 96, 96
          %624 = vsyncadd [#allocation13], %s623
          %s625 = sshll.u32 [#allocation14], 4
          %s626 = int_to_ptr.vmem [resolvable:$true] %s625
          %631 = dma.hbm_to_vmem [thread:$0]  %s7, 96, %s626, [#allocation13], 48, 48, 3
        $region32: #{tts_latent_gpt_forward.1} parent=11 // pred_fallthru
          _
        // Predicated region
        $region33: #{tts_latent_gpt_forward.1} parent=11 // pred_check
          %p632 = pneg %p227
        $region34: #{tts_latent_gpt_forward.1} parent=11 // pred_check_branch
          %634 = sbr.rel (%p632) target = $region36
        $region35: #{tts_latent_gpt_forward.1} parent=11 // pred_region
          %s636 = ssub.s32 2048, 2048
          %637 = vsyncadd [#allocation16], %s636
          %s638 = sshll.u32 [#allocation15], 4
          %s639 = int_to_ptr.vmem [resolvable:$true] %s638
          %644 = dma.hbm_to_vmem [thread:$0]  %s8, 2048, %s639, [#allocation16], 64, 64, 4
        $region36: #{tts_latent_gpt_forward.1} parent=11 // pred_fallthru
          _
        // Predicated region
        $region37: #{tts_latent_gpt_forward.1} parent=11 // pred_check
          %p645 = pneg %p248
        $region38: #{tts_latent_gpt_forward.1} parent=11 // pred_check_branch
          %647 = sbr.rel (%p645) target = $region40
        $region39: #{tts_latent_gpt_forward.1} parent=11 // pred_region
          %s649 = ssub.s32 32, 32
          %650 = vsyncadd [#allocation16], %s649
          %s651 = sshll.u32 [#allocation17], 4
          %s652 = int_to_ptr.vmem [resolvable:$true] %s651
          %657 = dma.hbm_to_vmem [thread:$0]  %s9, 32, %s652, [#allocation16], 16, 16, 1
        $region40: #{tts_latent_gpt_forward.1} parent=11 // pred_fallthru
          _
        // Predicated region
        $region41: #{tts_latent_gpt_forward.1} parent=11 // pred_check
          %p658 = pneg %p269
        $region42: #{tts_latent_gpt_forward.1} parent=11 // pred_check_branch
          %660 = sbr.rel (%p658) target = $region44
        $region43: #{tts_latent_gpt_forward.1} parent=11 // pred_region
          %s662 = ssub.s32 32, 32
          %663 = vsyncadd [#allocation19], %s662
          %s664 = sshll.u32 [#allocation18], 4
          %s665 = int_to_ptr.vmem [resolvable:$true] %s664
          %670 = dma.hbm_to_vmem [thread:$0]  %s10, 32, %s665, [#allocation19], 16, 16, 1
        $region44: #{tts_latent_gpt_forward.1} parent=11 // pred_fallthru
          _
        // Predicated region
        $region45: #{tts_latent_gpt_forward.1} parent=11 // pred_check
          %p671 = pneg %p290
        $region46: #{tts_latent_gpt_forward.1} parent=11 // pred_check_branch
          %673 = sbr.rel (%p671) target = $region48
        $region47: #{tts_latent_gpt_forward.1} parent=11 // pred_region
          %s675 = ssub.s32 32, 32
          %676 = vsyncadd [#allocation19], %s675
          %s677 = sshll.u32 [#allocation20], 4
          %s678 = int_to_ptr.vmem [resolvable:$true] %s677
          %683 = dma.hbm_to_vmem [thread:$0]  %s11, 32, %s678, [#allocation19], 16, 16, 1
        $region48: #{tts_latent_gpt_forward.1} parent=11 // pred_fallthru
          _
        // Predicated region
        $region49: #{tts_latent_gpt_forward.1} parent=11 // pred_check
          %p684 = pneg %p311
        $region50: #{tts_latent_gpt_forward.1} parent=11 // pred_check_branch
          %686 = sbr.rel (%p684) target = $region52
        $region51: #{tts_latent_gpt_forward.1} parent=11 // pred_region
          %s688 = ssub.s32 8192, 8192
          %689 = vsyncadd [#allocation22], %s688
          %s690 = sshll.u32 [#allocation21], 4
          %s691 = int_to_ptr.vmem [resolvable:$true] %s690
          %696 = dma.hbm_to_vmem [thread:$0]  %s12, 8192, %s691, [#allocation22], 256, 256, 16
        $region52: #{tts_latent_gpt_forward.1} parent=11 // pred_fallthru
          _
        // Predicated region
        $region53: #{tts_latent_gpt_forward.1} parent=11 // pred_check
          %p697 = pneg %p332
        $region54: #{tts_latent_gpt_forward.1} parent=11 // pred_check_branch
          %699 = sbr.rel (%p697) target = $region56
        $region55: #{tts_latent_gpt_forward.1} parent=11 // pred_region
          %s701 = ssub.s32 128, 128
          %702 = vsyncadd [#allocation22], %s701
          %s703 = sshll.u32 [#allocation23], 4
          %s704 = int_to_ptr.vmem [resolvable:$true] %s703
          %709 = dma.hbm_to_vmem [thread:$0]  %s13, 128, %s704, [#allocation22], 64, 64, 4
        $region56: #{tts_latent_gpt_forward.1} parent=11 // pred_fallthru
          _
        // Predicated region
        $region57: #{tts_latent_gpt_forward.1} parent=11 // pred_check
          %p710 = pneg %p353
        $region58: #{tts_latent_gpt_forward.1} parent=11 // pred_check_branch
          %712 = sbr.rel (%p710) target = $region60
        $region59: #{tts_latent_gpt_forward.1} parent=11 // pred_region
          %s714 = ssub.s32 8192, 8192
          %715 = vsyncadd [#allocation25], %s714
          %s716 = sshll.u32 [#allocation24], 4
          %s717 = int_to_ptr.vmem [resolvable:$true] %s716
          %722 = dma.hbm_to_vmem [thread:$0]  %s14, 8192, %s717, [#allocation25], 64, 64, 4
        $region60: #{tts_latent_gpt_forward.1} parent=11 // pred_fallthru
          _
        // Predicated region
        $region61: #{tts_latent_gpt_forward.1} parent=11 // pred_check
          %p723 = pneg %p374
        $region62: #{tts_latent_gpt_forward.1} parent=11 // pred_check_branch
          %725 = sbr.rel (%p723) target = $region64
        $region63: #{tts_latent_gpt_forward.1} parent=11 // pred_region
          %s727 = ssub.s32 32, 32
          %728 = vsyncadd [#allocation25], %s727
          %s729 = sshll.u32 [#allocation26], 4
          %s730 = int_to_ptr.vmem [resolvable:$true] %s729
          %735 = dma.hbm_to_vmem [thread:$0]  %s15, 32, %s730, [#allocation25], 16, 16, 1
        $region64: #{tts_latent_gpt_forward.1} parent=11 // pred_fallthru
          _
        // Predicated region
        $region65: #{tts_latent_gpt_forward.1} parent=11 // pred_check
          %p736 = pneg %p395
        $region66: #{tts_latent_gpt_forward.1} parent=11 // pred_check_branch
          %738 = sbr.rel (%p736) target = $region68
        $region67: #{tts_latent_gpt_forward.1} parent=11 // pred_region
          %s740 = ssub.s32 16, 16
          %741 = vsyncadd [#allocation28], %s740
          %s743 = sshll.u32 [#allocation27], 4
          %s744 = int_to_ptr.vmem [resolvable:$true] %s743
          %746 = dma.hbm_to_vmem [thread:$0]  %s16, 16, %s744, [#allocation28]
        $region68: #{tts_latent_gpt_forward.1} parent=11 // pred_fallthru
          _
        // Predicated region
        $region69: #{tts_latent_gpt_forward.1} parent=11 // pred_check
          %p747 = pneg %p416
        $region70: #{tts_latent_gpt_forward.1} parent=11 // pred_check_branch
          %749 = sbr.rel (%p747) target = $region72
        $region71: #{tts_latent_gpt_forward.1} parent=11 // pred_region
          %s751 = ssub.s32 16, 16
          %752 = vsyncadd [#allocation28], %s751
          %s754 = sshll.u32 [#allocation29], 4
          %s755 = int_to_ptr.vmem [resolvable:$true] %s754
          %757 = dma.hbm_to_vmem [thread:$0]  %s17, 16, %s755, [#allocation28]
        $region72: #{tts_latent_gpt_forward.1} parent=11 // pred_fallthru
          _
        // Predicated region
        $region73: #{tts_latent_gpt_forward.1} parent=11 // pred_check
          %p758 = pneg %p437
        $region74: #{tts_latent_gpt_forward.1} parent=11 // pred_check_branch
          %760 = sbr.rel (%p758) target = $region76
        $region75: #{tts_latent_gpt_forward.1} parent=11 // pred_region
          %s762 = ssub.s32 1024, 1024
          %763 = vsyncadd [#allocation31], %s762
          %s764 = sshll.u32 [#allocation30], 4
          %s765 = int_to_ptr.vmem [resolvable:$true] %s764
          %770 = dma.hbm_to_vmem [thread:$0]  %s18, 1024, %s765, [#allocation31], 64, 64, 4
        $region76: #{tts_latent_gpt_forward.1} parent=11 // pred_fallthru
          _
        // Predicated region
        $region77: #{tts_latent_gpt_forward.1} parent=11 // pred_check
          %p771 = pneg %p458
        $region78: #{tts_latent_gpt_forward.1} parent=11 // pred_check_branch
          %773 = sbr.rel (%p771) target = $region80
        $region79: #{tts_latent_gpt_forward.1} parent=11 // pred_region
          %s775 = ssub.s32 16, 16
          %776 = vsyncadd [#allocation31], %s775
          %s778 = sshll.u32 [#allocation32], 4
          %s779 = int_to_ptr.vmem [resolvable:$true] %s778
          %781 = dma.hbm_to_vmem [thread:$0]  %s19, 16, %s779, [#allocation31]
        $region80: #{tts_latent_gpt_forward.1} parent=11 // pred_fallthru
          _
        // Predicated region
        $region81: #{tts_latent_gpt_forward.1} parent=11 // pred_check
          %p782 = pneg %p479
        $region82: #{tts_latent_gpt_forward.1} parent=11 // pred_check_branch
          %784 = sbr.rel (%p782) target = $region84
        $region83: #{tts_latent_gpt_forward.1} parent=11 // pred_region
          %s786 = ssub.s32 16, 16
          %787 = vsyncadd [#allocation34], %s786
          %s789 = sshll.u32 [#allocation33], 4
          %s790 = int_to_ptr.vmem [resolvable:$true] %s789
          %792 = dma.hbm_to_vmem [thread:$0]  %s20, 16, %s790, [#allocation34]
        $region84: #{tts_latent_gpt_forward.1} parent=11 // pred_fallthru
          _
        // Predicated region
        $region85: #{tts_latent_gpt_forward.1} parent=11 // pred_check
          %p793 = pneg %p500
        $region86: #{tts_latent_gpt_forward.1} parent=11 // pred_check_branch
          %795 = sbr.rel (%p793) target = $region88
        $region87: #{tts_latent_gpt_forward.1} parent=11 // pred_region
          _
        $region88: #{tts_latent_gpt_forward.1} parent=11 // pred_fallthru
          _
      $region12: #{tts_latent_gpt_forward.1} parent=5 // pred_fallthru
        _
      %p796 = scmp.lt.s32.totalorder %s49, 2
      // Predicated region
      $region89: #{tts_latent_gpt_forward.1} parent=5 // pred_check
        %p797 = pneg %p796
      $region90: #{tts_latent_gpt_forward.1} parent=5 // pred_check_branch
        %799 = sbr.rel (%p797) target = $region92
      $region91: #{tts_latent_gpt_forward.1} parent=5 // pred_region
        // Predicated region
        $region93: #{tts_latent_gpt_forward.1} parent=91 // pred_check
          %p800 = pneg %p69
        $region94: #{tts_latent_gpt_forward.1} parent=91 // pred_check_branch
          %802 = sbr.rel (%p800) target = $region96
        $region95: #{tts_latent_gpt_forward.1} parent=91 // pred_region
          %p803 = scmp.lt.s32.totalorder %s49, 1
          %s804 = scalar_select %p803, %s49, 1
          %s805 = smul.addr %s804, 2
          %s806 = smul.addr %s805, 8
          %s807 = scalar_lea.vmem %s1, %s806
        $region96: #{tts_latent_gpt_forward.1} parent=91 // pred_fallthru
          _
        // Predicated region
        $region97: #{tts_latent_gpt_forward.1} parent=91 // pred_check
          %p808 = pneg %p95
        $region98: #{tts_latent_gpt_forward.1} parent=91 // pred_check_branch
          %810 = sbr.rel (%p808) target = $region100
        $region99: #{tts_latent_gpt_forward.1} parent=91 // pred_region
          %p811 = scmp.lt.s32.totalorder %s49, 1
          %s812 = scalar_select %p811, %s49, 1
          %s813 = smul.addr %s812, 2
          %s814 = smul.addr %s813, 8
          %s815 = scalar_lea.vmem %s2, %s814
        $region100: #{tts_latent_gpt_forward.1} parent=91 // pred_fallthru
          _
      $region92: #{tts_latent_gpt_forward.1} parent=5 // pred_fallthru
        _
      %p816 = scmp.le.s32.totalorder 1, %s49
      %p817 = scmp.lt.s32.totalorder %s49, 3
      %p818 = pnand %p816, %p817
      %p819 = pneg %p818
      // Predicated region
      $region101: #{tts_latent_gpt_forward.1} parent=5 // pred_check
        _
      $region102: #{tts_latent_gpt_forward.1} parent=5 // pred_check_branch
        %821 = sbr.rel (%p818) target = $region104
      $region103: #{tts_latent_gpt_forward.1} parent=5 // pred_region
        %s822 = ssub.s32 %s49, 1
        // Predicated region
        $region105: #{tts_latent_gpt_forward.1} parent=103 // pred_check
          %p823 = pneg %p122
        $region106: #{tts_latent_gpt_forward.1} parent=103 // pred_check_branch
          %825 = sbr.rel (%p823) target = $region108
        $region107: #{tts_latent_gpt_forward.1} parent=103 // pred_region
          %826 = dma.done [#allocation7], 1024
        $region108: #{tts_latent_gpt_forward.1} parent=103 // pred_fallthru
          _
        // Predicated region
        $region109: #{tts_latent_gpt_forward.1} parent=103 // pred_check
          %p827 = pneg %p143
        $region110: #{tts_latent_gpt_forward.1} parent=103 // pred_check_branch
          %829 = sbr.rel (%p827) target = $region112
        $region111: #{tts_latent_gpt_forward.1} parent=103 // pred_region
          %830 = dma.done [#allocation10], 32
        $region112: #{tts_latent_gpt_forward.1} parent=103 // pred_fallthru
          _
        // Predicated region
        $region113: #{tts_latent_gpt_forward.1} parent=103 // pred_check
          %p831 = pneg %p164
        $region114: #{tts_latent_gpt_forward.1} parent=103 // pred_check_branch
          %833 = sbr.rel (%p831) target = $region116
        $region115: #{tts_latent_gpt_forward.1} parent=103 // pred_region
          %834 = dma.done [#allocation10], 32
        $region116: #{tts_latent_gpt_forward.1} parent=103 // pred_fallthru
          _
        // Predicated region
        $region117: #{tts_latent_gpt_forward.1} parent=103 // pred_check
          %p835 = pneg %p185
        $region118: #{tts_latent_gpt_forward.1} parent=103 // pred_check_branch
          %837 = sbr.rel (%p835) target = $region120
        $region119: #{tts_latent_gpt_forward.1} parent=103 // pred_region
          %838 = dma.done [#allocation13], 6144
        $region120: #{tts_latent_gpt_forward.1} parent=103 // pred_fallthru
          _
        // Predicated region
        $region121: #{tts_latent_gpt_forward.1} parent=103 // pred_check
          %p839 = pneg %p206
        $region122: #{tts_latent_gpt_forward.1} parent=103 // pred_check_branch
          %841 = sbr.rel (%p839) target = $region124
        $region123: #{tts_latent_gpt_forward.1} parent=103 // pred_region
          %842 = dma.done [#allocation13], 96
        $region124: #{tts_latent_gpt_forward.1} parent=103 // pred_fallthru
          _
        // Predicated region
        $region125: #{tts_latent_gpt_forward.1} parent=103 // pred_check
          %p843 = pneg %p227
        $region126: #{tts_latent_gpt_forward.1} parent=103 // pred_check_branch
          %845 = sbr.rel (%p843) target = $region128
        $region127: #{tts_latent_gpt_forward.1} parent=103 // pred_region
          %846 = dma.done [#allocation16], 2048
        $region128: #{tts_latent_gpt_forward.1} parent=103 // pred_fallthru
          _
        // Predicated region
        $region129: #{tts_latent_gpt_forward.1} parent=103 // pred_check
          %p847 = pneg %p248
        $region130: #{tts_latent_gpt_forward.1} parent=103 // pred_check_branch
          %849 = sbr.rel (%p847) target = $region132
        $region131: #{tts_latent_gpt_forward.1} parent=103 // pred_region
          %850 = dma.done [#allocation16], 32
        $region132: #{tts_latent_gpt_forward.1} parent=103 // pred_fallthru
          _
        // Predicated region
        $region133: #{tts_latent_gpt_forward.1} parent=103 // pred_check
          %p851 = pneg %p269
        $region134: #{tts_latent_gpt_forward.1} parent=103 // pred_check_branch
          %853 = sbr.rel (%p851) target = $region136
        $region135: #{tts_latent_gpt_forward.1} parent=103 // pred_region
          %854 = dma.done [#allocation19], 32
        $region136: #{tts_latent_gpt_forward.1} parent=103 // pred_fallthru
          _
        // Predicated region
        $region137: #{tts_latent_gpt_forward.1} parent=103 // pred_check
          %p855 = pneg %p290
        $region138: #{tts_latent_gpt_forward.1} parent=103 // pred_check_branch
          %857 = sbr.rel (%p855) target = $region140
        $region139: #{tts_latent_gpt_forward.1} parent=103 // pred_region
          %858 = dma.done [#allocation19], 32
        $region140: #{tts_latent_gpt_forward.1} parent=103 // pred_fallthru
          _
        // Predicated region
        $region141: #{tts_latent_gpt_forward.1} parent=103 // pred_check
          %p859 = pneg %p311
        $region142: #{tts_latent_gpt_forward.1} parent=103 // pred_check_branch
          %861 = sbr.rel (%p859) target = $region144
        $region143: #{tts_latent_gpt_forward.1} parent=103 // pred_region
          %862 = dma.done [#allocation22], 8192
        $region144: #{tts_latent_gpt_forward.1} parent=103 // pred_fallthru
          _
        // Predicated region
        $region145: #{tts_latent_gpt_forward.1} parent=103 // pred_check
          %p863 = pneg %p332
        $region146: #{tts_latent_gpt_forward.1} parent=103 // pred_check_branch
          %865 = sbr.rel (%p863) target = $region148
        $region147: #{tts_latent_gpt_forward.1} parent=103 // pred_region
          %866 = dma.done [#allocation22], 128
        $region148: #{tts_latent_gpt_forward.1} parent=103 // pred_fallthru
          _
        // Predicated region
        $region149: #{tts_latent_gpt_forward.1} parent=103 // pred_check
          %p867 = pneg %p353
        $region150: #{tts_latent_gpt_forward.1} parent=103 // pred_check_branch
          %869 = sbr.rel (%p867) target = $region152
        $region151: #{tts_latent_gpt_forward.1} parent=103 // pred_region
          %870 = dma.done [#allocation25], 8192
        $region152: #{tts_latent_gpt_forward.1} parent=103 // pred_fallthru
          _
        // Predicated region
        $region153: #{tts_latent_gpt_forward.1} parent=103 // pred_check
          %p871 = pneg %p374
        $region154: #{tts_latent_gpt_forward.1} parent=103 // pred_check_branch
          %873 = sbr.rel (%p871) target = $region156
        $region155: #{tts_latent_gpt_forward.1} parent=103 // pred_region
          %874 = dma.done [#allocation25], 32
        $region156: #{tts_latent_gpt_forward.1} parent=103 // pred_fallthru
          _
        // Predicated region
        $region157: #{tts_latent_gpt_forward.1} parent=103 // pred_check
          %p875 = pneg %p395
        $region158: #{tts_latent_gpt_forward.1} parent=103 // pred_check_branch
          %877 = sbr.rel (%p875) target = $region160
        $region159: #{tts_latent_gpt_forward.1} parent=103 // pred_region
          %878 = dma.done [#allocation28], 16
        $region160: #{tts_latent_gpt_forward.1} parent=103 // pred_fallthru
          _
        // Predicated region
        $region161: #{tts_latent_gpt_forward.1} parent=103 // pred_check
          %p879 = pneg %p416
        $region162: #{tts_latent_gpt_forward.1} parent=103 // pred_check_branch
          %881 = sbr.rel (%p879) target = $region164
        $region163: #{tts_latent_gpt_forward.1} parent=103 // pred_region
          %882 = dma.done [#allocation28], 16
        $region164: #{tts_latent_gpt_forward.1} parent=103 // pred_fallthru
          _
        // Predicated region
        $region165: #{tts_latent_gpt_forward.1} parent=103 // pred_check
          %p883 = pneg %p437
        $region166: #{tts_latent_gpt_forward.1} parent=103 // pred_check_branch
          %885 = sbr.rel (%p883) target = $region168
        $region167: #{tts_latent_gpt_forward.1} parent=103 // pred_region
          %886 = dma.done [#allocation31], 1024
        $region168: #{tts_latent_gpt_forward.1} parent=103 // pred_fallthru
          _
        // Predicated region
        $region169: #{tts_latent_gpt_forward.1} parent=103 // pred_check
          %p887 = pneg %p458
        $region170: #{tts_latent_gpt_forward.1} parent=103 // pred_check_branch
          %889 = sbr.rel (%p887) target = $region172
        $region171: #{tts_latent_gpt_forward.1} parent=103 // pred_region
          %890 = dma.done [#allocation31], 16
        $region172: #{tts_latent_gpt_forward.1} parent=103 // pred_fallthru
          _
        // Predicated region
        $region173: #{tts_latent_gpt_forward.1} parent=103 // pred_check
          %p891 = pneg %p479
        $region174: #{tts_latent_gpt_forward.1} parent=103 // pred_check_branch
          %893 = sbr.rel (%p891) target = $region176
        $region175: #{tts_latent_gpt_forward.1} parent=103 // pred_region
          %894 = dma.done [#allocation34], 16
        $region176: #{tts_latent_gpt_forward.1} parent=103 // pred_fallthru
          _
        %p895 = scmp.lt.s32.totalorder %s54, 1
        %s896 = scalar_select %p895, %s54, 1
        %s897 = smul.addr %s896, 2
        %s898 = smul.addr %s897, 8
        %s899 = scalar_lea.vmem %s1, %s898
        %p900 = pneg %p75
        %p901 = pneg %p72
        %p902 = scmp.lt.s32.totalorder %s54, 1
        %s903 = scalar_select %p902, %s54, 1
        %s904 = smul.addr %s903, 2
        %s905 = smul.addr %s904, 8
        %s906 = scalar_lea.vmem %s2, %s905
        %p907 = pneg %p101
        %p908 = pneg %p98
        %p909 = pneg %p122
        %p910 = pneg %p119
        %p911 = pneg %p143
        %p912 = pneg %p140
        %p913 = pneg %p164
        %p914 = pneg %p161
        %p915 = pneg %p185
        %p916 = pneg %p182
        %p917 = pneg %p206
        %p918 = pneg %p203
        %p919 = pneg %p227
        %p920 = pneg %p224
        %p921 = pneg %p248
        %p922 = pneg %p245
        %p923 = pneg %p269
        %p924 = pneg %p266
        %p925 = pneg %p290
        %p926 = pneg %p287
        %p927 = pneg %p311
        %p928 = pneg %p308
        %p929 = pneg %p332
        %p930 = pneg %p329
        %p931 = pneg %p353
        %p932 = pneg %p350
        %p933 = pneg %p374
        %p934 = pneg %p371
        %p935 = pneg %p395
        %p936 = pneg %p392
        %p937 = pneg %p416
        %p938 = pneg %p413
        %p939 = pneg %p437
        %p940 = pneg %p434
        %p941 = pneg %p458
        %p942 = pneg %p455
        %p943 = pneg %p479
        %p944 = pneg %p476
        %p945 = pneg %p500
        %p946 = pneg %p497
        %p947 = pneg %p526
        %p948 = pneg %p523
        %s949 = sand.u32 %s513, 1
        %s950 = scalar_lea.sflag [#allocation8], %s949
        %s951 = sand.u32 %s513, 1
        %s952 = smul.addr %s951, 8
        %s953 = scalar_lea.vmem [#allocation35], %s952
        %p954 = pneg %p552
        %p955 = pneg %p549
        %p956 = scmp.lt.s32.totalorder %s54, 1
        %s957 = scalar_select %p956, %s54, 1
        %s958 = smul.addr %s957, 8
        %s959 = scalar_lea.vmem %s23, %s958
        %p960 = scmp.lt.s32.totalorder %s54, 1
        %s961 = scalar_select %p960, %s54, 1
        %s962 = smul.addr %s961, 2
        %s963 = smul.addr %s962, 8
        %s964 = scalar_lea.vmem %s1, %s963
        %p965 = scmp.lt.s32.totalorder %s54, 1
        %s966 = scalar_select %p965, %s54, 1
        %s967 = smul.addr %s966, 2
        %s968 = smul.addr %s967, 8
        %s969 = scalar_lea.vmem %s2, %s968
        %p970 = scmp.lt.s32.totalorder %s54, 1
        %s971 = scalar_select %p970, %s54, 1
        %s972 = smul.addr %s971, 8
        %s973 = scalar_lea.vmem %s23, %s972
        %v975 = vld [vmem:[%s964] sm:$0xff]
        %v976 = vld [vmem:[%s964 + $0x8] sm:$0xff]
        %v977 = vld [vmem:[%s969] sm:$0xff]
        %v978 = vld [vmem:[%s969 + $0x8] sm:$0xff]
        %v979 = vld [vmem:[#allocation6] sm:$0xf]
        %v980 = vld [vmem:[#allocation6 + $0x4] sm:$0xf]
        %v981 = vld [vmem:[#allocation6 + $0x8] sm:$0xf]
        %v982 = vld [vmem:[#allocation6 + $0xc] sm:$0xf]
        %v983 = vld [vmem:[#allocation6 + $0x10] sm:$0xf]
        %v984 = vld [vmem:[#allocation6 + $0x14] sm:$0xf]
        %v985 = vld [vmem:[#allocation6 + $0x18] sm:$0xf]
        %v986 = vld [vmem:[#allocation6 + $0x1c] sm:$0xf]
        %v987 = vld [vmem:[#allocation6 + $0x20] sm:$0xf]
        %v988 = vld [vmem:[#allocation6 + $0x24] sm:$0xf]
        %v989 = vld [vmem:[#allocation6 + $0x28] sm:$0xf]
        %v990 = vld [vmem:[#allocation6 + $0x2c] sm:$0xf]
        %v991 = vld [vmem:[#allocation6 + $0x30] sm:$0xf]
        %v992 = vld [vmem:[#allocation6 + $0x34] sm:$0xf]
        %v993 = vld [vmem:[#allocation6 + $0x38] sm:$0xf]
        %v994 = vld [vmem:[#allocation6 + $0x3c] sm:$0xf]
        %v995 = vpack.c.bf16 %v978, %v977
        %v1012 = vunpack.c.l.b16 %v979
        %v1013 = vunpack.c.l.b16 %v980
        %v1014 = vunpack.c.l.b16 %v981
        %v1015 = vunpack.c.l.b16 %v982
        %v1016 = vunpack.c.l.b16 %v983
        %v1017 = vunpack.c.l.b16 %v984
        %v1018 = vunpack.c.l.b16 %v985
        %v1019 = vunpack.c.l.b16 %v986
        %v1020 = vunpack.c.l.b16 %v987
        %v1021 = vunpack.c.l.b16 %v988
        %v1022 = vunpack.c.l.b16 %v989
        %v1023 = vunpack.c.l.b16 %v990
        %v1024 = vunpack.c.l.b16 %v991
        %v1025 = vunpack.c.l.b16 %v992
        %v1026 = vunpack.c.l.b16 %v993
        %v1027 = vunpack.c.l.b16 %v994
        %v1028 = vpack.c.b16 %v1013, %v1012
        %v1029 = vpack.c.b16 %v1015, %v1014
        %v1030 = vpack.c.b16 %v1017, %v1016
        %v1031 = vpack.c.b16 %v1019, %v1018
        %v1032 = vpack.c.b16 %v1021, %v1020
        %v1033 = vpack.c.b16 %v1023, %v1022
        %v1034 = vpack.c.b16 %v1025, %v1024
        %v1035 = vpack.c.b16 %v1027, %v1026
        %1044 = vmatprep.subr.bf16.mxu0 0
        %1045 = vmatpush1.bf16.msra.mxu0 %v1028
        %1046 = vmatprep.subr.bf16.mxu0 0
        %1047 = vmatpush1.bf16.msra.mxu0 %v1029
        %1048 = vmatprep.subr.bf16.mxu0 0
        %1049 = vmatpush1.bf16.msra.mxu0 %v1030
        %1050 = vmatprep.subr.bf16.mxu0 0
        %1051 = vmatpush1.bf16.msra.mxu0 %v1031
        %1052 = vmatprep.subr.bf16.mxu0 0
        %1053 = vmatpush1.bf16.msra.mxu0 %v1032
        %1054 = vmatprep.subr.bf16.mxu0 0
        %1055 = vmatpush1.bf16.msra.mxu0 %v1033
        %1056 = vmatprep.subr.bf16.mxu0 0
        %1057 = vmatpush1.bf16.msra.mxu0 %v1034
        %1058 = vmatprep.subr.bf16.mxu0 0
        %1059 = vmatpush1.bf16.msra.mxu0 %v1035
        %1060 = vmatprep.subr.bf16.mxu0 0
        %1061 = vmatpush1.bf16.msra.mxu0 0
        %1062 = vmatprep.subr.bf16.mxu0 0
        %1063 = vmatpush1.bf16.msra.mxu0 0
        %1064 = vmatprep.subr.bf16.mxu0 0
        %1065 = vmatpush1.bf16.msra.mxu0 0
        %1066 = vmatprep.subr.bf16.mxu0 0
        %1067 = vmatpush1.bf16.msra.mxu0 0
        %1068 = vmatprep.subr.bf16.mxu0 0
        %1069 = vmatpush1.bf16.msra.mxu0 0
        %1070 = vmatprep.subr.bf16.mxu0 0
        %1071 = vmatpush1.bf16.msra.mxu0 0
        %1072 = vmatprep.subr.bf16.mxu0 0
        %1073 = vmatpush1.bf16.msra.mxu0 0
        %1074 = vmatprep.subr.bf16.mxu0 0
        %1075 = vmatpush1.bf16.msra.mxu0 0
        %1076 = vmatprep.mubr.bf16.mxu0 0
        %1077 = vmatmul.mubr.bf16.gmra.mrb[0].mxu0 %v995
        %v1078 = vpop.f32.mrb[0].mxu0
        %v1079 = vadd.f32 0.0, %v1078
        %v1080 = vpop.f32.mrb[0].mxu0
        %v1081 = vpop.f32.mrb[0].mxu0
        %v1082 = vadd.f32 0.0, %v1081
        %v1083 = vpop.f32.mrb[0].mxu0
        %1084 = vdwg.mxu0
        %v1085 = vadd.f32 %v975, %v1079
        %v1086 = vadd.f32 %v976, %v1082
        %s1087 = sld [smem:[#allocation4 + %s54]]
        %s1088 = sadd.s32 %s1087, 8
        %v1089 = vlaneseq
        %v1090 = vshrl.u32 %v1089, 7
        %v1091 = vadd.s32 %v1090, 8
        %v1092 = vlaneseq
        %v1093 = vand.u32 %v1092, 127
        %vm1094 = vcmp.le.s32.totalorder %v1093, %v1090
        %vm1095 = vcmp.le.s32.totalorder %v1093, %v1091
        %v1096 = vstv %s1088
        %vm1097 = vcmp.lt.s32.totalorder %v1093, %v1096
        %vm1098 = vmand %vm1094, %vm1097
        %vm1099 = vmand %vm1095, %vm1097
        %v1100 = vsel %vm1098, 0.0, -1e+09
        %v1101 = vsel %vm1099, 0.0, -1e+09
        %v1102 = vld [vmem:[#allocation9] sm:$0x1]
        %v1103 = vld [vmem:[#allocation11] sm:$0x1]
        %1104 = vadd.xlane.f32.xlu0 %v1085
        %v1105 = vpop.xlane.xlu0 %1104
        %1106 = vadd.xlane.f32.xlu0 %v1086
        %v1107 = vpop.xlane.xlu0 %1106
        %v1108 = vrcp.pop 128.0
        %v1109 = vmul.f32 %v1105, %v1108
        %v1110 = vmul.f32 %v1107, %v1108
        %v1111 = vsub.f32 %v1085, %v1109
        %v1112 = vsub.f32 %v1086, %v1110
        %v1113 = vmul.f32 %v1111, %v1111
        %v1114 = vmul.f32 %v1112, %v1112
        %1115 = vadd.xlane.f32.xlu0 %v1113
        %v1116 = vpop.xlane.xlu0 %1115
        %1117 = vadd.xlane.f32.xlu0 %v1114
        %v1118 = vpop.xlane.xlu0 %1117
        %v1119 = vmul.f32 %v1116, %v1108
        %v1120 = vmul.f32 %v1118, %v1108
        %v1121 = vadd.f32 %v1119, 1e-05
        %v1122 = vadd.f32 %v1120, 1e-05
        %v1123 = vrsqrt.pop %v1121
        %v1124 = vrsqrt.pop %v1122
        %v1125 = vmul.f32 %v1111, %v1123
        %v1126 = vmul.f32 %v1112, %v1124
        %v1128 = vlaneseq
        %v1129 = vshrl.u32 %v1128, 7
        %v1130 = vsub.s32 0, %v1129
        %v1131 = vrot.slane %v1102, %v1130
        %v1133 = vmul.f32 %v1125, %v1131
        %v1134 = vmul.f32 %v1126, %v1131
        %v1136 = vlaneseq
        %v1137 = vshrl.u32 %v1136, 7
        %v1138 = vsub.s32 0, %v1137
        %v1139 = vrot.slane %v1103, %v1138
        %v1141 = vadd.f32 %v1133, %v1139
        %v1142 = vadd.f32 %v1134, %v1139
        %v1143 = vld [vmem:[#allocation12] sm:$0xff]
        %v1144 = vld [vmem:[#allocation12 + $0x8] sm:$0xf]
        %v1145 = vld [vmem:[#allocation12 + $0xc] sm:$0xff]
        %v1146 = vld [vmem:[#allocation12 + $0x14] sm:$0xf]
        %v1147 = vld [vmem:[#allocation12 + $0x18] sm:$0xff]
        %v1148 = vld [vmem:[#allocation12 + $0x20] sm:$0xf]
        %v1149 = vld [vmem:[#allocation12 + $0x24] sm:$0xff]
        %v1150 = vld [vmem:[#allocation12 + $0x2c] sm:$0xf]
        %v1151 = vld [vmem:[#allocation12 + $0x30] sm:$0xff]
        %v1152 = vld [vmem:[#allocation12 + $0x38] sm:$0xf]
        %v1153 = vld [vmem:[#allocation12 + $0x3c] sm:$0xff]
        %v1154 = vld [vmem:[#allocation12 + $0x44] sm:$0xf]
        %v1155 = vld [vmem:[#allocation12 + $0x48] sm:$0xff]
        %v1156 = vld [vmem:[#allocation12 + $0x50] sm:$0xf]
        %v1157 = vld [vmem:[#allocation12 + $0x54] sm:$0xff]
        %v1158 = vld [vmem:[#allocation12 + $0x5c] sm:$0xf]
        %v1159 = vld [vmem:[#allocation12 + $0x60] sm:$0xff]
        %v1160 = vld [vmem:[#allocation12 + $0x68] sm:$0xf]
        %v1161 = vld [vmem:[#allocation12 + $0x6c] sm:$0xff]
        %v1162 = vld [vmem:[#allocation12 + $0x74] sm:$0xf]
        %v1163 = vld [vmem:[#allocation12 + $0x78] sm:$0xff]
        %v1164 = vld [vmem:[#allocation12 + $0x80] sm:$0xf]
        %v1165 = vld [vmem:[#allocation12 + $0x84] sm:$0xff]
        %v1166 = vld [vmem:[#allocation12 + $0x8c] sm:$0xf]
        %v1167 = vld [vmem:[#allocation12 + $0x90] sm:$0xff]
        %v1168 = vld [vmem:[#allocation12 + $0x98] sm:$0xf]
        %v1169 = vld [vmem:[#allocation12 + $0x9c] sm:$0xff]
        %v1170 = vld [vmem:[#allocation12 + $0xa4] sm:$0xf]
        %v1171 = vld [vmem:[#allocation12 + $0xa8] sm:$0xff]
        %v1172 = vld [vmem:[#allocation12 + $0xb0] sm:$0xf]
        %v1173 = vld [vmem:[#allocation12 + $0xb4] sm:$0xff]
        %v1174 = vld [vmem:[#allocation12 + $0xbc] sm:$0xf]
        %v1175 = vpack.c.bf16 %v1142, %v1141
        %v1176 = vld [vmem:[#allocation14] sm:$0x7]
        %v1178 = vlaneseq
        %v1179 = vshrl.u32 %v1178, 7
        %v1180 = vsub.s32 0, %v1179
        %v1181 = vrot.slane %v1176, %v1180
        %v1182 = vlaneseq
        %v1183 = vshrl.u32 %v1182, 7
        %v1184 = vsub.s32 1, %v1183
        %v1185 = vrot.slane %v1176, %v1184
        %v1186 = vlaneseq
        %v1187 = vshrl.u32 %v1186, 7
        %v1188 = vsub.s32 2, %v1187
        %v1189 = vrot.slane %v1176, %v1188
        %v1225 = vunpack.c.l.b16 %v1143
        %v1226 = vunpack.c.h.b16 %v1143
        %v1227 = vunpack.c.l.b16 %v1144
        %v1228 = vunpack.c.l.b16 %v1145
        %v1229 = vunpack.c.h.b16 %v1145
        %v1230 = vunpack.c.l.b16 %v1146
        %v1231 = vunpack.c.l.b16 %v1147
        %v1232 = vunpack.c.h.b16 %v1147
        %v1233 = vunpack.c.l.b16 %v1148
        %v1234 = vunpack.c.l.b16 %v1149
        %v1235 = vunpack.c.h.b16 %v1149
        %v1236 = vunpack.c.l.b16 %v1150
        %v1237 = vunpack.c.l.b16 %v1151
        %v1238 = vunpack.c.h.b16 %v1151
        %v1239 = vunpack.c.l.b16 %v1152
        %v1240 = vunpack.c.l.b16 %v1153
        %v1241 = vunpack.c.h.b16 %v1153
        %v1242 = vunpack.c.l.b16 %v1154
        %v1243 = vunpack.c.l.b16 %v1155
        %v1244 = vunpack.c.h.b16 %v1155
        %v1245 = vunpack.c.l.b16 %v1156
        %v1246 = vunpack.c.l.b16 %v1157
        %v1247 = vunpack.c.h.b16 %v1157
        %v1248 = vunpack.c.l.b16 %v1158
        %v1249 = vunpack.c.l.b16 %v1159
        %v1250 = vunpack.c.h.b16 %v1159
        %v1251 = vunpack.c.l.b16 %v1160
        %v1252 = vunpack.c.l.b16 %v1161
        %v1253 = vunpack.c.h.b16 %v1161
        %v1254 = vunpack.c.l.b16 %v1162
        %v1255 = vunpack.c.l.b16 %v1163
        %v1256 = vunpack.c.h.b16 %v1163
        %v1257 = vunpack.c.l.b16 %v1164
        %v1258 = vunpack.c.l.b16 %v1165
        %v1259 = vunpack.c.h.b16 %v1165
        %v1260 = vunpack.c.l.b16 %v1166
        %v1261 = vunpack.c.l.b16 %v1167
        %v1262 = vunpack.c.h.b16 %v1167
        %v1263 = vunpack.c.l.b16 %v1168
        %v1264 = vunpack.c.l.b16 %v1169
        %v1265 = vunpack.c.h.b16 %v1169
        %v1266 = vunpack.c.l.b16 %v1170
        %v1267 = vunpack.c.l.b16 %v1171
        %v1268 = vunpack.c.h.b16 %v1171
        %v1269 = vunpack.c.l.b16 %v1172
        %v1270 = vunpack.c.l.b16 %v1173
        %v1271 = vunpack.c.h.b16 %v1173
        %v1272 = vunpack.c.l.b16 %v1174
        %v1273 = vpack.c.b16 %v1228, %v1225
        %v1274 = vpack.c.b16 %v1229, %v1226
        %v1275 = vpack.c.b16 %v1230, %v1227
        %v1276 = vpack.c.b16 %v1234, %v1231
        %v1277 = vpack.c.b16 %v1235, %v1232
        %v1278 = vpack.c.b16 %v1236, %v1233
        %v1279 = vpack.c.b16 %v1240, %v1237
        %v1280 = vpack.c.b16 %v1241, %v1238
        %v1281 = vpack.c.b16 %v1242, %v1239
        %v1282 = vpack.c.b16 %v1246, %v1243
        %v1283 = vpack.c.b16 %v1247, %v1244
        %v1284 = vpack.c.b16 %v1248, %v1245
        %v1285 = vpack.c.b16 %v1252, %v1249
        %v1286 = vpack.c.b16 %v1253, %v1250
        %v1287 = vpack.c.b16 %v1254, %v1251
        %v1288 = vpack.c.b16 %v1258, %v1255
        %v1289 = vpack.c.b16 %v1259, %v1256
        %v1290 = vpack.c.b16 %v1260, %v1257
        %v1291 = vpack.c.b16 %v1264, %v1261
        %v1292 = vpack.c.b16 %v1265, %v1262
        %v1293 = vpack.c.b16 %v1266, %v1263
        %v1294 = vpack.c.b16 %v1270, %v1267
        %v1295 = vpack.c.b16 %v1271, %v1268
        %v1296 = vpack.c.b16 %v1272, %v1269
        %1321 = vmatprep.subr.bf16.mxu0 %v1274
        %1322 = vmatpush1.bf16.msra.mxu0 %v1273
        %1323 = vmatprep.subr.bf16.mxu0 %v1277
        %1324 = vmatpush1.bf16.msra.mxu0 %v1276
        %1325 = vmatprep.subr.bf16.mxu0 %v1280
        %1326 = vmatpush1.bf16.msra.mxu0 %v1279
        %1327 = vmatprep.subr.bf16.mxu0 %v1283
        %1328 = vmatpush1.bf16.msra.mxu0 %v1282
        %1329 = vmatprep.subr.bf16.mxu0 %v1286
        %1330 = vmatpush1.bf16.msra.mxu0 %v1285
        %1331 = vmatprep.subr.bf16.mxu0 %v1289
        %1332 = vmatpush1.bf16.msra.mxu0 %v1288
        %1333 = vmatprep.subr.bf16.mxu0 %v1292
        %1334 = vmatpush1.bf16.msra.mxu0 %v1291
        %1335 = vmatprep.subr.bf16.mxu0 %v1295
        %1336 = vmatpush1.bf16.msra.mxu0 %v1294
        %1337 = vmatprep.subr.bf16.mxu0 0
        %1338 = vmatpush1.bf16.msra.mxu0 0
        %1339 = vmatprep.subr.bf16.mxu0 0
        %1340 = vmatpush1.bf16.msra.mxu0 0
        %1341 = vmatprep.subr.bf16.mxu0 0
        %1342 = vmatpush1.bf16.msra.mxu0 0
        %1343 = vmatprep.subr.bf16.mxu0 0
        %1344 = vmatpush1.bf16.msra.mxu0 0
        %1345 = vmatprep.subr.bf16.mxu0 0
        %1346 = vmatpush1.bf16.msra.mxu0 0
        %1347 = vmatprep.subr.bf16.mxu0 0
        %1348 = vmatpush1.bf16.msra.mxu0 0
        %1349 = vmatprep.subr.bf16.mxu0 0
        %1350 = vmatpush1.bf16.msra.mxu0 0
        %1351 = vmatprep.subr.bf16.mxu0 0
        %1352 = vmatpush1.bf16.msra.mxu0 0
        %1353 = vmatprep.mubr.bf16.mxu0 0
        %1354 = vmatmul.mubr.bf16.gmra.mrb[0].mxu0 %v1175
        %v1355 = vpop.f32.mrb[0].mxu0
        %v1356 = vadd.f32 %v1181, %v1355
        %v1357 = vpop.f32.mrb[0].mxu0
        %v1358 = vadd.f32 %v1185, %v1357
        %v1359 = vpop.f32.mrb[0].mxu0
        %v1360 = vadd.f32 %v1181, %v1359
        %v1361 = vpop.f32.mrb[0].mxu0
        %v1362 = vadd.f32 %v1185, %v1361
        %1363 = vdwg.mxu0
        %1364 = vmatprep.subr.bf16.mxu0 0
        %1365 = vmatpush1.bf16.msra.mxu0 %v1275
        %1366 = vmatprep.subr.bf16.mxu0 0
        %1367 = vmatpush1.bf16.msra.mxu0 %v1278
        %1368 = vmatprep.subr.bf16.mxu0 0
        %1369 = vmatpush1.bf16.msra.mxu0 %v1281
        %1370 = vmatprep.subr.bf16.mxu0 0
        %1371 = vmatpush1.bf16.msra.mxu0 %v1284
        %1372 = vmatprep.subr.bf16.mxu0 0
        %1373 = vmatpush1.bf16.msra.mxu0 %v1287
        %1374 = vmatprep.subr.bf16.mxu0 0
        %1375 = vmatpush1.bf16.msra.mxu0 %v1290
        %1376 = vmatprep.subr.bf16.mxu0 0
        %1377 = vmatpush1.bf16.msra.mxu0 %v1293
        %1378 = vmatprep.subr.bf16.mxu0 0
        %1379 = vmatpush1.bf16.msra.mxu0 %v1296
        %1380 = vmatprep.subr.bf16.mxu0 0
        %1381 = vmatpush1.bf16.msra.mxu0 0
        %1382 = vmatprep.subr.bf16.mxu0 0
        %1383 = vmatpush1.bf16.msra.mxu0 0
        %1384 = vmatprep.subr.bf16.mxu0 0
        %1385 = vmatpush1.bf16.msra.mxu0 0
        %1386 = vmatprep.subr.bf16.mxu0 0
        %1387 = vmatpush1.bf16.msra.mxu0 0
        %1388 = vmatprep.subr.bf16.mxu0 0
        %1389 = vmatpush1.bf16.msra.mxu0 0
        %1390 = vmatprep.subr.bf16.mxu0 0
        %1391 = vmatpush1.bf16.msra.mxu0 0
        %1392 = vmatprep.subr.bf16.mxu0 0
        %1393 = vmatpush1.bf16.msra.mxu0 0
        %1394 = vmatprep.subr.bf16.mxu0 0
        %1395 = vmatpush1.bf16.msra.mxu0 0
        %1396 = vmatprep.mubr.bf16.mxu0 0
        %1397 = vmatmul.mubr.bf16.gmra.mrb[0].mxu0 %v1175
        %v1398 = vpop.f32.mrb[0].mxu0
        %v1399 = vadd.f32 %v1189, %v1398
        %v1400 = vpop.f32.mrb[0].mxu0
        %v1401 = vpop.f32.mrb[0].mxu0
        %v1402 = vadd.f32 %v1189, %v1401
        %v1403 = vpop.f32.mrb[0].mxu0
        %1404 = vdwg.mxu0
        %v1405 = vpack.c.bf16 %v1360, %v1356
        %v1406 = vpack.c.bf16 %v1362, %v1358
        %v1407 = vpack.c.bf16 %v1402, %v1399
        %vm1408 = vcmask 261120
        %v1410 = vsel %vm1408, %v1405, 0
        %v1413 = vsel %vm1408, %v1406, 0
        %1415 = vmatprep.subr.bf16.mxu0 0
        %1416 = vmatpush1.bf16.xpose.msra.mxu0 %v1413
        %1417 = vmatprep.subr.bf16.mxu0 0
        %1418 = vmatpush1.bf16.xpose.msra.mxu0 0
        %1419 = vmatprep.subr.bf16.mxu0 0
        %1420 = vmatpush1.bf16.xpose.msra.mxu0 0
        %1421 = vmatprep.subr.bf16.mxu0 0
        %1422 = vmatpush1.bf16.xpose.msra.mxu0 0
        %1423 = vmatprep.subr.bf16.mxu0 0
        %1424 = vmatpush1.bf16.xpose.msra.mxu0 0
        %1425 = vmatprep.subr.bf16.mxu0 0
        %1426 = vmatpush1.bf16.xpose.msra.mxu0 0
        %1427 = vmatprep.subr.bf16.mxu0 0
        %1428 = vmatpush1.bf16.xpose.msra.mxu0 0
        %1429 = vmatprep.subr.bf16.mxu0 0
        %1430 = vmatpush1.bf16.xpose.msra.mxu0 0
        %1431 = vmatprep.subr.bf16.mxu0 0
        %1432 = vmatpush1.bf16.xpose.msra.mxu0 0
        %1433 = vmatprep.subr.bf16.mxu0 0
        %1434 = vmatpush1.bf16.xpose.msra.mxu0 0
        %1435 = vmatprep.subr.bf16.mxu0 0
        %1436 = vmatpush1.bf16.xpose.msra.mxu0 0
        %1437 = vmatprep.subr.bf16.mxu0 0
        %1438 = vmatpush1.bf16.xpose.msra.mxu0 0
        %1439 = vmatprep.subr.bf16.mxu0 0
        %1440 = vmatpush1.bf16.xpose.msra.mxu0 0
        %1441 = vmatprep.subr.bf16.mxu0 0
        %1442 = vmatpush1.bf16.xpose.msra.mxu0 0
        %1443 = vmatprep.subr.bf16.mxu0 0
        %1444 = vmatpush1.bf16.xpose.msra.mxu0 0
        %1445 = vmatprep.subr.bf16.mxu0 0
        %1446 = vmatpush1.bf16.xpose.msra.mxu0 0
        %1447 = vmatprep.mubr.bf16.mxu0 0
        %1448 = vmatmul.mubr.bf16.gmra.mrb[0].mxu0 %v1410
        %v1449 = vpop.f32.mrb[0].mxu0
        %v1450 = vadd.f32 %v1100, %v1449
        %v1451 = vpop.f32.mrb[0].mxu0
        %v1452 = vpop.f32.mrb[0].mxu0
        %v1453 = vadd.f32 %v1101, %v1452
        %v1454 = vpop.f32.mrb[0].mxu0
        %1455 = vdwg.mxu0
        %vm1456 = vcmask 130048
        %v1457 = vsel %vm1456, %v1450, -inf
        %1458 = vmax.xlane.f32.xlu0 %v1457
        %v1459 = vpop.xlane.xlu0 %1458
        %v1460 = vsel %vm1456, %v1453, -inf
        %1461 = vmax.xlane.f32.xlu0 %v1460
        %v1462 = vpop.xlane.xlu0 %1461
        %v1463 = vsub.f32 %v1450, %v1459
        %v1464 = vsub.f32 %v1453, %v1462
        %v1465 = vmul.f32 %v1463, 1.442695
        %v1466 = vpow.pop %v1465
        %v1467 = vmul.f32 %v1464, 1.442695
        %v1468 = vpow.pop %v1467
        %v1469 = vsel %vm1456, %v1466, 0.0
        %1470 = vadd.xlane.f32.xlu0 %v1469
        %v1471 = vpop.xlane.xlu0 %1470
        %v1472 = vsel %vm1456, %v1468, 0.0
        %1473 = vadd.xlane.f32.xlu0 %v1472
        %v1474 = vpop.xlane.xlu0 %1473
        %v1475 = vpack.c.bf16 %v1468, %v1466
        %v1477 = vsel %vm1456, %v1475, 0
        %1479 = vmatprep.subr.bf16.mxu0 0
        %1480 = vmatpush1.bf16.msra.mxu0 %v1407
        %1481 = vmatprep.subr.bf16.mxu0 0
        %1482 = vmatpush1.bf16.msra.mxu0 0
        %1483 = vmatprep.subr.bf16.mxu0 0
        %1484 = vmatpush1.bf16.msra.mxu0 0
        %1485 = vmatprep.subr.bf16.mxu0 0
        %1486 = vmatpush1.bf16.msra.mxu0 0
        %1487 = vmatprep.subr.bf16.mxu0 0
        %1488 = vmatpush1.bf16.msra.mxu0 0
        %1489 = vmatprep.subr.bf16.mxu0 0
        %1490 = vmatpush1.bf16.msra.mxu0 0
        %1491 = vmatprep.subr.bf16.mxu0 0
        %1492 = vmatpush1.bf16.msra.mxu0 0
        %1493 = vmatprep.subr.bf16.mxu0 0
        %1494 = vmatpush1.bf16.msra.mxu0 0
        %1495 = vmatprep.subr.bf16.mxu0 0
        %1496 = vmatpush1.bf16.msra.mxu0 0
        %1497 = vmatprep.subr.bf16.mxu0 0
        %1498 = vmatpush1.bf16.msra.mxu0 0
        %1499 = vmatprep.subr.bf16.mxu0 0
        %1500 = vmatpush1.bf16.msra.mxu0 0
        %1501 = vmatprep.subr.bf16.mxu0 0
        %1502 = vmatpush1.bf16.msra.mxu0 0
        %1503 = vmatprep.subr.bf16.mxu0 0
        %1504 = vmatpush1.bf16.msra.mxu0 0
        %1505 = vmatprep.subr.bf16.mxu0 0
        %1506 = vmatpush1.bf16.msra.mxu0 0
        %1507 = vmatprep.subr.bf16.mxu0 0
        %1508 = vmatpush1.bf16.msra.mxu0 0
        %1509 = vmatprep.subr.bf16.mxu0 0
        %1510 = vmatpush1.bf16.msra.mxu0 0
        %1511 = vmatprep.mubr.bf16.mxu0 0
        %1512 = vmatmul.mubr.bf16.gmra.mrb[0].mxu0 %v1477
        %v1513 = vpop.f32.mrb[0].mxu0
        %v1514 = vadd.f32 0.0, %v1513
        %v1515 = vpop.f32.mrb[0].mxu0
        %v1516 = vpop.f32.mrb[0].mxu0
        %v1517 = vadd.f32 0.0, %v1516
        %v1518 = vpop.f32.mrb[0].mxu0
        %1519 = vdwg.mxu0
        %v1520 = vrcp.pop %v1471
        %v1521 = vrcp.pop %v1474
        %v1522 = vmul.f32 %v1514, %v1520
        %v1523 = vmul.f32 %v1517, %v1521
        %1524 = vst.msk [vmem:[#allocation2] sm:$0xff] %vm1408, %v1522
        %1525 = vst.msk [vmem:[#allocation2 + $0x8] sm:$0xff] %vm1408, %v1523
        %1527 = vrot.lane.b32.xlu0 %v1405, 96
        %v1528 = vpop.permute.xlu0 %1527
        %1530 = vrot.lane.b32.xlu0 %v1406, 96
        %v1531 = vpop.permute.xlu0 %1530
        %v1533 = vsel %vm1408, %v1528, 0
        %v1536 = vsel %vm1408, %v1531, 0
        %1538 = vmatprep.subr.bf16.mxu0 0
        %1539 = vmatpush1.bf16.xpose.msra.mxu0 %v1536
        %1540 = vmatprep.subr.bf16.mxu0 0
        %1541 = vmatpush1.bf16.xpose.msra.mxu0 0
        %1542 = vmatprep.subr.bf16.mxu0 0
        %1543 = vmatpush1.bf16.xpose.msra.mxu0 0
        %1544 = vmatprep.subr.bf16.mxu0 0
        %1545 = vmatpush1.bf16.xpose.msra.mxu0 0
        %1546 = vmatprep.subr.bf16.mxu0 0
        %1547 = vmatpush1.bf16.xpose.msra.mxu0 0
        %1548 = vmatprep.subr.bf16.mxu0 0
        %1549 = vmatpush1.bf16.xpose.msra.mxu0 0
        %1550 = vmatprep.subr.bf16.mxu0 0
        %1551 = vmatpush1.bf16.xpose.msra.mxu0 0
        %1552 = vmatprep.subr.bf16.mxu0 0
        %1553 = vmatpush1.bf16.xpose.msra.mxu0 0
        %1554 = vmatprep.subr.bf16.mxu0 0
        %1555 = vmatpush1.bf16.xpose.msra.mxu0 0
        %1556 = vmatprep.subr.bf16.mxu0 0
        %1557 = vmatpush1.bf16.xpose.msra.mxu0 0
        %1558 = vmatprep.subr.bf16.mxu0 0
        %1559 = vmatpush1.bf16.xpose.msra.mxu0 0
        %1560 = vmatprep.subr.bf16.mxu0 0
        %1561 = vmatpush1.bf16.xpose.msra.mxu0 0
        %1562 = vmatprep.subr.bf16.mxu0 0
        %1563 = vmatpush1.bf16.xpose.msra.mxu0 0
        %1564 = vmatprep.subr.bf16.mxu0 0
        %1565 = vmatpush1.bf16.xpose.msra.mxu0 0
        %1566 = vmatprep.subr.bf16.mxu0 0
        %1567 = vmatpush1.bf16.xpose.msra.mxu0 0
        %1568 = vmatprep.subr.bf16.mxu0 0
        %1569 = vmatpush1.bf16.xpose.msra.mxu0 0
        %1570 = vmatprep.mubr.bf16.mxu0 0
        %1571 = vmatmul.mubr.bf16.gmra.mrb[0].mxu0 %v1533
        %v1572 = vpop.f32.mrb[0].mxu0
        %v1573 = vadd.f32 %v1100, %v1572
        %v1574 = vpop.f32.mrb[0].mxu0
        %v1575 = vpop.f32.mrb[0].mxu0
        %v1576 = vadd.f32 %v1101, %v1575
        %v1577 = vpop.f32.mrb[0].mxu0
        %1578 = vdwg.mxu0
        %v1579 = vsel %vm1456, %v1573, -inf
        %1580 = vmax.xlane.f32.xlu0 %v1579
        %v1581 = vpop.xlane.xlu0 %1580
        %v1582 = vsel %vm1456, %v1576, -inf
        %1583 = vmax.xlane.f32.xlu0 %v1582
        %v1584 = vpop.xlane.xlu0 %1583
        %v1585 = vsub.f32 %v1573, %v1581
        %v1586 = vsub.f32 %v1576, %v1584
        %v1587 = vmul.f32 %v1585, 1.442695
        %v1588 = vpow.pop %v1587
        %v1589 = vmul.f32 %v1586, 1.442695
        %v1590 = vpow.pop %v1589
        %v1591 = vsel %vm1456, %v1588, 0.0
        %1592 = vadd.xlane.f32.xlu0 %v1591
        %v1593 = vpop.xlane.xlu0 %1592
        %v1594 = vsel %vm1456, %v1590, 0.0
        %1595 = vadd.xlane.f32.xlu0 %v1594
        %v1596 = vpop.xlane.xlu0 %1595
        %v1597 = vpack.c.bf16 %v1590, %v1588
        %1599 = vrot.lane.b32.xlu0 %v1407, 96
        %v1600 = vpop.permute.xlu0 %1599
        %v1603 = vsel %vm1456, %v1597, 0
        %1605 = vmatprep.subr.bf16.mxu0 0
        %1606 = vmatpush1.bf16.msra.mxu0 %v1600
        %1607 = vmatprep.subr.bf16.mxu0 0
        %1608 = vmatpush1.bf16.msra.mxu0 0
        %1609 = vmatprep.subr.bf16.mxu0 0
        %1610 = vmatpush1.bf16.msra.mxu0 0
        %1611 = vmatprep.subr.bf16.mxu0 0
        %1612 = vmatpush1.bf16.msra.mxu0 0
        %1613 = vmatprep.subr.bf16.mxu0 0
        %1614 = vmatpush1.bf16.msra.mxu0 0
        %1615 = vmatprep.subr.bf16.mxu0 0
        %1616 = vmatpush1.bf16.msra.mxu0 0
        %1617 = vmatprep.subr.bf16.mxu0 0
        %1618 = vmatpush1.bf16.msra.mxu0 0
        %1619 = vmatprep.subr.bf16.mxu0 0
        %1620 = vmatpush1.bf16.msra.mxu0 0
        %1621 = vmatprep.subr.bf16.mxu0 0
        %1622 = vmatpush1.bf16.msra.mxu0 0
        %1623 = vmatprep.subr.bf16.mxu0 0
        %1624 = vmatpush1.bf16.msra.mxu0 0
        %1625 = vmatprep.subr.bf16.mxu0 0
        %1626 = vmatpush1.bf16.msra.mxu0 0
        %1627 = vmatprep.subr.bf16.mxu0 0
        %1628 = vmatpush1.bf16.msra.mxu0 0
        %1629 = vmatprep.subr.bf16.mxu0 0
        %1630 = vmatpush1.bf16.msra.mxu0 0
        %1631 = vmatprep.subr.bf16.mxu0 0
        %1632 = vmatpush1.bf16.msra.mxu0 0
        %1633 = vmatprep.subr.bf16.mxu0 0
        %1634 = vmatpush1.bf16.msra.mxu0 0
        %1635 = vmatprep.subr.bf16.mxu0 0
        %1636 = vmatpush1.bf16.msra.mxu0 0
        %1637 = vmatprep.mubr.bf16.mxu0 0
        %1638 = vmatmul.mubr.bf16.gmra.mrb[0].mxu0 %v1603
        %v1639 = vpop.f32.mrb[0].mxu0
        %v1640 = vadd.f32 0.0, %v1639
        %v1641 = vpop.f32.mrb[0].mxu0
        %v1642 = vpop.f32.mrb[0].mxu0
        %v1643 = vadd.f32 0.0, %v1642
        %v1644 = vpop.f32.mrb[0].mxu0
        %1645 = vdwg.mxu0
        %v1646 = vrcp.pop %v1593
        %v1647 = vrcp.pop %v1596
        %v1648 = vmul.f32 %v1640, %v1646
        %v1649 = vmul.f32 %v1643, %v1647
        %1652 = vrot.lane.b32.xlu0 %v1648, 32
        %v1653 = vpop.permute.xlu0 %1652
        %1654 = vrot.lane.b32.xlu0 %v1649, 32
        %v1655 = vpop.permute.xlu0 %1654
        %vm1658 = vcmask 523520
        %1659 = vst.msk [vmem:[#allocation2] sm:$0xff] %vm1658, %v1653
        %1660 = vst.msk [vmem:[#allocation2 + $0x8] sm:$0xff] %vm1658, %v1655
        %1661 = vrot.lane.b32.xlu0 %v1405, 64
        %v1662 = vpop.permute.xlu0 %1661
        %1663 = vrot.lane.b32.xlu0 %v1406, 64
        %v1664 = vpop.permute.xlu0 %1663
        %v1666 = vsel %vm1408, %v1662, 0
        %v1669 = vsel %vm1408, %v1664, 0
        %1671 = vmatprep.subr.bf16.mxu0 0
        %1672 = vmatpush1.bf16.xpose.msra.mxu0 %v1669
        %1673 = vmatprep.subr.bf16.mxu0 0
        %1674 = vmatpush1.bf16.xpose.msra.mxu0 0
        %1675 = vmatprep.subr.bf16.mxu0 0
        %1676 = vmatpush1.bf16.xpose.msra.mxu0 0
        %1677 = vmatprep.subr.bf16.mxu0 0
        %1678 = vmatpush1.bf16.xpose.msra.mxu0 0
        %1679 = vmatprep.subr.bf16.mxu0 0
        %1680 = vmatpush1.bf16.xpose.msra.mxu0 0
        %1681 = vmatprep.subr.bf16.mxu0 0
        %1682 = vmatpush1.bf16.xpose.msra.mxu0 0
        %1683 = vmatprep.subr.bf16.mxu0 0
        %1684 = vmatpush1.bf16.xpose.msra.mxu0 0
        %1685 = vmatprep.subr.bf16.mxu0 0
        %1686 = vmatpush1.bf16.xpose.msra.mxu0 0
        %1687 = vmatprep.subr.bf16.mxu0 0
        %1688 = vmatpush1.bf16.xpose.msra.mxu0 0
        %1689 = vmatprep.subr.bf16.mxu0 0
        %1690 = vmatpush1.bf16.xpose.msra.mxu0 0
        %1691 = vmatprep.subr.bf16.mxu0 0
        %1692 = vmatpush1.bf16.xpose.msra.mxu0 0
        %1693 = vmatprep.subr.bf16.mxu0 0
        %1694 = vmatpush1.bf16.xpose.msra.mxu0 0
        %1695 = vmatprep.subr.bf16.mxu0 0
        %1696 = vmatpush1.bf16.xpose.msra.mxu0 0
        %1697 = vmatprep.subr.bf16.mxu0 0
        %1698 = vmatpush1.bf16.xpose.msra.mxu0 0
        %1699 = vmatprep.subr.bf16.mxu0 0
        %1700 = vmatpush1.bf16.xpose.msra.mxu0 0
        %1701 = vmatprep.subr.bf16.mxu0 0
        %1702 = vmatpush1.bf16.xpose.msra.mxu0 0
        %1703 = vmatprep.mubr.bf16.mxu0 0
        %1704 = vmatmul.mubr.bf16.gmra.mrb[0].mxu0 %v1666
        %v1705 = vpop.f32.mrb[0].mxu0
        %v1706 = vadd.f32 %v1100, %v1705
        %v1707 = vpop.f32.mrb[0].mxu0
        %v1708 = vpop.f32.mrb[0].mxu0
        %v1709 = vadd.f32 %v1101, %v1708
        %v1710 = vpop.f32.mrb[0].mxu0
        %1711 = vdwg.mxu0
        %v1712 = vsel %vm1456, %v1706, -inf
        %1713 = vmax.xlane.f32.xlu0 %v1712
        %v1714 = vpop.xlane.xlu0 %1713
        %v1715 = vsel %vm1456, %v1709, -inf
        %1716 = vmax.xlane.f32.xlu0 %v1715
        %v1717 = vpop.xlane.xlu0 %1716
        %v1718 = vsub.f32 %v1706, %v1714
        %v1719 = vsub.f32 %v1709, %v1717
        %v1720 = vmul.f32 %v1718, 1.442695
        %v1721 = vpow.pop %v1720
        %v1722 = vmul.f32 %v1719, 1.442695
        %v1723 = vpow.pop %v1722
        %v1724 = vsel %vm1456, %v1721, 0.0
        %1725 = vadd.xlane.f32.xlu0 %v1724
        %v1726 = vpop.xlane.xlu0 %1725
        %v1727 = vsel %vm1456, %v1723, 0.0
        %1728 = vadd.xlane.f32.xlu0 %v1727
        %v1729 = vpop.xlane.xlu0 %1728
        %v1730 = vpack.c.bf16 %v1723, %v1721
        %1731 = vrot.lane.b32.xlu0 %v1407, 64
        %v1732 = vpop.permute.xlu0 %1731
        %v1735 = vsel %vm1456, %v1730, 0
        %1737 = vmatprep.subr.bf16.mxu0 0
        %1738 = vmatpush1.bf16.msra.mxu0 %v1732
        %1739 = vmatprep.subr.bf16.mxu0 0
        %1740 = vmatpush1.bf16.msra.mxu0 0
        %1741 = vmatprep.subr.bf16.mxu0 0
        %1742 = vmatpush1.bf16.msra.mxu0 0
        %1743 = vmatprep.subr.bf16.mxu0 0
        %1744 = vmatpush1.bf16.msra.mxu0 0
        %1745 = vmatprep.subr.bf16.mxu0 0
        %1746 = vmatpush1.bf16.msra.mxu0 0
        %1747 = vmatprep.subr.bf16.mxu0 0
        %1748 = vmatpush1.bf16.msra.mxu0 0
        %1749 = vmatprep.subr.bf16.mxu0 0
        %1750 = vmatpush1.bf16.msra.mxu0 0
        %1751 = vmatprep.subr.bf16.mxu0 0
        %1752 = vmatpush1.bf16.msra.mxu0 0
        %1753 = vmatprep.subr.bf16.mxu0 0
        %1754 = vmatpush1.bf16.msra.mxu0 0
        %1755 = vmatprep.subr.bf16.mxu0 0
        %1756 = vmatpush1.bf16.msra.mxu0 0
        %1757 = vmatprep.subr.bf16.mxu0 0
        %1758 = vmatpush1.bf16.msra.mxu0 0
        %1759 = vmatprep.subr.bf16.mxu0 0
        %1760 = vmatpush1.bf16.msra.mxu0 0
        %1761 = vmatprep.subr.bf16.mxu0 0
        %1762 = vmatpush1.bf16.msra.mxu0 0
        %1763 = vmatprep.subr.bf16.mxu0 0
        %1764 = vmatpush1.bf16.msra.mxu0 0
        %1765 = vmatprep.subr.bf16.mxu0 0
        %1766 = vmatpush1.bf16.msra.mxu0 0
        %1767 = vmatprep.subr.bf16.mxu0 0
        %1768 = vmatpush1.bf16.msra.mxu0 0
        %1769 = vmatprep.mubr.bf16.mxu0 0
        %1770 = vmatmul.mubr.bf16.gmra.mrb[0].mxu0 %v1735
        %v1771 = vpop.f32.mrb[0].mxu0
        %v1772 = vadd.f32 0.0, %v1771
        %v1773 = vpop.f32.mrb[0].mxu0
        %v1774 = vpop.f32.mrb[0].mxu0
        %v1775 = vadd.f32 0.0, %v1774
        %v1776 = vpop.f32.mrb[0].mxu0
        %1777 = vdwg.mxu0
        %v1778 = vrcp.pop %v1726
        %v1779 = vrcp.pop %v1729
        %v1780 = vmul.f32 %v1772, %v1778
        %v1781 = vmul.f32 %v1775, %v1779
        %1784 = vrot.lane.b32.xlu0 %v1780, 64
        %v1785 = vpop.permute.xlu0 %1784
        %1786 = vrot.lane.b32.xlu0 %v1781, 64
        %v1787 = vpop.permute.xlu0 %1786
        %vm1790 = vcmask 785920
        %1791 = vst.msk [vmem:[#allocation2] sm:$0xff] %vm1790, %v1785
        %1792 = vst.msk [vmem:[#allocation2 + $0x8] sm:$0xff] %vm1790, %v1787
        %1793 = vrot.lane.b32.xlu0 %v1405, 32
        %v1794 = vpop.permute.xlu0 %1793
        %1795 = vrot.lane.b32.xlu0 %v1406, 32
        %v1796 = vpop.permute.xlu0 %1795
        %v1798 = vsel %vm1408, %v1794, 0
        %v1801 = vsel %vm1408, %v1796, 0
        %1803 = vmatprep.subr.bf16.mxu0 0
        %1804 = vmatpush1.bf16.xpose.msra.mxu0 %v1801
        %1805 = vmatprep.subr.bf16.mxu0 0
        %1806 = vmatpush1.bf16.xpose.msra.mxu0 0
        %1807 = vmatprep.subr.bf16.mxu0 0
        %1808 = vmatpush1.bf16.xpose.msra.mxu0 0
        %1809 = vmatprep.subr.bf16.mxu0 0
        %1810 = vmatpush1.bf16.xpose.msra.mxu0 0
        %1811 = vmatprep.subr.bf16.mxu0 0
        %1812 = vmatpush1.bf16.xpose.msra.mxu0 0
        %1813 = vmatprep.subr.bf16.mxu0 0
        %1814 = vmatpush1.bf16.xpose.msra.mxu0 0
        %1815 = vmatprep.subr.bf16.mxu0 0
        %1816 = vmatpush1.bf16.xpose.msra.mxu0 0
        %1817 = vmatprep.subr.bf16.mxu0 0
        %1818 = vmatpush1.bf16.xpose.msra.mxu0 0
        %1819 = vmatprep.subr.bf16.mxu0 0
        %1820 = vmatpush1.bf16.xpose.msra.mxu0 0
        %1821 = vmatprep.subr.bf16.mxu0 0
        %1822 = vmatpush1.bf16.xpose.msra.mxu0 0
        %1823 = vmatprep.subr.bf16.mxu0 0
        %1824 = vmatpush1.bf16.xpose.msra.mxu0 0
        %1825 = vmatprep.subr.bf16.mxu0 0
        %1826 = vmatpush1.bf16.xpose.msra.mxu0 0
        %1827 = vmatprep.subr.bf16.mxu0 0
        %1828 = vmatpush1.bf16.xpose.msra.mxu0 0
        %1829 = vmatprep.subr.bf16.mxu0 0
        %1830 = vmatpush1.bf16.xpose.msra.mxu0 0
        %1831 = vmatprep.subr.bf16.mxu0 0
        %1832 = vmatpush1.bf16.xpose.msra.mxu0 0
        %1833 = vmatprep.subr.bf16.mxu0 0
        %1834 = vmatpush1.bf16.xpose.msra.mxu0 0
        %1835 = vmatprep.mubr.bf16.mxu0 0
        %1836 = vmatmul.mubr.bf16.gmra.mrb[0].mxu0 %v1798
        %v1837 = vpop.f32.mrb[0].mxu0
        %v1838 = vadd.f32 %v1100, %v1837
        %v1839 = vpop.f32.mrb[0].mxu0
        %v1840 = vpop.f32.mrb[0].mxu0
        %v1841 = vadd.f32 %v1101, %v1840
        %v1842 = vpop.f32.mrb[0].mxu0
        %1843 = vdwg.mxu0
        %v1844 = vsel %vm1456, %v1838, -inf
        %1845 = vmax.xlane.f32.xlu0 %v1844
        %v1846 = vpop.xlane.xlu0 %1845
        %v1847 = vsel %vm1456, %v1841, -inf
        %1848 = vmax.xlane.f32.xlu0 %v1847
        %v1849 = vpop.xlane.xlu0 %1848
        %v1850 = vsub.f32 %v1838, %v1846
        %v1851 = vsub.f32 %v1841, %v1849
        %v1852 = vmul.f32 %v1850, 1.442695
        %v1853 = vpow.pop %v1852
        %v1854 = vmul.f32 %v1851, 1.442695
        %v1855 = vpow.pop %v1854
        %v1856 = vsel %vm1456, %v1853, 0.0
        %1857 = vadd.xlane.f32.xlu0 %v1856
        %v1858 = vpop.xlane.xlu0 %1857
        %v1859 = vsel %vm1456, %v1855, 0.0
        %1860 = vadd.xlane.f32.xlu0 %v1859
        %v1861 = vpop.xlane.xlu0 %1860
        %v1862 = vpack.c.bf16 %v1855, %v1853
        %1863 = vrot.lane.b32.xlu0 %v1407, 32
        %v1864 = vpop.permute.xlu0 %1863
        %v1867 = vsel %vm1456, %v1862, 0
        %1869 = vmatprep.subr.bf16.mxu0 0
        %1870 = vmatpush1.bf16.msra.mxu0 %v1864
        %1871 = vmatprep.subr.bf16.mxu0 0
        %1872 = vmatpush1.bf16.msra.mxu0 0
        %1873 = vmatprep.subr.bf16.mxu0 0
        %1874 = vmatpush1.bf16.msra.mxu0 0
        %1875 = vmatprep.subr.bf16.mxu0 0
        %1876 = vmatpush1.bf16.msra.mxu0 0
        %1877 = vmatprep.subr.bf16.mxu0 0
        %1878 = vmatpush1.bf16.msra.mxu0 0
        %1879 = vmatprep.subr.bf16.mxu0 0
        %1880 = vmatpush1.bf16.msra.mxu0 0
        %1881 = vmatprep.subr.bf16.mxu0 0
        %1882 = vmatpush1.bf16.msra.mxu0 0
        %1883 = vmatprep.subr.bf16.mxu0 0
        %1884 = vmatpush1.bf16.msra.mxu0 0
        %1885 = vmatprep.subr.bf16.mxu0 0
        %1886 = vmatpush1.bf16.msra.mxu0 0
        %1887 = vmatprep.subr.bf16.mxu0 0
        %1888 = vmatpush1.bf16.msra.mxu0 0
        %1889 = vmatprep.subr.bf16.mxu0 0
        %1890 = vmatpush1.bf16.msra.mxu0 0
        %1891 = vmatprep.subr.bf16.mxu0 0
        %1892 = vmatpush1.bf16.msra.mxu0 0
        %1893 = vmatprep.subr.bf16.mxu0 0
        %1894 = vmatpush1.bf16.msra.mxu0 0
        %1895 = vmatprep.subr.bf16.mxu0 0
        %1896 = vmatpush1.bf16.msra.mxu0 0
        %1897 = vmatprep.subr.bf16.mxu0 0
        %1898 = vmatpush1.bf16.msra.mxu0 0
        %1899 = vmatprep.subr.bf16.mxu0 0
        %1900 = vmatpush1.bf16.msra.mxu0 0
        %1901 = vmatprep.mubr.bf16.mxu0 0
        %1902 = vmatmul.mubr.bf16.gmra.mrb[0].mxu0 %v1867
        %v1903 = vpop.f32.mrb[0].mxu0
        %v1904 = vadd.f32 0.0, %v1903
        %v1905 = vpop.f32.mrb[0].mxu0
        %v1906 = vpop.f32.mrb[0].mxu0
        %v1907 = vadd.f32 0.0, %v1906
        %v1908 = vpop.f32.mrb[0].mxu0
        %1909 = vdwg.mxu0
        %v1910 = vrcp.pop %v1858
        %v1911 = vrcp.pop %v1861
        %v1912 = vmul.f32 %v1904, %v1910
        %v1913 = vmul.f32 %v1907, %v1911
        %1916 = vrot.lane.b32.xlu0 %v1912, 96
        %v1917 = vpop.permute.xlu0 %1916
        %1918 = vrot.lane.b32.xlu0 %v1913, 96
        %v1919 = vpop.permute.xlu0 %1918
        %vm1922 = vcmask 1048320
        %1923 = vst.msk [vmem:[#allocation2] sm:$0xff] %vm1922, %v1917
        %1924 = vst.msk [vmem:[#allocation2 + $0x8] sm:$0xff] %vm1922, %v1919
        %v1925 = vld [vmem:[#allocation2] sm:$0xff]
        %v1926 = vld [vmem:[#allocation2 + $0x8] sm:$0xff]
        %v1927 = vld [vmem:[#allocation15] sm:$0xf]
        %v1928 = vld [vmem:[#allocation15 + $0x4] sm:$0xf]
        %v1929 = vld [vmem:[#allocation15 + $0x8] sm:$0xf]
        %v1930 = vld [vmem:[#allocation15 + $0xc] sm:$0xf]
        %v1931 = vld [vmem:[#allocation15 + $0x10] sm:$0xf]
        %v1932 = vld [vmem:[#allocation15 + $0x14] sm:$0xf]
        %v1933 = vld [vmem:[#allocation15 + $0x18] sm:$0xf]
        %v1934 = vld [vmem:[#allocation15 + $0x1c] sm:$0xf]
        %v1935 = vld [vmem:[#allocation15 + $0x20] sm:$0xf]
        %v1936 = vld [vmem:[#allocation15 + $0x24] sm:$0xf]
        %v1937 = vld [vmem:[#allocation15 + $0x28] sm:$0xf]
        %v1938 = vld [vmem:[#allocation15 + $0x2c] sm:$0xf]
        %v1939 = vld [vmem:[#allocation15 + $0x30] sm:$0xf]
        %v1940 = vld [vmem:[#allocation15 + $0x34] sm:$0xf]
        %v1941 = vld [vmem:[#allocation15 + $0x38] sm:$0xf]
        %v1942 = vld [vmem:[#allocation15 + $0x3c] sm:$0xf]
        %v1943 = vpack.c.bf16 %v1926, %v1925
        %v1944 = vld [vmem:[#allocation17] sm:$0x1]
        %v1946 = vlaneseq
        %v1947 = vshrl.u32 %v1946, 7
        %v1948 = vsub.s32 0, %v1947
        %v1949 = vrot.slane %v1944, %v1948
        %v1967 = vunpack.c.l.b16 %v1927
        %v1968 = vunpack.c.l.b16 %v1928
        %v1969 = vunpack.c.l.b16 %v1929
        %v1970 = vunpack.c.l.b16 %v1930
        %v1971 = vunpack.c.l.b16 %v1931
        %v1972 = vunpack.c.l.b16 %v1932
        %v1973 = vunpack.c.l.b16 %v1933
        %v1974 = vunpack.c.l.b16 %v1934
        %v1975 = vunpack.c.l.b16 %v1935
        %v1976 = vunpack.c.l.b16 %v1936
        %v1977 = vunpack.c.l.b16 %v1937
        %v1978 = vunpack.c.l.b16 %v1938
        %v1979 = vunpack.c.l.b16 %v1939
        %v1980 = vunpack.c.l.b16 %v1940
        %v1981 = vunpack.c.l.b16 %v1941
        %v1982 = vunpack.c.l.b16 %v1942
        %v1983 = vpack.c.b16 %v1968, %v1967
        %v1984 = vpack.c.b16 %v1970, %v1969
        %v1985 = vpack.c.b16 %v1972, %v1971
        %v1986 = vpack.c.b16 %v1974, %v1973
        %v1987 = vpack.c.b16 %v1976, %v1975
        %v1988 = vpack.c.b16 %v1978, %v1977
        %v1989 = vpack.c.b16 %v1980, %v1979
        %v1990 = vpack.c.b16 %v1982, %v1981
        %1999 = vmatprep.subr.bf16.mxu0 0
        %2000 = vmatpush1.bf16.msra.mxu0 %v1983
        %2001 = vmatprep.subr.bf16.mxu0 0
        %2002 = vmatpush1.bf16.msra.mxu0 %v1984
        %2003 = vmatprep.subr.bf16.mxu0 0
        %2004 = vmatpush1.bf16.msra.mxu0 %v1985
        %2005 = vmatprep.subr.bf16.mxu0 0
        %2006 = vmatpush1.bf16.msra.mxu0 %v1986
        %2007 = vmatprep.subr.bf16.mxu0 0
        %2008 = vmatpush1.bf16.msra.mxu0 %v1987
        %2009 = vmatprep.subr.bf16.mxu0 0
        %2010 = vmatpush1.bf16.msra.mxu0 %v1988
        %2011 = vmatprep.subr.bf16.mxu0 0
        %2012 = vmatpush1.bf16.msra.mxu0 %v1989
        %2013 = vmatprep.subr.bf16.mxu0 0
        %2014 = vmatpush1.bf16.msra.mxu0 %v1990
        %2015 = vmatprep.subr.bf16.mxu0 0
        %2016 = vmatpush1.bf16.msra.mxu0 0
        %2017 = vmatprep.subr.bf16.mxu0 0
        %2018 = vmatpush1.bf16.msra.mxu0 0
        %2019 = vmatprep.subr.bf16.mxu0 0
        %2020 = vmatpush1.bf16.msra.mxu0 0
        %2021 = vmatprep.subr.bf16.mxu0 0
        %2022 = vmatpush1.bf16.msra.mxu0 0
        %2023 = vmatprep.subr.bf16.mxu0 0
        %2024 = vmatpush1.bf16.msra.mxu0 0
        %2025 = vmatprep.subr.bf16.mxu0 0
        %2026 = vmatpush1.bf16.msra.mxu0 0
        %2027 = vmatprep.subr.bf16.mxu0 0
        %2028 = vmatpush1.bf16.msra.mxu0 0
        %2029 = vmatprep.subr.bf16.mxu0 0
        %2030 = vmatpush1.bf16.msra.mxu0 0
        %2031 = vmatprep.mubr.bf16.mxu0 0
        %2032 = vmatmul.mubr.bf16.gmra.mrb[0].mxu0 %v1943
        %v2033 = vpop.f32.mrb[0].mxu0
        %v2034 = vadd.f32 %v1949, %v2033
        %v2035 = vpop.f32.mrb[0].mxu0
        %v2036 = vpop.f32.mrb[0].mxu0
        %v2037 = vadd.f32 %v1949, %v2036
        %v2038 = vpop.f32.mrb[0].mxu0
        %2039 = vdwg.mxu0
        %v2040 = vadd.f32 %v1085, %v2034
        %v2041 = vadd.f32 %v1086, %v2037
        %v2042 = vld [vmem:[#allocation18] sm:$0x1]
        %v2043 = vld [vmem:[#allocation20] sm:$0x1]
        %2044 = vadd.xlane.f32.xlu0 %v2040
        %v2045 = vpop.xlane.xlu0 %2044
        %2046 = vadd.xlane.f32.xlu0 %v2041
        %v2047 = vpop.xlane.xlu0 %2046
        %v2048 = vmul.f32 %v2045, %v1108
        %v2049 = vmul.f32 %v2047, %v1108
        %v2050 = vsub.f32 %v2040, %v2048
        %v2051 = vsub.f32 %v2041, %v2049
        %v2052 = vmul.f32 %v2050, %v2050
        %v2053 = vmul.f32 %v2051, %v2051
        %2054 = vadd.xlane.f32.xlu0 %v2052
        %v2055 = vpop.xlane.xlu0 %2054
        %2056 = vadd.xlane.f32.xlu0 %v2053
        %v2057 = vpop.xlane.xlu0 %2056
        %v2058 = vmul.f32 %v2055, %v1108
        %v2059 = vmul.f32 %v2057, %v1108
        %v2060 = vadd.f32 %v2058, 1e-05
        %v2061 = vadd.f32 %v2059, 1e-05
        %v2062 = vrsqrt.pop %v2060
        %v2063 = vrsqrt.pop %v2061
        %v2064 = vmul.f32 %v2050, %v2062
        %v2065 = vmul.f32 %v2051, %v2063
        %v2067 = vlaneseq
        %v2068 = vshrl.u32 %v2067, 7
        %v2069 = vsub.s32 0, %v2068
        %v2070 = vrot.slane %v2042, %v2069
        %v2072 = vmul.f32 %v2064, %v2070
        %v2073 = vmul.f32 %v2065, %v2070
        %v2075 = vlaneseq
        %v2076 = vshrl.u32 %v2075, 7
        %v2077 = vsub.s32 0, %v2076
        %v2078 = vrot.slane %v2043, %v2077
        %v2080 = vadd.f32 %v2072, %v2078
        %v2081 = vadd.f32 %v2073, %v2078
        %v2082 = vld [vmem:[#allocation21] sm:$0xff]
        %v2083 = vld [vmem:[#allocation21 + $0x8] sm:$0xff]
        %v2084 = vld [vmem:[#allocation21 + $0x10] sm:$0xff]
        %v2085 = vld [vmem:[#allocation21 + $0x18] sm:$0xff]
        %v2086 = vld [vmem:[#allocation21 + $0x20] sm:$0xff]
        %v2087 = vld [vmem:[#allocation21 + $0x28] sm:$0xff]
        %v2088 = vld [vmem:[#allocation21 + $0x30] sm:$0xff]
        %v2089 = vld [vmem:[#allocation21 + $0x38] sm:$0xff]
        %v2090 = vld [vmem:[#allocation21 + $0x40] sm:$0xff]
        %v2091 = vld [vmem:[#allocation21 + $0x48] sm:$0xff]
        %v2092 = vld [vmem:[#allocation21 + $0x50] sm:$0xff]
        %v2093 = vld [vmem:[#allocation21 + $0x58] sm:$0xff]
        %v2094 = vld [vmem:[#allocation21 + $0x60] sm:$0xff]
        %v2095 = vld [vmem:[#allocation21 + $0x68] sm:$0xff]
        %v2096 = vld [vmem:[#allocation21 + $0x70] sm:$0xff]
        %v2097 = vld [vmem:[#allocation21 + $0x78] sm:$0xff]
        %v2098 = vld [vmem:[#allocation21 + $0x80] sm:$0xff]
        %v2099 = vld [vmem:[#allocation21 + $0x88] sm:$0xff]
        %v2100 = vld [vmem:[#allocation21 + $0x90] sm:$0xff]
        %v2101 = vld [vmem:[#allocation21 + $0x98] sm:$0xff]
        %v2102 = vld [vmem:[#allocation21 + $0xa0] sm:$0xff]
        %v2103 = vld [vmem:[#allocation21 + $0xa8] sm:$0xff]
        %v2104 = vld [vmem:[#allocation21 + $0xb0] sm:$0xff]
        %v2105 = vld [vmem:[#allocation21 + $0xb8] sm:$0xff]
        %v2106 = vld [vmem:[#allocation21 + $0xc0] sm:$0xff]
        %v2107 = vld [vmem:[#allocation21 + $0xc8] sm:$0xff]
        %v2108 = vld [vmem:[#allocation21 + $0xd0] sm:$0xff]
        %v2109 = vld [vmem:[#allocation21 + $0xd8] sm:$0xff]
        %v2110 = vld [vmem:[#allocation21 + $0xe0] sm:$0xff]
        %v2111 = vld [vmem:[#allocation21 + $0xe8] sm:$0xff]
        %v2112 = vld [vmem:[#allocation21 + $0xf0] sm:$0xff]
        %v2113 = vld [vmem:[#allocation21 + $0xf8] sm:$0xff]
        %v2114 = vpack.c.bf16 %v2081, %v2080
        %v2115 = vld [vmem:[#allocation23] sm:$0xf]
        %v2117 = vlaneseq
        %v2118 = vshrl.u32 %v2117, 7
        %v2119 = vsub.s32 0, %v2118
        %v2120 = vrot.slane %v2115, %v2119
        %v2121 = vlaneseq
        %v2122 = vshrl.u32 %v2121, 7
        %v2123 = vsub.s32 1, %v2122
        %v2124 = vrot.slane %v2115, %v2123
        %v2125 = vlaneseq
        %v2126 = vshrl.u32 %v2125, 7
        %v2127 = vsub.s32 2, %v2126
        %v2128 = vrot.slane %v2115, %v2127
        %v2129 = vlaneseq
        %v2130 = vshrl.u32 %v2129, 7
        %v2131 = vsub.s32 3, %v2130
        %v2132 = vrot.slane %v2115, %v2131
        %v2169 = vunpack.c.l.b16 %v2082
        %v2170 = vunpack.c.h.b16 %v2082
        %v2171 = vunpack.c.l.b16 %v2083
        %v2172 = vunpack.c.h.b16 %v2083
        %v2173 = vunpack.c.l.b16 %v2084
        %v2174 = vunpack.c.h.b16 %v2084
        %v2175 = vunpack.c.l.b16 %v2085
        %v2176 = vunpack.c.h.b16 %v2085
        %v2177 = vunpack.c.l.b16 %v2086
        %v2178 = vunpack.c.h.b16 %v2086
        %v2179 = vunpack.c.l.b16 %v2087
        %v2180 = vunpack.c.h.b16 %v2087
        %v2181 = vunpack.c.l.b16 %v2088
        %v2182 = vunpack.c.h.b16 %v2088
        %v2183 = vunpack.c.l.b16 %v2089
        %v2184 = vunpack.c.h.b16 %v2089
        %v2185 = vunpack.c.l.b16 %v2090
        %v2186 = vunpack.c.h.b16 %v2090
        %v2187 = vunpack.c.l.b16 %v2091
        %v2188 = vunpack.c.h.b16 %v2091
        %v2189 = vunpack.c.l.b16 %v2092
        %v2190 = vunpack.c.h.b16 %v2092
        %v2191 = vunpack.c.l.b16 %v2093
        %v2192 = vunpack.c.h.b16 %v2093
        %v2193 = vunpack.c.l.b16 %v2094
        %v2194 = vunpack.c.h.b16 %v2094
        %v2195 = vunpack.c.l.b16 %v2095
        %v2196 = vunpack.c.h.b16 %v2095
        %v2197 = vunpack.c.l.b16 %v2096
        %v2198 = vunpack.c.h.b16 %v2096
        %v2199 = vunpack.c.l.b16 %v2097
        %v2200 = vunpack.c.h.b16 %v2097
        %v2201 = vunpack.c.l.b16 %v2098
        %v2202 = vunpack.c.h.b16 %v2098
        %v2203 = vunpack.c.l.b16 %v2099
        %v2204 = vunpack.c.h.b16 %v2099
        %v2205 = vunpack.c.l.b16 %v2100
        %v2206 = vunpack.c.h.b16 %v2100
        %v2207 = vunpack.c.l.b16 %v2101
        %v2208 = vunpack.c.h.b16 %v2101
        %v2209 = vunpack.c.l.b16 %v2102
        %v2210 = vunpack.c.h.b16 %v2102
        %v2211 = vunpack.c.l.b16 %v2103
        %v2212 = vunpack.c.h.b16 %v2103
        %v2213 = vunpack.c.l.b16 %v2104
        %v2214 = vunpack.c.h.b16 %v2104
        %v2215 = vunpack.c.l.b16 %v2105
        %v2216 = vunpack.c.h.b16 %v2105
        %v2217 = vunpack.c.l.b16 %v2106
        %v2218 = vunpack.c.h.b16 %v2106
        %v2219 = vunpack.c.l.b16 %v2107
        %v2220 = vunpack.c.h.b16 %v2107
        %v2221 = vunpack.c.l.b16 %v2108
        %v2222 = vunpack.c.h.b16 %v2108
        %v2223 = vunpack.c.l.b16 %v2109
        %v2224 = vunpack.c.h.b16 %v2109
        %v2225 = vunpack.c.l.b16 %v2110
        %v2226 = vunpack.c.h.b16 %v2110
        %v2227 = vunpack.c.l.b16 %v2111
        %v2228 = vunpack.c.h.b16 %v2111
        %v2229 = vunpack.c.l.b16 %v2112
        %v2230 = vunpack.c.h.b16 %v2112
        %v2231 = vunpack.c.l.b16 %v2113
        %v2232 = vunpack.c.h.b16 %v2113
        %v2233 = vpack.c.b16 %v2173, %v2169
        %v2234 = vpack.c.b16 %v2174, %v2170
        %v2235 = vpack.c.b16 %v2175, %v2171
        %v2236 = vpack.c.b16 %v2176, %v2172
        %v2237 = vpack.c.b16 %v2181, %v2177
        %v2238 = vpack.c.b16 %v2182, %v2178
        %v2239 = vpack.c.b16 %v2183, %v2179
        %v2240 = vpack.c.b16 %v2184, %v2180
        %v2241 = vpack.c.b16 %v2189, %v2185
        %v2242 = vpack.c.b16 %v2190, %v2186
        %v2243 = vpack.c.b16 %v2191, %v2187
        %v2244 = vpack.c.b16 %v2192, %v2188
        %v2245 = vpack.c.b16 %v2197, %v2193
        %v2246 = vpack.c.b16 %v2198, %v2194
        %v2247 = vpack.c.b16 %v2199, %v2195
        %v2248 = vpack.c.b16 %v2200, %v2196
        %v2249 = vpack.c.b16 %v2205, %v2201
        %v2250 = vpack.c.b16 %v2206, %v2202
        %v2251 = vpack.c.b16 %v2207, %v2203
        %v2252 = vpack.c.b16 %v2208, %v2204
        %v2253 = vpack.c.b16 %v2213, %v2209
        %v2254 = vpack.c.b16 %v2214, %v2210
        %v2255 = vpack.c.b16 %v2215, %v2211
        %v2256 = vpack.c.b16 %v2216, %v2212
        %v2257 = vpack.c.b16 %v2221, %v2217
        %v2258 = vpack.c.b16 %v2222, %v2218
        %v2259 = vpack.c.b16 %v2223, %v2219
        %v2260 = vpack.c.b16 %v2224, %v2220
        %v2261 = vpack.c.b16 %v2229, %v2225
        %v2262 = vpack.c.b16 %v2230, %v2226
        %v2263 = vpack.c.b16 %v2231, %v2227
        %v2264 = vpack.c.b16 %v2232, %v2228
        %2297 = vmatprep.subr.bf16.mxu0 %v2234
        %2298 = vmatpush1.bf16.msra.mxu0 %v2233
        %2299 = vmatprep.subr.bf16.mxu0 %v2238
        %2300 = vmatpush1.bf16.msra.mxu0 %v2237
        %2301 = vmatprep.subr.bf16.mxu0 %v2242
        %2302 = vmatpush1.bf16.msra.mxu0 %v2241
        %2303 = vmatprep.subr.bf16.mxu0 %v2246
        %2304 = vmatpush1.bf16.msra.mxu0 %v2245
        %2305 = vmatprep.subr.bf16.mxu0 %v2250
        %2306 = vmatpush1.bf16.msra.mxu0 %v2249
        %2307 = vmatprep.subr.bf16.mxu0 %v2254
        %2308 = vmatpush1.bf16.msra.mxu0 %v2253
        %2309 = vmatprep.subr.bf16.mxu0 %v2258
        %2310 = vmatpush1.bf16.msra.mxu0 %v2257
        %2311 = vmatprep.subr.bf16.mxu0 %v2262
        %2312 = vmatpush1.bf16.msra.mxu0 %v2261
        %2313 = vmatprep.subr.bf16.mxu0 0
        %2314 = vmatpush1.bf16.msra.mxu0 0
        %2315 = vmatprep.subr.bf16.mxu0 0
        %2316 = vmatpush1.bf16.msra.mxu0 0
        %2317 = vmatprep.subr.bf16.mxu0 0
        %2318 = vmatpush1.bf16.msra.mxu0 0
        %2319 = vmatprep.subr.bf16.mxu0 0
        %2320 = vmatpush1.bf16.msra.mxu0 0
        %2321 = vmatprep.subr.bf16.mxu0 0
        %2322 = vmatpush1.bf16.msra.mxu0 0
        %2323 = vmatprep.subr.bf16.mxu0 0
        %2324 = vmatpush1.bf16.msra.mxu0 0
        %2325 = vmatprep.subr.bf16.mxu0 0
        %2326 = vmatpush1.bf16.msra.mxu0 0
        %2327 = vmatprep.subr.bf16.mxu0 0
        %2328 = vmatpush1.bf16.msra.mxu0 0
        %2329 = vmatprep.mubr.bf16.mxu0 0
        %2330 = vmatmul.mubr.bf16.gmra.mrb[0].mxu0 %v2114
        %v2331 = vpop.f32.mrb[0].mxu0
        %v2332 = vadd.f32 %v2120, %v2331
        %v2333 = vpop.f32.mrb[0].mxu0
        %v2334 = vadd.f32 %v2124, %v2333
        %v2335 = vpop.f32.mrb[0].mxu0
        %v2336 = vadd.f32 %v2120, %v2335
        %v2337 = vpop.f32.mrb[0].mxu0
        %v2338 = vadd.f32 %v2124, %v2337
        %2339 = vdwg.mxu0
        %2340 = vmatprep.subr.bf16.mxu0 %v2236
        %2341 = vmatpush1.bf16.msra.mxu0 %v2235
        %2342 = vmatprep.subr.bf16.mxu0 %v2240
        %2343 = vmatpush1.bf16.msra.mxu0 %v2239
        %2344 = vmatprep.subr.bf16.mxu0 %v2244
        %2345 = vmatpush1.bf16.msra.mxu0 %v2243
        %2346 = vmatprep.subr.bf16.mxu0 %v2248
        %2347 = vmatpush1.bf16.msra.mxu0 %v2247
        %2348 = vmatprep.subr.bf16.mxu0 %v2252
        %2349 = vmatpush1.bf16.msra.mxu0 %v2251
        %2350 = vmatprep.subr.bf16.mxu0 %v2256
        %2351 = vmatpush1.bf16.msra.mxu0 %v2255
        %2352 = vmatprep.subr.bf16.mxu0 %v2260
        %2353 = vmatpush1.bf16.msra.mxu0 %v2259
        %2354 = vmatprep.subr.bf16.mxu0 %v2264
        %2355 = vmatpush1.bf16.msra.mxu0 %v2263
        %2356 = vmatprep.subr.bf16.mxu0 0
        %2357 = vmatpush1.bf16.msra.mxu0 0
        %2358 = vmatprep.subr.bf16.mxu0 0
        %2359 = vmatpush1.bf16.msra.mxu0 0
        %2360 = vmatprep.subr.bf16.mxu0 0
        %2361 = vmatpush1.bf16.msra.mxu0 0
        %2362 = vmatprep.subr.bf16.mxu0 0
        %2363 = vmatpush1.bf16.msra.mxu0 0
        %2364 = vmatprep.subr.bf16.mxu0 0
        %2365 = vmatpush1.bf16.msra.mxu0 0
        %2366 = vmatprep.subr.bf16.mxu0 0
        %2367 = vmatpush1.bf16.msra.mxu0 0
        %2368 = vmatprep.subr.bf16.mxu0 0
        %2369 = vmatpush1.bf16.msra.mxu0 0
        %2370 = vmatprep.subr.bf16.mxu0 0
        %2371 = vmatpush1.bf16.msra.mxu0 0
        %2372 = vmatprep.mubr.bf16.mxu0 0
        %2373 = vmatmul.mubr.bf16.gmra.mrb[0].mxu0 %v2114
        %v2374 = vpop.f32.mrb[0].mxu0
        %v2375 = vadd.f32 %v2128, %v2374
        %v2376 = vpop.f32.mrb[0].mxu0
        %v2377 = vadd.f32 %v2132, %v2376
        %v2378 = vpop.f32.mrb[0].mxu0
        %v2379 = vadd.f32 %v2128, %v2378
        %v2380 = vpop.f32.mrb[0].mxu0
        %v2381 = vadd.f32 %v2132, %v2380
        %2382 = vdwg.mxu0
        %v2383 = vmul.f32 %v2332, %v2332
        %v2384 = vmul.f32 %v2334, %v2334
        %v2385 = vmul.f32 %v2375, %v2375
        %v2386 = vmul.f32 %v2377, %v2377
        %v2387 = vmul.f32 %v2336, %v2336
        %v2388 = vmul.f32 %v2338, %v2338
        %v2389 = vmul.f32 %v2379, %v2379
        %v2390 = vmul.f32 %v2381, %v2381
        %v2391 = vmul.f32 %v2332, %v2383
        %v2392 = vmul.f32 %v2334, %v2384
        %v2393 = vmul.f32 %v2375, %v2385
        %v2394 = vmul.f32 %v2377, %v2386
        %v2395 = vmul.f32 %v2336, %v2387
        %v2396 = vmul.f32 %v2338, %v2388
        %v2397 = vmul.f32 %v2379, %v2389
        %v2398 = vmul.f32 %v2381, %v2390
        %v2399 = vmul.f32 %v2391, 0.044715
        %v2400 = vmul.f32 %v2392, 0.044715
        %v2401 = vmul.f32 %v2393, 0.044715
        %v2402 = vmul.f32 %v2394, 0.044715
        %v2403 = vmul.f32 %v2395, 0.044715
        %v2404 = vmul.f32 %v2396, 0.044715
        %v2405 = vmul.f32 %v2397, 0.044715
        %v2406 = vmul.f32 %v2398, 0.044715
        %v2407 = vadd.f32 %v2332, %v2399
        %v2408 = vadd.f32 %v2334, %v2400
        %v2409 = vadd.f32 %v2375, %v2401
        %v2410 = vadd.f32 %v2377, %v2402
        %v2411 = vadd.f32 %v2336, %v2403
        %v2412 = vadd.f32 %v2338, %v2404
        %v2413 = vadd.f32 %v2379, %v2405
        %v2414 = vadd.f32 %v2381, %v2406
        %v2415 = vmul.f32 %v2407, 0.7978846
        %v2416 = vmul.f32 %v2408, 0.7978846
        %v2417 = vmul.f32 %v2409, 0.7978846
        %v2418 = vmul.f32 %v2410, 0.7978846
        %v2419 = vmul.f32 %v2411, 0.7978846
        %v2420 = vmul.f32 %v2412, 0.7978846
        %v2421 = vmul.f32 %v2413, 0.7978846
        %v2422 = vmul.f32 %v2414, 0.7978846
        %v2423 = vtanh.pop %v2415
        %v2424 = vtanh.pop %v2416
        %v2425 = vtanh.pop %v2417
        %v2426 = vtanh.pop %v2418
        %v2427 = vtanh.pop %v2419
        %v2428 = vtanh.pop %v2420
        %v2429 = vtanh.pop %v2421
        %v2430 = vtanh.pop %v2422
        %v2431 = vadd.f32 %v2423, 1.0
        %v2432 = vadd.f32 %v2424, 1.0
        %v2433 = vadd.f32 %v2425, 1.0
        %v2434 = vadd.f32 %v2426, 1.0
        %v2435 = vadd.f32 %v2427, 1.0
        %v2436 = vadd.f32 %v2428, 1.0
        %v2437 = vadd.f32 %v2429, 1.0
        %v2438 = vadd.f32 %v2430, 1.0
        %v2439 = vmul.f32 %v2431, 0.5
        %v2440 = vmul.f32 %v2432, 0.5
        %v2441 = vmul.f32 %v2433, 0.5
        %v2442 = vmul.f32 %v2434, 0.5
        %v2443 = vmul.f32 %v2435, 0.5
        %v2444 = vmul.f32 %v2436, 0.5
        %v2445 = vmul.f32 %v2437, 0.5
        %v2446 = vmul.f32 %v2438, 0.5
        %v2447 = vmul.f32 %v2332, %v2439
        %v2448 = vmul.f32 %v2334, %v2440
        %v2449 = vmul.f32 %v2375, %v2441
        %v2450 = vmul.f32 %v2377, %v2442
        %v2451 = vmul.f32 %v2336, %v2443
        %v2452 = vmul.f32 %v2338, %v2444
        %v2453 = vmul.f32 %v2379, %v2445
        %v2454 = vmul.f32 %v2381, %v2446
        %v2455 = vld [vmem:[#allocation24] sm:$0xf]
        %v2456 = vld [vmem:[#allocation24 + $0x4] sm:$0xf]
        %v2457 = vld [vmem:[#allocation24 + $0x8] sm:$0xf]
        %v2458 = vld [vmem:[#allocation24 + $0xc] sm:$0xf]
        %v2459 = vld [vmem:[#allocation24 + $0x10] sm:$0xf]
        %v2460 = vld [vmem:[#allocation24 + $0x14] sm:$0xf]
        %v2461 = vld [vmem:[#allocation24 + $0x18] sm:$0xf]
        %v2462 = vld [vmem:[#allocation24 + $0x1c] sm:$0xf]
        %v2463 = vld [vmem:[#allocation24 + $0x20] sm:$0xf]
        %v2464 = vld [vmem:[#allocation24 + $0x24] sm:$0xf]
        %v2465 = vld [vmem:[#allocation24 + $0x28] sm:$0xf]
        %v2466 = vld [vmem:[#allocation24 + $0x2c] sm:$0xf]
        %v2467 = vld [vmem:[#allocation24 + $0x30] sm:$0xf]
        %v2468 = vld [vmem:[#allocation24 + $0x34] sm:$0xf]
        %v2469 = vld [vmem:[#allocation24 + $0x38] sm:$0xf]
        %v2470 = vld [vmem:[#allocation24 + $0x3c] sm:$0xf]
        %v2471 = vld [vmem:[#allocation24 + $0x40] sm:$0xf]
        %v2472 = vld [vmem:[#allocation24 + $0x44] sm:$0xf]
        %v2473 = vld [vmem:[#allocation24 + $0x48] sm:$0xf]
        %v2474 = vld [vmem:[#allocation24 + $0x4c] sm:$0xf]
        %v2475 = vld [vmem:[#allocation24 + $0x50] sm:$0xf]
        %v2476 = vld [vmem:[#allocation24 + $0x54] sm:$0xf]
        %v2477 = vld [vmem:[#allocation24 + $0x58] sm:$0xf]
        %v2478 = vld [vmem:[#allocation24 + $0x5c] sm:$0xf]
        %v2479 = vld [vmem:[#allocation24 + $0x60] sm:$0xf]
        %v2480 = vld [vmem:[#allocation24 + $0x64] sm:$0xf]
        %v2481 = vld [vmem:[#allocation24 + $0x68] sm:$0xf]
        %v2482 = vld [vmem:[#allocation24 + $0x6c] sm:$0xf]
        %v2483 = vld [vmem:[#allocation24 + $0x70] sm:$0xf]
        %v2484 = vld [vmem:[#allocation24 + $0x74] sm:$0xf]
        %v2485 = vld [vmem:[#allocation24 + $0x78] sm:$0xf]
        %v2486 = vld [vmem:[#allocation24 + $0x7c] sm:$0xf]
        %v2487 = vld [vmem:[#allocation24 + $0x80] sm:$0xf]
        %v2488 = vld [vmem:[#allocation24 + $0x84] sm:$0xf]
        %v2489 = vld [vmem:[#allocation24 + $0x88] sm:$0xf]
        %v2490 = vld [vmem:[#allocation24 + $0x8c] sm:$0xf]
        %v2491 = vld [vmem:[#allocation24 + $0x90] sm:$0xf]
        %v2492 = vld [vmem:[#allocation24 + $0x94] sm:$0xf]
        %v2493 = vld [vmem:[#allocation24 + $0x98] sm:$0xf]
        %v2494 = vld [vmem:[#allocation24 + $0x9c] sm:$0xf]
        %v2495 = vld [vmem:[#allocation24 + $0xa0] sm:$0xf]
        %v2496 = vld [vmem:[#allocation24 + $0xa4] sm:$0xf]
        %v2497 = vld [vmem:[#allocation24 + $0xa8] sm:$0xf]
        %v2498 = vld [vmem:[#allocation24 + $0xac] sm:$0xf]
        %v2499 = vld [vmem:[#allocation24 + $0xb0] sm:$0xf]
        %v2500 = vld [vmem:[#allocation24 + $0xb4] sm:$0xf]
        %v2501 = vld [vmem:[#allocation24 + $0xb8] sm:$0xf]
        %v2502 = vld [vmem:[#allocation24 + $0xbc] sm:$0xf]
        %v2503 = vld [vmem:[#allocation24 + $0xc0] sm:$0xf]
        %v2504 = vld [vmem:[#allocation24 + $0xc4] sm:$0xf]
        %v2505 = vld [vmem:[#allocation24 + $0xc8] sm:$0xf]
        %v2506 = vld [vmem:[#allocation24 + $0xcc] sm:$0xf]
        %v2507 = vld [vmem:[#allocation24 + $0xd0] sm:$0xf]
        %v2508 = vld [vmem:[#allocation24 + $0xd4] sm:$0xf]
        %v2509 = vld [vmem:[#allocation24 + $0xd8] sm:$0xf]
        %v2510 = vld [vmem:[#allocation24 + $0xdc] sm:$0xf]
        %v2511 = vld [vmem:[#allocation24 + $0xe0] sm:$0xf]
        %v2512 = vld [vmem:[#allocation24 + $0xe4] sm:$0xf]
        %v2513 = vld [vmem:[#allocation24 + $0xe8] sm:$0xf]
        %v2514 = vld [vmem:[#allocation24 + $0xec] sm:$0xf]
        %v2515 = vld [vmem:[#allocation24 + $0xf0] sm:$0xf]
        %v2516 = vld [vmem:[#allocation24 + $0xf4] sm:$0xf]
        %v2517 = vld [vmem:[#allocation24 + $0xf8] sm:$0xf]
        %v2518 = vld [vmem:[#allocation24 + $0xfc] sm:$0xf]
        %v2519 = vpack.c.bf16 %v2451, %v2447
        %v2520 = vpack.c.bf16 %v2452, %v2448
        %v2521 = vpack.c.bf16 %v2453, %v2449
        %v2522 = vpack.c.bf16 %v2454, %v2450
        %v2587 = vunpack.c.l.b16 %v2455
        %v2588 = vunpack.c.l.b16 %v2456
        %v2589 = vunpack.c.l.b16 %v2457
        %v2590 = vunpack.c.l.b16 %v2458
        %v2591 = vunpack.c.l.b16 %v2459
        %v2592 = vunpack.c.l.b16 %v2460
        %v2593 = vunpack.c.l.b16 %v2461
        %v2594 = vunpack.c.l.b16 %v2462
        %v2595 = vunpack.c.l.b16 %v2463
        %v2596 = vunpack.c.l.b16 %v2464
        %v2597 = vunpack.c.l.b16 %v2465
        %v2598 = vunpack.c.l.b16 %v2466
        %v2599 = vunpack.c.l.b16 %v2467
        %v2600 = vunpack.c.l.b16 %v2468
        %v2601 = vunpack.c.l.b16 %v2469
        %v2602 = vunpack.c.l.b16 %v2470
        %v2603 = vunpack.c.l.b16 %v2471
        %v2604 = vunpack.c.l.b16 %v2472
        %v2605 = vunpack.c.l.b16 %v2473
        %v2606 = vunpack.c.l.b16 %v2474
        %v2607 = vunpack.c.l.b16 %v2475
        %v2608 = vunpack.c.l.b16 %v2476
        %v2609 = vunpack.c.l.b16 %v2477
        %v2610 = vunpack.c.l.b16 %v2478
        %v2611 = vunpack.c.l.b16 %v2479
        %v2612 = vunpack.c.l.b16 %v2480
        %v2613 = vunpack.c.l.b16 %v2481
        %v2614 = vunpack.c.l.b16 %v2482
        %v2615 = vunpack.c.l.b16 %v2483
        %v2616 = vunpack.c.l.b16 %v2484
        %v2617 = vunpack.c.l.b16 %v2485
        %v2618 = vunpack.c.l.b16 %v2486
        %v2619 = vunpack.c.l.b16 %v2487
        %v2620 = vunpack.c.l.b16 %v2488
        %v2621 = vunpack.c.l.b16 %v2489
        %v2622 = vunpack.c.l.b16 %v2490
        %v2623 = vunpack.c.l.b16 %v2491
        %v2624 = vunpack.c.l.b16 %v2492
        %v2625 = vunpack.c.l.b16 %v2493
        %v2626 = vunpack.c.l.b16 %v2494
        %v2627 = vunpack.c.l.b16 %v2495
        %v2628 = vunpack.c.l.b16 %v2496
        %v2629 = vunpack.c.l.b16 %v2497
        %v2630 = vunpack.c.l.b16 %v2498
        %v2631 = vunpack.c.l.b16 %v2499
        %v2632 = vunpack.c.l.b16 %v2500
        %v2633 = vunpack.c.l.b16 %v2501
        %v2634 = vunpack.c.l.b16 %v2502
        %v2635 = vunpack.c.l.b16 %v2503
        %v2636 = vunpack.c.l.b16 %v2504
        %v2637 = vunpack.c.l.b16 %v2505
        %v2638 = vunpack.c.l.b16 %v2506
        %v2639 = vunpack.c.l.b16 %v2507
        %v2640 = vunpack.c.l.b16 %v2508
        %v2641 = vunpack.c.l.b16 %v2509
        %v2642 = vunpack.c.l.b16 %v2510
        %v2643 = vunpack.c.l.b16 %v2511
        %v2644 = vunpack.c.l.b16 %v2512
        %v2645 = vunpack.c.l.b16 %v2513
        %v2646 = vunpack.c.l.b16 %v2514
        %v2647 = vunpack.c.l.b16 %v2515
        %v2648 = vunpack.c.l.b16 %v2516
        %v2649 = vunpack.c.l.b16 %v2517
        %v2650 = vunpack.c.l.b16 %v2518
        %v2651 = vpack.c.b16 %v2588, %v2587
        %v2652 = vpack.c.b16 %v2590, %v2589
        %v2653 = vpack.c.b16 %v2592, %v2591
        %v2654 = vpack.c.b16 %v2594, %v2593
        %v2655 = vpack.c.b16 %v2596, %v2595
        %v2656 = vpack.c.b16 %v2598, %v2597
        %v2657 = vpack.c.b16 %v2600, %v2599
        %v2658 = vpack.c.b16 %v2602, %v2601
        %v2659 = vpack.c.b16 %v2604, %v2603
        %v2660 = vpack.c.b16 %v2606, %v2605
        %v2661 = vpack.c.b16 %v2608, %v2607
        %v2662 = vpack.c.b16 %v2610, %v2609
        %v2663 = vpack.c.b16 %v2612, %v2611
        %v2664 = vpack.c.b16 %v2614, %v2613
        %v2665 = vpack.c.b16 %v2616, %v2615
        %v2666 = vpack.c.b16 %v2618, %v2617
        %v2667 = vpack.c.b16 %v2620, %v2619
        %v2668 = vpack.c.b16 %v2622, %v2621
        %v2669 = vpack.c.b16 %v2624, %v2623
        %v2670 = vpack.c.b16 %v2626, %v2625
        %v2671 = vpack.c.b16 %v2628, %v2627
        %v2672 = vpack.c.b16 %v2630, %v2629
        %v2673 = vpack.c.b16 %v2632, %v2631
        %v2674 = vpack.c.b16 %v2634, %v2633
        %v2675 = vpack.c.b16 %v2636, %v2635
        %v2676 = vpack.c.b16 %v2638, %v2637
        %v2677 = vpack.c.b16 %v2640, %v2639
        %v2678 = vpack.c.b16 %v2642, %v2641
        %v2679 = vpack.c.b16 %v2644, %v2643
        %v2680 = vpack.c.b16 %v2646, %v2645
        %v2681 = vpack.c.b16 %v2648, %v2647
        %v2682 = vpack.c.b16 %v2650, %v2649
        %2715 = vmatprep.subr.bf16.mxu0 0
        %2716 = vmatpush1.bf16.msra.mxu0 %v2651
        %2717 = vmatprep.subr.bf16.mxu0 0
        %2718 = vmatpush1.bf16.msra.mxu0 %v2652
        %2719 = vmatprep.subr.bf16.mxu0 0
        %2720 = vmatpush1.bf16.msra.mxu0 %v2653
        %2721 = vmatprep.subr.bf16.mxu0 0
        %2722 = vmatpush1.bf16.msra.mxu0 %v2654
        %2723 = vmatprep.subr.bf16.mxu0 0
        %2724 = vmatpush1.bf16.msra.mxu0 %v2655
        %2725 = vmatprep.subr.bf16.mxu0 0
        %2726 = vmatpush1.bf16.msra.mxu0 %v2656
        %2727 = vmatprep.subr.bf16.mxu0 0
        %2728 = vmatpush1.bf16.msra.mxu0 %v2657
        %2729 = vmatprep.subr.bf16.mxu0 0
        %2730 = vmatpush1.bf16.msra.mxu0 %v2658
        %2731 = vmatprep.subr.bf16.mxu0 0
        %2732 = vmatpush1.bf16.msra.mxu0 %v2659
        %2733 = vmatprep.subr.bf16.mxu0 0
        %2734 = vmatpush1.bf16.msra.mxu0 %v2660
        %2735 = vmatprep.subr.bf16.mxu0 0
        %2736 = vmatpush1.bf16.msra.mxu0 %v2661
        %2737 = vmatprep.subr.bf16.mxu0 0
        %2738 = vmatpush1.bf16.msra.mxu0 %v2662
        %2739 = vmatprep.subr.bf16.mxu0 0
        %2740 = vmatpush1.bf16.msra.mxu0 %v2663
        %2741 = vmatprep.subr.bf16.mxu0 0
        %2742 = vmatpush1.bf16.msra.mxu0 %v2664
        %2743 = vmatprep.subr.bf16.mxu0 0
        %2744 = vmatpush1.bf16.msra.mxu0 %v2665
        %2745 = vmatprep.subr.bf16.mxu0 0
        %2746 = vmatpush1.bf16.msra.mxu0 %v2666
        %2747 = vmatprep.mubr.bf16.mxu0 %v2520
        %2748 = vmatmul.mubr.bf16.gmra.mrb[0].mxu0 %v2519
        %v2749 = vpop.f32.mrb[0].mxu0
        %v2750 = vadd.f32 0.0, %v2749
        %v2751 = vpop.f32.mrb[0].mxu0
        %v2752 = vpop.f32.mrb[0].mxu0
        %v2753 = vadd.f32 0.0, %v2752
        %v2754 = vpop.f32.mrb[0].mxu0
        %2755 = vdwg.mxu0
        %2756 = vmatprep.subr.bf16.mxu0 0
        %2757 = vmatpush1.bf16.msra.mxu0 %v2667
        %2758 = vmatprep.subr.bf16.mxu0 0
        %2759 = vmatpush1.bf16.msra.mxu0 %v2668
        %2760 = vmatprep.subr.bf16.mxu0 0
        %2761 = vmatpush1.bf16.msra.mxu0 %v2669
        %2762 = vmatprep.subr.bf16.mxu0 0
        %2763 = vmatpush1.bf16.msra.mxu0 %v2670
        %2764 = vmatprep.subr.bf16.mxu0 0
        %2765 = vmatpush1.bf16.msra.mxu0 %v2671
        %2766 = vmatprep.subr.bf16.mxu0 0
        %2767 = vmatpush1.bf16.msra.mxu0 %v2672
        %2768 = vmatprep.subr.bf16.mxu0 0
        %2769 = vmatpush1.bf16.msra.mxu0 %v2673
        %2770 = vmatprep.subr.bf16.mxu0 0
        %2771 = vmatpush1.bf16.msra.mxu0 %v2674
        %2772 = vmatprep.subr.bf16.mxu0 0
        %2773 = vmatpush1.bf16.msra.mxu0 %v2675
        %2774 = vmatprep.subr.bf16.mxu0 0
        %2775 = vmatpush1.bf16.msra.mxu0 %v2676
        %2776 = vmatprep.subr.bf16.mxu0 0
        %2777 = vmatpush1.bf16.msra.mxu0 %v2677
        %2778 = vmatprep.subr.bf16.mxu0 0
        %2779 = vmatpush1.bf16.msra.mxu0 %v2678
        %2780 = vmatprep.subr.bf16.mxu0 0
        %2781 = vmatpush1.bf16.msra.mxu0 %v2679
        %2782 = vmatprep.subr.bf16.mxu0 0
        %2783 = vmatpush1.bf16.msra.mxu0 %v2680
        %2784 = vmatprep.subr.bf16.mxu0 0
        %2785 = vmatpush1.bf16.msra.mxu0 %v2681
        %2786 = vmatprep.subr.bf16.mxu0 0
        %2787 = vmatpush1.bf16.msra.mxu0 %v2682
        %2788 = vmatprep.mubr.bf16.mxu0 %v2522
        %2789 = vmatmul.mubr.bf16.gmra.mrb[0].mxu0 %v2521
        %v2790 = vpop.f32.mrb[0].mxu0
        %v2791 = vadd.f32 %v2750, %v2790
        %v2792 = vpop.f32.mrb[0].mxu0
        %v2793 = vpop.f32.mrb[0].mxu0
        %v2794 = vadd.f32 %v2753, %v2793
        %v2795 = vpop.f32.mrb[0].mxu0
        %2796 = vdwg.mxu0
        %v2797 = vadd.f32 %v2040, %v2791
        %v2798 = vadd.f32 %v2041, %v2794
        %v2799 = vld [vmem:[#allocation26] sm:$0x1]
        %v2801 = vlaneseq
        %v2802 = vshrl.u32 %v2801, 7
        %v2803 = vsub.s32 0, %v2802
        %v2804 = vrot.slane %v2799, %v2803
        %v2806 = vadd.f32 %v2797, %v2804
        %v2807 = vadd.f32 %v2798, %v2804
        %s2808 = scalar_lea.vmem [#allocation9], 1
        %v2809 = vld [vmem:[%s2808] sm:$0x1]
        %s2810 = scalar_lea.vmem [#allocation11], 1
        %v2811 = vld [vmem:[%s2810] sm:$0x1]
        %2812 = vadd.xlane.f32.xlu0 %v2806
        %v2813 = vpop.xlane.xlu0 %2812
        %2814 = vadd.xlane.f32.xlu0 %v2807
        %v2815 = vpop.xlane.xlu0 %2814
        %v2816 = vmul.f32 %v2813, %v1108
        %v2817 = vmul.f32 %v2815, %v1108
        %v2818 = vsub.f32 %v2806, %v2816
        %v2819 = vsub.f32 %v2807, %v2817
        %v2820 = vmul.f32 %v2818, %v2818
        %v2821 = vmul.f32 %v2819, %v2819
        %2822 = vadd.xlane.f32.xlu0 %v2820
        %v2823 = vpop.xlane.xlu0 %2822
        %2824 = vadd.xlane.f32.xlu0 %v2821
        %v2825 = vpop.xlane.xlu0 %2824
        %v2826 = vmul.f32 %v2823, %v1108
        %v2827 = vmul.f32 %v2825, %v1108
        %v2828 = vadd.f32 %v2826, 1e-05
        %v2829 = vadd.f32 %v2827, 1e-05
        %v2830 = vrsqrt.pop %v2828
        %v2831 = vrsqrt.pop %v2829
        %v2832 = vmul.f32 %v2818, %v2830
        %v2833 = vmul.f32 %v2819, %v2831
        %v2835 = vlaneseq
        %v2836 = vshrl.u32 %v2835, 7
        %v2837 = vsub.s32 0, %v2836
        %v2838 = vrot.slane %v2809, %v2837
        %v2840 = vmul.f32 %v2832, %v2838
        %v2841 = vmul.f32 %v2833, %v2838
        %v2843 = vlaneseq
        %v2844 = vshrl.u32 %v2843, 7
        %v2845 = vsub.s32 0, %v2844
        %v2846 = vrot.slane %v2811, %v2845
        %v2848 = vadd.f32 %v2840, %v2846
        %v2849 = vadd.f32 %v2841, %v2846
        %s2850 = scalar_lea.vmem [#allocation12], 192
        %v2851 = vld [vmem:[%s2850] sm:$0xff]
        %v2852 = vld [vmem:[%s2850 + $0x8] sm:$0xf]
        %v2853 = vld [vmem:[%s2850 + $0xc] sm:$0xff]
        %v2854 = vld [vmem:[%s2850 + $0x14] sm:$0xf]
        %v2855 = vld [vmem:[%s2850 + $0x18] sm:$0xff]
        %v2856 = vld [vmem:[%s2850 + $0x20] sm:$0xf]
        %v2857 = vld [vmem:[%s2850 + $0x24] sm:$0xff]
        %v2858 = vld [vmem:[%s2850 + $0x2c] sm:$0xf]
        %v2859 = vld [vmem:[%s2850 + $0x30] sm:$0xff]
        %v2860 = vld [vmem:[%s2850 + $0x38] sm:$0xf]
        %v2861 = vld [vmem:[%s2850 + $0x3c] sm:$0xff]
        %v2862 = vld [vmem:[%s2850 + $0x44] sm:$0xf]
        %v2863 = vld [vmem:[%s2850 + $0x48] sm:$0xff]
        %v2864 = vld [vmem:[%s2850 + $0x50] sm:$0xf]
        %v2865 = vld [vmem:[%s2850 + $0x54] sm:$0xff]
        %v2866 = vld [vmem:[%s2850 + $0x5c] sm:$0xf]
        %v2867 = vld [vmem:[%s2850 + $0x60] sm:$0xff]
        %v2868 = vld [vmem:[%s2850 + $0x68] sm:$0xf]
        %v2869 = vld [vmem:[%s2850 + $0x6c] sm:$0xff]
        %v2870 = vld [vmem:[%s2850 + $0x74] sm:$0xf]
        %v2871 = vld [vmem:[%s2850 + $0x78] sm:$0xff]
        %v2872 = vld [vmem:[%s2850 + $0x80] sm:$0xf]
        %v2873 = vld [vmem:[%s2850 + $0x84] sm:$0xff]
        %v2874 = vld [vmem:[%s2850 + $0x8c] sm:$0xf]
        %v2875 = vld [vmem:[%s2850 + $0x90] sm:$0xff]
        %v2876 = vld [vmem:[%s2850 + $0x98] sm:$0xf]
        %v2877 = vld [vmem:[%s2850 + $0x9c] sm:$0xff]
        %v2878 = vld [vmem:[%s2850 + $0xa4] sm:$0xf]
        %v2879 = vld [vmem:[%s2850 + $0xa8] sm:$0xff]
        %v2880 = vld [vmem:[%s2850 + $0xb0] sm:$0xf]
        %v2881 = vld [vmem:[%s2850 + $0xb4] sm:$0xff]
        %v2882 = vld [vmem:[%s2850 + $0xbc] sm:$0xf]
        %v2883 = vpack.c.bf16 %v2849, %v2848
        %s2884 = scalar_lea.vmem [#allocation14], 3
        %v2885 = vld [vmem:[%s2884] sm:$0x7]
        %v2887 = vlaneseq
        %v2888 = vshrl.u32 %v2887, 7
        %v2889 = vsub.s32 0, %v2888
        %v2890 = vrot.slane %v2885, %v2889
        %v2891 = vlaneseq
        %v2892 = vshrl.u32 %v2891, 7
        %v2893 = vsub.s32 1, %v2892
        %v2894 = vrot.slane %v2885, %v2893
        %v2895 = vlaneseq
        %v2896 = vshrl.u32 %v2895, 7
        %v2897 = vsub.s32 2, %v2896
        %v2898 = vrot.slane %v2885, %v2897
        %v2934 = vunpack.c.l.b16 %v2851
        %v2935 = vunpack.c.h.b16 %v2851
        %v2936 = vunpack.c.l.b16 %v2852
        %v2937 = vunpack.c.l.b16 %v2853
        %v2938 = vunpack.c.h.b16 %v2853
        %v2939 = vunpack.c.l.b16 %v2854
        %v2940 = vunpack.c.l.b16 %v2855
        %v2941 = vunpack.c.h.b16 %v2855
        %v2942 = vunpack.c.l.b16 %v2856
        %v2943 = vunpack.c.l.b16 %v2857
        %v2944 = vunpack.c.h.b16 %v2857
        %v2945 = vunpack.c.l.b16 %v2858
        %v2946 = vunpack.c.l.b16 %v2859
        %v2947 = vunpack.c.h.b16 %v2859
        %v2948 = vunpack.c.l.b16 %v2860
        %v2949 = vunpack.c.l.b16 %v2861
        %v2950 = vunpack.c.h.b16 %v2861
        %v2951 = vunpack.c.l.b16 %v2862
        %v2952 = vunpack.c.l.b16 %v2863
        %v2953 = vunpack.c.h.b16 %v2863
        %v2954 = vunpack.c.l.b16 %v2864
        %v2955 = vunpack.c.l.b16 %v2865
        %v2956 = vunpack.c.h.b16 %v2865
        %v2957 = vunpack.c.l.b16 %v2866
        %v2958 = vunpack.c.l.b16 %v2867
        %v2959 = vunpack.c.h.b16 %v2867
        %v2960 = vunpack.c.l.b16 %v2868
        %v2961 = vunpack.c.l.b16 %v2869
        %v2962 = vunpack.c.h.b16 %v2869
        %v2963 = vunpack.c.l.b16 %v2870
        %v2964 = vunpack.c.l.b16 %v2871
        %v2965 = vunpack.c.h.b16 %v2871
        %v2966 = vunpack.c.l.b16 %v2872
        %v2967 = vunpack.c.l.b16 %v2873
        %v2968 = vunpack.c.h.b16 %v2873
        %v2969 = vunpack.c.l.b16 %v2874
        %v2970 = vunpack.c.l.b16 %v2875
        %v2971 = vunpack.c.h.b16 %v2875
        %v2972 = vunpack.c.l.b16 %v2876
        %v2973 = vunpack.c.l.b16 %v2877
        %v2974 = vunpack.c.h.b16 %v2877
        %v2975 = vunpack.c.l.b16 %v2878
        %v2976 = vunpack.c.l.b16 %v2879
        %v2977 = vunpack.c.h.b16 %v2879
        %v2978 = vunpack.c.l.b16 %v2880
        %v2979 = vunpack.c.l.b16 %v2881
        %v2980 = vunpack.c.h.b16 %v2881
        %v2981 = vunpack.c.l.b16 %v2882
        %v2982 = vpack.c.b16 %v2937, %v2934
        %v2983 = vpack.c.b16 %v2938, %v2935
        %v2984 = vpack.c.b16 %v2939, %v2936
        %v2985 = vpack.c.b16 %v2943, %v2940
        %v2986 = vpack.c.b16 %v2944, %v2941
        %v2987 = vpack.c.b16 %v2945, %v2942
        %v2988 = vpack.c.b16 %v2949, %v2946
        %v2989 = vpack.c.b16 %v2950, %v2947
        %v2990 = vpack.c.b16 %v2951, %v2948
        %v2991 = vpack.c.b16 %v2955, %v2952
        %v2992 = vpack.c.b16 %v2956, %v2953
        %v2993 = vpack.c.b16 %v2957, %v2954
        %v2994 = vpack.c.b16 %v2961, %v2958
        %v2995 = vpack.c.b16 %v2962, %v2959
        %v2996 = vpack.c.b16 %v2963, %v2960
        %v2997 = vpack.c.b16 %v2967, %v2964
        %v2998 = vpack.c.b16 %v2968, %v2965
        %v2999 = vpack.c.b16 %v2969, %v2966
        %v3000 = vpack.c.b16 %v2973, %v2970
        %v3001 = vpack.c.b16 %v2974, %v2971
        %v3002 = vpack.c.b16 %v2975, %v2972
        %v3003 = vpack.c.b16 %v2979, %v2976
        %v3004 = vpack.c.b16 %v2980, %v2977
        %v3005 = vpack.c.b16 %v2981, %v2978
        %3030 = vmatprep.subr.bf16.mxu0 %v2983
        %3031 = vmatpush1.bf16.msra.mxu0 %v2982
        %3032 = vmatprep.subr.bf16.mxu0 %v2986
        %3033 = vmatpush1.bf16.msra.mxu0 %v2985
        %3034 = vmatprep.subr.bf16.mxu0 %v2989
        %3035 = vmatpush1.bf16.msra.mxu0 %v2988
        %3036 = vmatprep.subr.bf16.mxu0 %v2992
        %3037 = vmatpush1.bf16.msra.mxu0 %v2991
        %3038 = vmatprep.subr.bf16.mxu0 %v2995
        %3039 = vmatpush1.bf16.msra.mxu0 %v2994
        %3040 = vmatprep.subr.bf16.mxu0 %v2998
        %3041 = vmatpush1.bf16.msra.mxu0 %v2997
        %3042 = vmatprep.subr.bf16.mxu0 %v3001
        %3043 = vmatpush1.bf16.msra.mxu0 %v3000
        %3044 = vmatprep.subr.bf16.mxu0 %v3004
        %3045 = vmatpush1.bf16.msra.mxu0 %v3003
        %3046 = vmatprep.subr.bf16.mxu0 0
        %3047 = vmatpush1.bf16.msra.mxu0 0
        %3048 = vmatprep.subr.bf16.mxu0 0
        %3049 = vmatpush1.bf16.msra.mxu0 0
        %3050 = vmatprep.subr.bf16.mxu0 0
        %3051 = vmatpush1.bf16.msra.mxu0 0
        %3052 = vmatprep.subr.bf16.mxu0 0
        %3053 = vmatpush1.bf16.msra.mxu0 0
        %3054 = vmatprep.subr.bf16.mxu0 0
        %3055 = vmatpush1.bf16.msra.mxu0 0
        %3056 = vmatprep.subr.bf16.mxu0 0
        %3057 = vmatpush1.bf16.msra.mxu0 0
        %3058 = vmatprep.subr.bf16.mxu0 0
        %3059 = vmatpush1.bf16.msra.mxu0 0
        %3060 = vmatprep.subr.bf16.mxu0 0
        %3061 = vmatpush1.bf16.msra.mxu0 0
        %3062 = vmatprep.mubr.bf16.mxu0 0
        %3063 = vmatmul.mubr.bf16.gmra.mrb[0].mxu0 %v2883
        %v3064 = vpop.f32.mrb[0].mxu0
        %v3065 = vadd.f32 %v2890, %v3064
        %v3066 = vpop.f32.mrb[0].mxu0
        %v3067 = vadd.f32 %v2894, %v3066
        %v3068 = vpop.f32.mrb[0].mxu0
        %v3069 = vadd.f32 %v2890, %v3068
        %v3070 = vpop.f32.mrb[0].mxu0
        %v3071 = vadd.f32 %v2894, %v3070
        %3072 = vdwg.mxu0
        %3073 = vmatprep.subr.bf16.mxu0 0
        %3074 = vmatpush1.bf16.msra.mxu0 %v2984
        %3075 = vmatprep.subr.bf16.mxu0 0
        %3076 = vmatpush1.bf16.msra.mxu0 %v2987
        %3077 = vmatprep.subr.bf16.mxu0 0
        %3078 = vmatpush1.bf16.msra.mxu0 %v2990
        %3079 = vmatprep.subr.bf16.mxu0 0
        %3080 = vmatpush1.bf16.msra.mxu0 %v2993
        %3081 = vmatprep.subr.bf16.mxu0 0
        %3082 = vmatpush1.bf16.msra.mxu0 %v2996
        %3083 = vmatprep.subr.bf16.mxu0 0
        %3084 = vmatpush1.bf16.msra.mxu0 %v2999
        %3085 = vmatprep.subr.bf16.mxu0 0
        %3086 = vmatpush1.bf16.msra.mxu0 %v3002
        %3087 = vmatprep.subr.bf16.mxu0 0
        %3088 = vmatpush1.bf16.msra.mxu0 %v3005
        %3089 = vmatprep.subr.bf16.mxu0 0
        %3090 = vmatpush1.bf16.msra.mxu0 0
        %3091 = vmatprep.subr.bf16.mxu0 0
        %3092 = vmatpush1.bf16.msra.mxu0 0
        %3093 = vmatprep.subr.bf16.mxu0 0
        %3094 = vmatpush1.bf16.msra.mxu0 0
        %3095 = vmatprep.subr.bf16.mxu0 0
        %3096 = vmatpush1.bf16.msra.mxu0 0
        %3097 = vmatprep.subr.bf16.mxu0 0
        %3098 = vmatpush1.bf16.msra.mxu0 0
        %3099 = vmatprep.subr.bf16.mxu0 0
        %3100 = vmatpush1.bf16.msra.mxu0 0
        %3101 = vmatprep.subr.bf16.mxu0 0
        %3102 = vmatpush1.bf16.msra.mxu0 0
        %3103 = vmatprep.subr.bf16.mxu0 0
        %3104 = vmatpush1.bf16.msra.mxu0 0
        %3105 = vmatprep.mubr.bf16.mxu0 0
        %3106 = vmatmul.mubr.bf16.gmra.mrb[0].mxu0 %v2883
        %v3107 = vpop.f32.mrb[0].mxu0
        %v3108 = vadd.f32 %v2898, %v3107
        %v3109 = vpop.f32.mrb[0].mxu0
        %v3110 = vpop.f32.mrb[0].mxu0
        %v3111 = vadd.f32 %v2898, %v3110
        %v3112 = vpop.f32.mrb[0].mxu0
        %3113 = vdwg.mxu0
        %v3114 = vpack.c.bf16 %v3069, %v3065
        %v3115 = vpack.c.bf16 %v3071, %v3067
        %v3116 = vpack.c.bf16 %v3111, %v3108
        %v3118 = vsel %vm1408, %v3114, 0
        %v3121 = vsel %vm1408, %v3115, 0
        %3123 = vmatprep.subr.bf16.mxu0 0
        %3124 = vmatpush1.bf16.xpose.msra.mxu0 %v3121
        %3125 = vmatprep.subr.bf16.mxu0 0
        %3126 = vmatpush1.bf16.xpose.msra.mxu0 0
        %3127 = vmatprep.subr.bf16.mxu0 0
        %3128 = vmatpush1.bf16.xpose.msra.mxu0 0
        %3129 = vmatprep.subr.bf16.mxu0 0
        %3130 = vmatpush1.bf16.xpose.msra.mxu0 0
        %3131 = vmatprep.subr.bf16.mxu0 0
        %3132 = vmatpush1.bf16.xpose.msra.mxu0 0
        %3133 = vmatprep.subr.bf16.mxu0 0
        %3134 = vmatpush1.bf16.xpose.msra.mxu0 0
        %3135 = vmatprep.subr.bf16.mxu0 0
        %3136 = vmatpush1.bf16.xpose.msra.mxu0 0
        %3137 = vmatprep.subr.bf16.mxu0 0
        %3138 = vmatpush1.bf16.xpose.msra.mxu0 0
        %3139 = vmatprep.subr.bf16.mxu0 0
        %3140 = vmatpush1.bf16.xpose.msra.mxu0 0
        %3141 = vmatprep.subr.bf16.mxu0 0
        %3142 = vmatpush1.bf16.xpose.msra.mxu0 0
        %3143 = vmatprep.subr.bf16.mxu0 0
        %3144 = vmatpush1.bf16.xpose.msra.mxu0 0
        %3145 = vmatprep.subr.bf16.mxu0 0
        %3146 = vmatpush1.bf16.xpose.msra.mxu0 0
        %3147 = vmatprep.subr.bf16.mxu0 0
        %3148 = vmatpush1.bf16.xpose.msra.mxu0 0
        %3149 = vmatprep.subr.bf16.mxu0 0
        %3150 = vmatpush1.bf16.xpose.msra.mxu0 0
        %3151 = vmatprep.subr.bf16.mxu0 0
        %3152 = vmatpush1.bf16.xpose.msra.mxu0 0
        %3153 = vmatprep.subr.bf16.mxu0 0
        %3154 = vmatpush1.bf16.xpose.msra.mxu0 0
        %3155 = vmatprep.mubr.bf16.mxu0 0
        %3156 = vmatmul.mubr.bf16.gmra.mrb[0].mxu0 %v3118
        %v3157 = vpop.f32.mrb[0].mxu0
        %v3158 = vadd.f32 %v1100, %v3157
        %v3159 = vpop.f32.mrb[0].mxu0
        %v3160 = vpop.f32.mrb[0].mxu0
        %v3161 = vadd.f32 %v1101, %v3160
        %v3162 = vpop.f32.mrb[0].mxu0
        %3163 = vdwg.mxu0
        %v3164 = vsel %vm1456, %v3158, -inf
        %3165 = vmax.xlane.f32.xlu0 %v3164
        %v3166 = vpop.xlane.xlu0 %3165
        %v3167 = vsel %vm1456, %v3161, -inf
        %3168 = vmax.xlane.f32.xlu0 %v3167
        %v3169 = vpop.xlane.xlu0 %3168
        %v3170 = vsub.f32 %v3158, %v3166
        %v3171 = vsub.f32 %v3161, %v3169
        %v3172 = vmul.f32 %v3170, 1.442695
        %v3173 = vpow.pop %v3172
        %v3174 = vmul.f32 %v3171, 1.442695
        %v3175 = vpow.pop %v3174
        %v3176 = vsel %vm1456, %v3173, 0.0
        %3177 = vadd.xlane.f32.xlu0 %v3176
        %v3178 = vpop.xlane.xlu0 %3177
        %v3179 = vsel %vm1456, %v3175, 0.0
        %3180 = vadd.xlane.f32.xlu0 %v3179
        %v3181 = vpop.xlane.xlu0 %3180
        %v3182 = vpack.c.bf16 %v3175, %v3173
        %v3184 = vsel %vm1456, %v3182, 0
        %3186 = vmatprep.subr.bf16.mxu0 0
        %3187 = vmatpush1.bf16.msra.mxu0 %v3116
        %3188 = vmatprep.subr.bf16.mxu0 0
        %3189 = vmatpush1.bf16.msra.mxu0 0
        %3190 = vmatprep.subr.bf16.mxu0 0
        %3191 = vmatpush1.bf16.msra.mxu0 0
        %3192 = vmatprep.subr.bf16.mxu0 0
        %3193 = vmatpush1.bf16.msra.mxu0 0
        %3194 = vmatprep.subr.bf16.mxu0 0
        %3195 = vmatpush1.bf16.msra.mxu0 0
        %3196 = vmatprep.subr.bf16.mxu0 0
        %3197 = vmatpush1.bf16.msra.mxu0 0
        %3198 = vmatprep.subr.bf16.mxu0 0
        %3199 = vmatpush1.bf16.msra.mxu0 0
        %3200 = vmatprep.subr.bf16.mxu0 0
        %3201 = vmatpush1.bf16.msra.mxu0 0
        %3202 = vmatprep.subr.bf16.mxu0 0
        %3203 = vmatpush1.bf16.msra.mxu0 0
        %3204 = vmatprep.subr.bf16.mxu0 0
        %3205 = vmatpush1.bf16.msra.mxu0 0
        %3206 = vmatprep.subr.bf16.mxu0 0
        %3207 = vmatpush1.bf16.msra.mxu0 0
        %3208 = vmatprep.subr.bf16.mxu0 0
        %3209 = vmatpush1.bf16.msra.mxu0 0
        %3210 = vmatprep.subr.bf16.mxu0 0
        %3211 = vmatpush1.bf16.msra.mxu0 0
        %3212 = vmatprep.subr.bf16.mxu0 0
        %3213 = vmatpush1.bf16.msra.mxu0 0
        %3214 = vmatprep.subr.bf16.mxu0 0
        %3215 = vmatpush1.bf16.msra.mxu0 0
        %3216 = vmatprep.subr.bf16.mxu0 0
        %3217 = vmatpush1.bf16.msra.mxu0 0
        %3218 = vmatprep.mubr.bf16.mxu0 0
        %3219 = vmatmul.mubr.bf16.gmra.mrb[0].mxu0 %v3184
        %v3220 = vpop.f32.mrb[0].mxu0
        %v3221 = vadd.f32 0.0, %v3220
        %v3222 = vpop.f32.mrb[0].mxu0
        %v3223 = vpop.f32.mrb[0].mxu0
        %v3224 = vadd.f32 0.0, %v3223
        %v3225 = vpop.f32.mrb[0].mxu0
        %3226 = vdwg.mxu0
        %v3227 = vrcp.pop %v3178
        %v3228 = vrcp.pop %v3181
        %v3229 = vmul.f32 %v3221, %v3227
        %v3230 = vmul.f32 %v3224, %v3228
        %3231 = vst.msk [vmem:[#allocation2] sm:$0xff] %vm1408, %v3229
        %3232 = vst.msk [vmem:[#allocation2 + $0x8] sm:$0xff] %vm1408, %v3230
        %3234 = vrot.lane.b32.xlu0 %v3114, 96
        %v3235 = vpop.permute.xlu0 %3234
        %3237 = vrot.lane.b32.xlu0 %v3115, 96
        %v3238 = vpop.permute.xlu0 %3237
        %v3240 = vsel %vm1408, %v3235, 0
        %v3243 = vsel %vm1408, %v3238, 0
        %3245 = vmatprep.subr.bf16.mxu0 0
        %3246 = vmatpush1.bf16.xpose.msra.mxu0 %v3243
        %3247 = vmatprep.subr.bf16.mxu0 0
        %3248 = vmatpush1.bf16.xpose.msra.mxu0 0
        %3249 = vmatprep.subr.bf16.mxu0 0
        %3250 = vmatpush1.bf16.xpose.msra.mxu0 0
        %3251 = vmatprep.subr.bf16.mxu0 0
        %3252 = vmatpush1.bf16.xpose.msra.mxu0 0
        %3253 = vmatprep.subr.bf16.mxu0 0
        %3254 = vmatpush1.bf16.xpose.msra.mxu0 0
        %3255 = vmatprep.subr.bf16.mxu0 0
        %3256 = vmatpush1.bf16.xpose.msra.mxu0 0
        %3257 = vmatprep.subr.bf16.mxu0 0
        %3258 = vmatpush1.bf16.xpose.msra.mxu0 0
        %3259 = vmatprep.subr.bf16.mxu0 0
        %3260 = vmatpush1.bf16.xpose.msra.mxu0 0
        %3261 = vmatprep.subr.bf16.mxu0 0
        %3262 = vmatpush1.bf16.xpose.msra.mxu0 0
        %3263 = vmatprep.subr.bf16.mxu0 0
        %3264 = vmatpush1.bf16.xpose.msra.mxu0 0
        %3265 = vmatprep.subr.bf16.mxu0 0
        %3266 = vmatpush1.bf16.xpose.msra.mxu0 0
        %3267 = vmatprep.subr.bf16.mxu0 0
        %3268 = vmatpush1.bf16.xpose.msra.mxu0 0
        %3269 = vmatprep.subr.bf16.mxu0 0
        %3270 = vmatpush1.bf16.xpose.msra.mxu0 0
        %3271 = vmatprep.subr.bf16.mxu0 0
        %3272 = vmatpush1.bf16.xpose.msra.mxu0 0
        %3273 = vmatprep.subr.bf16.mxu0 0
        %3274 = vmatpush1.bf16.xpose.msra.mxu0 0
        %3275 = vmatprep.subr.bf16.mxu0 0
        %3276 = vmatpush1.bf16.xpose.msra.mxu0 0
        %3277 = vmatprep.mubr.bf16.mxu0 0
        %3278 = vmatmul.mubr.bf16.gmra.mrb[0].mxu0 %v3240
        %v3279 = vpop.f32.mrb[0].mxu0
        %v3280 = vadd.f32 %v1100, %v3279
        %v3281 = vpop.f32.mrb[0].mxu0
        %v3282 = vpop.f32.mrb[0].mxu0
        %v3283 = vadd.f32 %v1101, %v3282
        %v3284 = vpop.f32.mrb[0].mxu0
        %3285 = vdwg.mxu0
        %v3286 = vsel %vm1456, %v3280, -inf
        %3287 = vmax.xlane.f32.xlu0 %v3286
        %v3288 = vpop.xlane.xlu0 %3287
        %v3289 = vsel %vm1456, %v3283, -inf
        %3290 = vmax.xlane.f32.xlu0 %v3289
        %v3291 = vpop.xlane.xlu0 %3290
        %v3292 = vsub.f32 %v3280, %v3288
        %v3293 = vsub.f32 %v3283, %v3291
        %v3294 = vmul.f32 %v3292, 1.442695
        %v3295 = vpow.pop %v3294
        %v3296 = vmul.f32 %v3293, 1.442695
        %v3297 = vpow.pop %v3296
        %v3298 = vsel %vm1456, %v3295, 0.0
        %3299 = vadd.xlane.f32.xlu0 %v3298
        %v3300 = vpop.xlane.xlu0 %3299
        %v3301 = vsel %vm1456, %v3297, 0.0
        %3302 = vadd.xlane.f32.xlu0 %v3301
        %v3303 = vpop.xlane.xlu0 %3302
        %v3304 = vpack.c.bf16 %v3297, %v3295
        %3306 = vrot.lane.b32.xlu0 %v3116, 96
        %v3307 = vpop.permute.xlu0 %3306
        %v3310 = vsel %vm1456, %v3304, 0
        %3312 = vmatprep.subr.bf16.mxu0 0
        %3313 = vmatpush1.bf16.msra.mxu0 %v3307
        %3314 = vmatprep.subr.bf16.mxu0 0
        %3315 = vmatpush1.bf16.msra.mxu0 0
        %3316 = vmatprep.subr.bf16.mxu0 0
        %3317 = vmatpush1.bf16.msra.mxu0 0
        %3318 = vmatprep.subr.bf16.mxu0 0
        %3319 = vmatpush1.bf16.msra.mxu0 0
        %3320 = vmatprep.subr.bf16.mxu0 0
        %3321 = vmatpush1.bf16.msra.mxu0 0
        %3322 = vmatprep.subr.bf16.mxu0 0
        %3323 = vmatpush1.bf16.msra.mxu0 0
        %3324 = vmatprep.subr.bf16.mxu0 0
        %3325 = vmatpush1.bf16.msra.mxu0 0
        %3326 = vmatprep.subr.bf16.mxu0 0
        %3327 = vmatpush1.bf16.msra.mxu0 0
        %3328 = vmatprep.subr.bf16.mxu0 0
        %3329 = vmatpush1.bf16.msra.mxu0 0
        %3330 = vmatprep.subr.bf16.mxu0 0
        %3331 = vmatpush1.bf16.msra.mxu0 0
        %3332 = vmatprep.subr.bf16.mxu0 0
        %3333 = vmatpush1.bf16.msra.mxu0 0
        %3334 = vmatprep.subr.bf16.mxu0 0
        %3335 = vmatpush1.bf16.msra.mxu0 0
        %3336 = vmatprep.subr.bf16.mxu0 0
        %3337 = vmatpush1.bf16.msra.mxu0 0
        %3338 = vmatprep.subr.bf16.mxu0 0
        %3339 = vmatpush1.bf16.msra.mxu0 0
        %3340 = vmatprep.subr.bf16.mxu0 0
        %3341 = vmatpush1.bf16.msra.mxu0 0
        %3342 = vmatprep.subr.bf16.mxu0 0
        %3343 = vmatpush1.bf16.msra.mxu0 0
        %3344 = vmatprep.mubr.bf16.mxu0 0
        %3345 = vmatmul.mubr.bf16.gmra.mrb[0].mxu0 %v3310
        %v3346 = vpop.f32.mrb[0].mxu0
        %v3347 = vadd.f32 0.0, %v3346
        %v3348 = vpop.f32.mrb[0].mxu0
        %v3349 = vpop.f32.mrb[0].mxu0
        %v3350 = vadd.f32 0.0, %v3349
        %v3351 = vpop.f32.mrb[0].mxu0
        %3352 = vdwg.mxu0
        %v3353 = vrcp.pop %v3300
        %v3354 = vrcp.pop %v3303
        %v3355 = vmul.f32 %v3347, %v3353
        %v3356 = vmul.f32 %v3350, %v3354
        %3359 = vrot.lane.b32.xlu0 %v3355, 32
        %v3360 = vpop.permute.xlu0 %3359
        %3361 = vrot.lane.b32.xlu0 %v3356, 32
        %v3362 = vpop.permute.xlu0 %3361
        %3365 = vst.msk [vmem:[#allocation2] sm:$0xff] %vm1658, %v3360
        %3366 = vst.msk [vmem:[#allocation2 + $0x8] sm:$0xff] %vm1658, %v3362
        %3367 = vrot.lane.b32.xlu0 %v3114, 64
        %v3368 = vpop.permute.xlu0 %3367
        %3369 = vrot.lane.b32.xlu0 %v3115, 64
        %v3370 = vpop.permute.xlu0 %3369
        %v3372 = vsel %vm1408, %v3368, 0
        %v3375 = vsel %vm1408, %v3370, 0
        %3377 = vmatprep.subr.bf16.mxu0 0
        %3378 = vmatpush1.bf16.xpose.msra.mxu0 %v3375
        %3379 = vmatprep.subr.bf16.mxu0 0
        %3380 = vmatpush1.bf16.xpose.msra.mxu0 0
        %3381 = vmatprep.subr.bf16.mxu0 0
        %3382 = vmatpush1.bf16.xpose.msra.mxu0 0
        %3383 = vmatprep.subr.bf16.mxu0 0
        %3384 = vmatpush1.bf16.xpose.msra.mxu0 0
        %3385 = vmatprep.subr.bf16.mxu0 0
        %3386 = vmatpush1.bf16.xpose.msra.mxu0 0
        %3387 = vmatprep.subr.bf16.mxu0 0
        %3388 = vmatpush1.bf16.xpose.msra.mxu0 0
        %3389 = vmatprep.subr.bf16.mxu0 0
        %3390 = vmatpush1.bf16.xpose.msra.mxu0 0
        %3391 = vmatprep.subr.bf16.mxu0 0
        %3392 = vmatpush1.bf16.xpose.msra.mxu0 0
        %3393 = vmatprep.subr.bf16.mxu0 0
        %3394 = vmatpush1.bf16.xpose.msra.mxu0 0
        %3395 = vmatprep.subr.bf16.mxu0 0
        %3396 = vmatpush1.bf16.xpose.msra.mxu0 0
        %3397 = vmatprep.subr.bf16.mxu0 0
        %3398 = vmatpush1.bf16.xpose.msra.mxu0 0
        %3399 = vmatprep.subr.bf16.mxu0 0
        %3400 = vmatpush1.bf16.xpose.msra.mxu0 0
        %3401 = vmatprep.subr.bf16.mxu0 0
        %3402 = vmatpush1.bf16.xpose.msra.mxu0 0
        %3403 = vmatprep.subr.bf16.mxu0 0
        %3404 = vmatpush1.bf16.xpose.msra.mxu0 0
        %3405 = vmatprep.subr.bf16.mxu0 0
        %3406 = vmatpush1.bf16.xpose.msra.mxu0 0
        %3407 = vmatprep.subr.bf16.mxu0 0
        %3408 = vmatpush1.bf16.xpose.msra.mxu0 0
        %3409 = vmatprep.mubr.bf16.mxu0 0
        %3410 = vmatmul.mubr.bf16.gmra.mrb[0].mxu0 %v3372
        %v3411 = vpop.f32.mrb[0].mxu0
        %v3412 = vadd.f32 %v1100, %v3411
        %v3413 = vpop.f32.mrb[0].mxu0
        %v3414 = vpop.f32.mrb[0].mxu0
        %v3415 = vadd.f32 %v1101, %v3414
        %v3416 = vpop.f32.mrb[0].mxu0
        %3417 = vdwg.mxu0
        %v3418 = vsel %vm1456, %v3412, -inf
        %3419 = vmax.xlane.f32.xlu0 %v3418
        %v3420 = vpop.xlane.xlu0 %3419
        %v3421 = vsel %vm1456, %v3415, -inf
        %3422 = vmax.xlane.f32.xlu0 %v3421
        %v3423 = vpop.xlane.xlu0 %3422
        %v3424 = vsub.f32 %v3412, %v3420
        %v3425 = vsub.f32 %v3415, %v3423
        %v3426 = vmul.f32 %v3424, 1.442695
        %v3427 = vpow.pop %v3426
        %v3428 = vmul.f32 %v3425, 1.442695
        %v3429 = vpow.pop %v3428
        %v3430 = vsel %vm1456, %v3427, 0.0
        %3431 = vadd.xlane.f32.xlu0 %v3430
        %v3432 = vpop.xlane.xlu0 %3431
        %v3433 = vsel %vm1456, %v3429, 0.0
        %3434 = vadd.xlane.f32.xlu0 %v3433
        %v3435 = vpop.xlane.xlu0 %3434
        %v3436 = vpack.c.bf16 %v3429, %v3427
        %3437 = vrot.lane.b32.xlu0 %v3116, 64
        %v3438 = vpop.permute.xlu0 %3437
        %v3441 = vsel %vm1456, %v3436, 0
        %3443 = vmatprep.subr.bf16.mxu0 0
        %3444 = vmatpush1.bf16.msra.mxu0 %v3438
        %3445 = vmatprep.subr.bf16.mxu0 0
        %3446 = vmatpush1.bf16.msra.mxu0 0
        %3447 = vmatprep.subr.bf16.mxu0 0
        %3448 = vmatpush1.bf16.msra.mxu0 0
        %3449 = vmatprep.subr.bf16.mxu0 0
        %3450 = vmatpush1.bf16.msra.mxu0 0
        %3451 = vmatprep.subr.bf16.mxu0 0
        %3452 = vmatpush1.bf16.msra.mxu0 0
        %3453 = vmatprep.subr.bf16.mxu0 0
        %3454 = vmatpush1.bf16.msra.mxu0 0
        %3455 = vmatprep.subr.bf16.mxu0 0
        %3456 = vmatpush1.bf16.msra.mxu0 0
        %3457 = vmatprep.subr.bf16.mxu0 0
        %3458 = vmatpush1.bf16.msra.mxu0 0
        %3459 = vmatprep.subr.bf16.mxu0 0
        %3460 = vmatpush1.bf16.msra.mxu0 0
        %3461 = vmatprep.subr.bf16.mxu0 0
        %3462 = vmatpush1.bf16.msra.mxu0 0
        %3463 = vmatprep.subr.bf16.mxu0 0
        %3464 = vmatpush1.bf16.msra.mxu0 0
        %3465 = vmatprep.subr.bf16.mxu0 0
        %3466 = vmatpush1.bf16.msra.mxu0 0
        %3467 = vmatprep.subr.bf16.mxu0 0
        %3468 = vmatpush1.bf16.msra.mxu0 0
        %3469 = vmatprep.subr.bf16.mxu0 0
        %3470 = vmatpush1.bf16.msra.mxu0 0
        %3471 = vmatprep.subr.bf16.mxu0 0
        %3472 = vmatpush1.bf16.msra.mxu0 0
        %3473 = vmatprep.subr.bf16.mxu0 0
        %3474 = vmatpush1.bf16.msra.mxu0 0
        %3475 = vmatprep.mubr.bf16.mxu0 0
        %3476 = vmatmul.mubr.bf16.gmra.mrb[0].mxu0 %v3441
        %v3477 = vpop.f32.mrb[0].mxu0
        %v3478 = vadd.f32 0.0, %v3477
        %v3479 = vpop.f32.mrb[0].mxu0
        %v3480 = vpop.f32.mrb[0].mxu0
        %v3481 = vadd.f32 0.0, %v3480
        %v3482 = vpop.f32.mrb[0].mxu0
        %3483 = vdwg.mxu0
        %v3484 = vrcp.pop %v3432
        %v3485 = vrcp.pop %v3435
        %v3486 = vmul.f32 %v3478, %v3484
        %v3487 = vmul.f32 %v3481, %v3485
        %3490 = vrot.lane.b32.xlu0 %v3486, 64
        %v3491 = vpop.permute.xlu0 %3490
        %3492 = vrot.lane.b32.xlu0 %v3487, 64
        %v3493 = vpop.permute.xlu0 %3492
        %3496 = vst.msk [vmem:[#allocation2] sm:$0xff] %vm1790, %v3491
        %3497 = vst.msk [vmem:[#allocation2 + $0x8] sm:$0xff] %vm1790, %v3493
        %3498 = vrot.lane.b32.xlu0 %v3114, 32
        %v3499 = vpop.permute.xlu0 %3498
        %3500 = vrot.lane.b32.xlu0 %v3115, 32
        %v3501 = vpop.permute.xlu0 %3500
        %v3503 = vsel %vm1408, %v3499, 0
        %v3506 = vsel %vm1408, %v3501, 0
        %3508 = vmatprep.subr.bf16.mxu0 0
        %3509 = vmatpush1.bf16.xpose.msra.mxu0 %v3506
        %3510 = vmatprep.subr.bf16.mxu0 0
        %3511 = vmatpush1.bf16.xpose.msra.mxu0 0
        %3512 = vmatprep.subr.bf16.mxu0 0
        %3513 = vmatpush1.bf16.xpose.msra.mxu0 0
        %3514 = vmatprep.subr.bf16.mxu0 0
        %3515 = vmatpush1.bf16.xpose.msra.mxu0 0
        %3516 = vmatprep.subr.bf16.mxu0 0
        %3517 = vmatpush1.bf16.xpose.msra.mxu0 0
        %3518 = vmatprep.subr.bf16.mxu0 0
        %3519 = vmatpush1.bf16.xpose.msra.mxu0 0
        %3520 = vmatprep.subr.bf16.mxu0 0
        %3521 = vmatpush1.bf16.xpose.msra.mxu0 0
        %3522 = vmatprep.subr.bf16.mxu0 0
        %3523 = vmatpush1.bf16.xpose.msra.mxu0 0
        %3524 = vmatprep.subr.bf16.mxu0 0
        %3525 = vmatpush1.bf16.xpose.msra.mxu0 0
        %3526 = vmatprep.subr.bf16.mxu0 0
        %3527 = vmatpush1.bf16.xpose.msra.mxu0 0
        %3528 = vmatprep.subr.bf16.mxu0 0
        %3529 = vmatpush1.bf16.xpose.msra.mxu0 0
        %3530 = vmatprep.subr.bf16.mxu0 0
        %3531 = vmatpush1.bf16.xpose.msra.mxu0 0
        %3532 = vmatprep.subr.bf16.mxu0 0
        %3533 = vmatpush1.bf16.xpose.msra.mxu0 0
        %3534 = vmatprep.subr.bf16.mxu0 0
        %3535 = vmatpush1.bf16.xpose.msra.mxu0 0
        %3536 = vmatprep.subr.bf16.mxu0 0
        %3537 = vmatpush1.bf16.xpose.msra.mxu0 0
        %3538 = vmatprep.subr.bf16.mxu0 0
        %3539 = vmatpush1.bf16.xpose.msra.mxu0 0
        %3540 = vmatprep.mubr.bf16.mxu0 0
        %3541 = vmatmul.mubr.bf16.gmra.mrb[0].mxu0 %v3503
        %v3542 = vpop.f32.mrb[0].mxu0
        %v3543 = vadd.f32 %v1100, %v3542
        %v3544 = vpop.f32.mrb[0].mxu0
        %v3545 = vpop.f32.mrb[0].mxu0
        %v3546 = vadd.f32 %v1101, %v3545
        %v3547 = vpop.f32.mrb[0].mxu0
        %3548 = vdwg.mxu0
        %v3549 = vsel %vm1456, %v3543, -inf
        %3550 = vmax.xlane.f32.xlu0 %v3549
        %v3551 = vpop.xlane.xlu0 %3550
        %v3552 = vsel %vm1456, %v3546, -inf
        %3553 = vmax.xlane.f32.xlu0 %v3552
        %v3554 = vpop.xlane.xlu0 %3553
        %v3555 = vsub.f32 %v3543, %v3551
        %v3556 = vsub.f32 %v3546, %v3554
        %v3557 = vmul.f32 %v3555, 1.442695
        %v3558 = vpow.pop %v3557
        %v3559 = vmul.f32 %v3556, 1.442695
        %v3560 = vpow.pop %v3559
        %v3561 = vsel %vm1456, %v3558, 0.0
        %3562 = vadd.xlane.f32.xlu0 %v3561
        %v3563 = vpop.xlane.xlu0 %3562
        %v3564 = vsel %vm1456, %v3560, 0.0
        %3565 = vadd.xlane.f32.xlu0 %v3564
        %v3566 = vpop.xlane.xlu0 %3565
        %v3567 = vpack.c.bf16 %v3560, %v3558
        %3568 = vrot.lane.b32.xlu0 %v3116, 32
        %v3569 = vpop.permute.xlu0 %3568
        %v3572 = vsel %vm1456, %v3567, 0
        %3574 = vmatprep.subr.bf16.mxu0 0
        %3575 = vmatpush1.bf16.msra.mxu0 %v3569
        %3576 = vmatprep.subr.bf16.mxu0 0
        %3577 = vmatpush1.bf16.msra.mxu0 0
        %3578 = vmatprep.subr.bf16.mxu0 0
        %3579 = vmatpush1.bf16.msra.mxu0 0
        %3580 = vmatprep.subr.bf16.mxu0 0
        %3581 = vmatpush1.bf16.msra.mxu0 0
        %3582 = vmatprep.subr.bf16.mxu0 0
        %3583 = vmatpush1.bf16.msra.mxu0 0
        %3584 = vmatprep.subr.bf16.mxu0 0
        %3585 = vmatpush1.bf16.msra.mxu0 0
        %3586 = vmatprep.subr.bf16.mxu0 0
        %3587 = vmatpush1.bf16.msra.mxu0 0
        %3588 = vmatprep.subr.bf16.mxu0 0
        %3589 = vmatpush1.bf16.msra.mxu0 0
        %3590 = vmatprep.subr.bf16.mxu0 0
        %3591 = vmatpush1.bf16.msra.mxu0 0
        %3592 = vmatprep.subr.bf16.mxu0 0
        %3593 = vmatpush1.bf16.msra.mxu0 0
        %3594 = vmatprep.subr.bf16.mxu0 0
        %3595 = vmatpush1.bf16.msra.mxu0 0
        %3596 = vmatprep.subr.bf16.mxu0 0
        %3597 = vmatpush1.bf16.msra.mxu0 0
        %3598 = vmatprep.subr.bf16.mxu0 0
        %3599 = vmatpush1.bf16.msra.mxu0 0
        %3600 = vmatprep.subr.bf16.mxu0 0
        %3601 = vmatpush1.bf16.msra.mxu0 0
        %3602 = vmatprep.subr.bf16.mxu0 0
        %3603 = vmatpush1.bf16.msra.mxu0 0
        %3604 = vmatprep.subr.bf16.mxu0 0
        %3605 = vmatpush1.bf16.msra.mxu0 0
        %3606 = vmatprep.mubr.bf16.mxu0 0
        %3607 = vmatmul.mubr.bf16.gmra.mrb[0].mxu0 %v3572
        %v3608 = vpop.f32.mrb[0].mxu0
        %v3609 = vadd.f32 0.0, %v3608
        %v3610 = vpop.f32.mrb[0].mxu0
        %v3611 = vpop.f32.mrb[0].mxu0
        %v3612 = vadd.f32 0.0, %v3611
        %v3613 = vpop.f32.mrb[0].mxu0
        %3614 = vdwg.mxu0
        %v3615 = vrcp.pop %v3563
        %v3616 = vrcp.pop %v3566
        %v3617 = vmul.f32 %v3609, %v3615
        %v3618 = vmul.f32 %v3612, %v3616
        %3621 = vrot.lane.b32.xlu0 %v3617, 96
        %v3622 = vpop.permute.xlu0 %3621
        %3623 = vrot.lane.b32.xlu0 %v3618, 96
        %v3624 = vpop.permute.xlu0 %3623
        %3627 = vst.msk [vmem:[#allocation2] sm:$0xff] %vm1922, %v3622
        %3628 = vst.msk [vmem:[#allocation2 + $0x8] sm:$0xff] %vm1922, %v3624
        %v3629 = vld [vmem:[#allocation2] sm:$0xff]
        %v3630 = vld [vmem:[#allocation2 + $0x8] sm:$0xff]
        %s3631 = scalar_lea.vmem [#allocation15], 64
        %v3632 = vld [vmem:[%s3631] sm:$0xf]
        %v3633 = vld [vmem:[%s3631 + $0x4] sm:$0xf]
        %v3634 = vld [vmem:[%s3631 + $0x8] sm:$0xf]
        %v3635 = vld [vmem:[%s3631 + $0xc] sm:$0xf]
        %v3636 = vld [vmem:[%s3631 + $0x10] sm:$0xf]
        %v3637 = vld [vmem:[%s3631 + $0x14] sm:$0xf]
        %v3638 = vld [vmem:[%s3631 + $0x18] sm:$0xf]
        %v3639 = vld [vmem:[%s3631 + $0x1c] sm:$0xf]
        %v3640 = vld [vmem:[%s3631 + $0x20] sm:$0xf]
        %v3641 = vld [vmem:[%s3631 + $0x24] sm:$0xf]
        %v3642 = vld [vmem:[%s3631 + $0x28] sm:$0xf]
        %v3643 = vld [vmem:[%s3631 + $0x2c] sm:$0xf]
        %v3644 = vld [vmem:[%s3631 + $0x30] sm:$0xf]
        %v3645 = vld [vmem:[%s3631 + $0x34] sm:$0xf]
        %v3646 = vld [vmem:[%s3631 + $0x38] sm:$0xf]
        %v3647 = vld [vmem:[%s3631 + $0x3c] sm:$0xf]
        %v3648 = vpack.c.bf16 %v3630, %v3629
        %s3649 = scalar_lea.vmem [#allocation17], 1
        %v3650 = vld [vmem:[%s3649] sm:$0x1]
        %v3652 = vlaneseq
        %v3653 = vshrl.u32 %v3652, 7
        %v3654 = vsub.s32 0, %v3653
        %v3655 = vrot.slane %v3650, %v3654
        %v3673 = vunpack.c.l.b16 %v3632
        %v3674 = vunpack.c.l.b16 %v3633
        %v3675 = vunpack.c.l.b16 %v3634
        %v3676 = vunpack.c.l.b16 %v3635
        %v3677 = vunpack.c.l.b16 %v3636
        %v3678 = vunpack.c.l.b16 %v3637
        %v3679 = vunpack.c.l.b16 %v3638
        %v3680 = vunpack.c.l.b16 %v3639
        %v3681 = vunpack.c.l.b16 %v3640
        %v3682 = vunpack.c.l.b16 %v3641
        %v3683 = vunpack.c.l.b16 %v3642
        %v3684 = vunpack.c.l.b16 %v3643
        %v3685 = vunpack.c.l.b16 %v3644
        %v3686 = vunpack.c.l.b16 %v3645
        %v3687 = vunpack.c.l.b16 %v3646
        %v3688 = vunpack.c.l.b16 %v3647
        %v3689 = vpack.c.b16 %v3674, %v3673
        %v3690 = vpack.c.b16 %v3676, %v3675
        %v3691 = vpack.c.b16 %v3678, %v3677
        %v3692 = vpack.c.b16 %v3680, %v3679
        %v3693 = vpack.c.b16 %v3682, %v3681
        %v3694 = vpack.c.b16 %v3684, %v3683
        %v3695 = vpack.c.b16 %v3686, %v3685
        %v3696 = vpack.c.b16 %v3688, %v3687
        %3705 = vmatprep.subr.bf16.mxu0 0
        %3706 = vmatpush1.bf16.msra.mxu0 %v3689
        %3707 = vmatprep.subr.bf16.mxu0 0
        %3708 = vmatpush1.bf16.msra.mxu0 %v3690
        %3709 = vmatprep.subr.bf16.mxu0 0
        %3710 = vmatpush1.bf16.msra.mxu0 %v3691
        %3711 = vmatprep.subr.bf16.mxu0 0
        %3712 = vmatpush1.bf16.msra.mxu0 %v3692
        %3713 = vmatprep.subr.bf16.mxu0 0
        %3714 = vmatpush1.bf16.msra.mxu0 %v3693
        %3715 = vmatprep.subr.bf16.mxu0 0
        %3716 = vmatpush1.bf16.msra.mxu0 %v3694
        %3717 = vmatprep.subr.bf16.mxu0 0
        %3718 = vmatpush1.bf16.msra.mxu0 %v3695
        %3719 = vmatprep.subr.bf16.mxu0 0
        %3720 = vmatpush1.bf16.msra.mxu0 %v3696
        %3721 = vmatprep.subr.bf16.mxu0 0
        %3722 = vmatpush1.bf16.msra.mxu0 0
        %3723 = vmatprep.subr.bf16.mxu0 0
        %3724 = vmatpush1.bf16.msra.mxu0 0
        %3725 = vmatprep.subr.bf16.mxu0 0
        %3726 = vmatpush1.bf16.msra.mxu0 0
        %3727 = vmatprep.subr.bf16.mxu0 0
        %3728 = vmatpush1.bf16.msra.mxu0 0
        %3729 = vmatprep.subr.bf16.mxu0 0
        %3730 = vmatpush1.bf16.msra.mxu0 0
        %3731 = vmatprep.subr.bf16.mxu0 0
        %3732 = vmatpush1.bf16.msra.mxu0 0
        %3733 = vmatprep.subr.bf16.mxu0 0
        %3734 = vmatpush1.bf16.msra.mxu0 0
        %3735 = vmatprep.subr.bf16.mxu0 0
        %3736 = vmatpush1.bf16.msra.mxu0 0
        %3737 = vmatprep.mubr.bf16.mxu0 0
        %3738 = vmatmul.mubr.bf16.gmra.mrb[0].mxu0 %v3648
        %v3739 = vpop.f32.mrb[0].mxu0
        %v3740 = vadd.f32 %v3655, %v3739
        %v3741 = vpop.f32.mrb[0].mxu0
        %v3742 = vpop.f32.mrb[0].mxu0
        %v3743 = vadd.f32 %v3655, %v3742
        %v3744 = vpop.f32.mrb[0].mxu0
        %3745 = vdwg.mxu0
        %v3746 = vadd.f32 %v2806, %v3740
        %v3747 = vadd.f32 %v2807, %v3743
        %s3748 = scalar_lea.vmem [#allocation18], 1
        %v3749 = vld [vmem:[%s3748] sm:$0x1]
        %s3750 = scalar_lea.vmem [#allocation20], 1
        %v3751 = vld [vmem:[%s3750] sm:$0x1]
        %3752 = vadd.xlane.f32.xlu0 %v3746
        %v3753 = vpop.xlane.xlu0 %3752
        %3754 = vadd.xlane.f32.xlu0 %v3747
        %v3755 = vpop.xlane.xlu0 %3754
        %v3756 = vmul.f32 %v3753, %v1108
        %v3757 = vmul.f32 %v3755, %v1108
        %v3758 = vsub.f32 %v3746, %v3756
        %v3759 = vsub.f32 %v3747, %v3757
        %v3760 = vmul.f32 %v3758, %v3758
        %v3761 = vmul.f32 %v3759, %v3759
        %3762 = vadd.xlane.f32.xlu0 %v3760
        %v3763 = vpop.xlane.xlu0 %3762
        %3764 = vadd.xlane.f32.xlu0 %v3761
        %v3765 = vpop.xlane.xlu0 %3764
        %v3766 = vmul.f32 %v3763, %v1108
        %v3767 = vmul.f32 %v3765, %v1108
        %v3768 = vadd.f32 %v3766, 1e-05
        %v3769 = vadd.f32 %v3767, 1e-05
        %v3770 = vrsqrt.pop %v3768
        %v3771 = vrsqrt.pop %v3769
        %v3772 = vmul.f32 %v3758, %v3770
        %v3773 = vmul.f32 %v3759, %v3771
        %v3775 = vlaneseq
        %v3776 = vshrl.u32 %v3775, 7
        %v3777 = vsub.s32 0, %v3776
        %v3778 = vrot.slane %v3749, %v3777
        %v3780 = vmul.f32 %v3772, %v3778
        %v3781 = vmul.f32 %v3773, %v3778
        %v3783 = vlaneseq
        %v3784 = vshrl.u32 %v3783, 7
        %v3785 = vsub.s32 0, %v3784
        %v3786 = vrot.slane %v3751, %v3785
        %v3788 = vadd.f32 %v3780, %v3786
        %v3789 = vadd.f32 %v3781, %v3786
        %s3790 = scalar_lea.vmem [#allocation21], 256
        %v3791 = vld [vmem:[%s3790] sm:$0xff]
        %v3792 = vld [vmem:[%s3790 + $0x8] sm:$0xff]
        %v3793 = vld [vmem:[%s3790 + $0x10] sm:$0xff]
        %v3794 = vld [vmem:[%s3790 + $0x18] sm:$0xff]
        %v3795 = vld [vmem:[%s3790 + $0x20] sm:$0xff]
        %v3796 = vld [vmem:[%s3790 + $0x28] sm:$0xff]
        %v3797 = vld [vmem:[%s3790 + $0x30] sm:$0xff]
        %v3798 = vld [vmem:[%s3790 + $0x38] sm:$0xff]
        %v3799 = vld [vmem:[%s3790 + $0x40] sm:$0xff]
        %v3800 = vld [vmem:[%s3790 + $0x48] sm:$0xff]
        %v3801 = vld [vmem:[%s3790 + $0x50] sm:$0xff]
        %v3802 = vld [vmem:[%s3790 + $0x58] sm:$0xff]
        %v3803 = vld [vmem:[%s3790 + $0x60] sm:$0xff]
        %v3804 = vld [vmem:[%s3790 + $0x68] sm:$0xff]
        %v3805 = vld [vmem:[%s3790 + $0x70] sm:$0xff]
        %v3806 = vld [vmem:[%s3790 + $0x78] sm:$0xff]
        %v3807 = vld [vmem:[%s3790 + $0x80] sm:$0xff]
        %v3808 = vld [vmem:[%s3790 + $0x88] sm:$0xff]
        %v3809 = vld [vmem:[%s3790 + $0x90] sm:$0xff]
        %v3810 = vld [vmem:[%s3790 + $0x98] sm:$0xff]
        %v3811 = vld [vmem:[%s3790 + $0xa0] sm:$0xff]
        %v3812 = vld [vmem:[%s3790 + $0xa8] sm:$0xff]
        %v3813 = vld [vmem:[%s3790 + $0xb0] sm:$0xff]
        %v3814 = vld [vmem:[%s3790 + $0xb8] sm:$0xff]
        %v3815 = vld [vmem:[%s3790 + $0xc0] sm:$0xff]
        %v3816 = vld [vmem:[%s3790 + $0xc8] sm:$0xff]
        %v3817 = vld [vmem:[%s3790 + $0xd0] sm:$0xff]
        %v3818 = vld [vmem:[%s3790 + $0xd8] sm:$0xff]
        %v3819 = vld [vmem:[%s3790 + $0xe0] sm:$0xff]
        %v3820 = vld [vmem:[%s3790 + $0xe8] sm:$0xff]
        %v3821 = vld [vmem:[%s3790 + $0xf0] sm:$0xff]
        %v3822 = vld [vmem:[%s3790 + $0xf8] sm:$0xff]
        %v3823 = vpack.c.bf16 %v3789, %v3788
        %s3824 = scalar_lea.vmem [#allocation23], 4
        %v3825 = vld [vmem:[%s3824] sm:$0xf]
        %v3827 = vlaneseq
        %v3828 = vshrl.u32 %v3827, 7
        %v3829 = vsub.s32 0, %v3828
        %v3830 = vrot.slane %v3825, %v3829
        %v3831 = vlaneseq
        %v3832 = vshrl.u32 %v3831, 7
        %v3833 = vsub.s32 1, %v3832
        %v3834 = vrot.slane %v3825, %v3833
        %v3835 = vlaneseq
        %v3836 = vshrl.u32 %v3835, 7
        %v3837 = vsub.s32 2, %v3836
        %v3838 = vrot.slane %v3825, %v3837
        %v3839 = vlaneseq
        %v3840 = vshrl.u32 %v3839, 7
        %v3841 = vsub.s32 3, %v3840
        %v3842 = vrot.slane %v3825, %v3841
        %v3879 = vunpack.c.l.b16 %v3791
        %v3880 = vunpack.c.h.b16 %v3791
        %v3881 = vunpack.c.l.b16 %v3792
        %v3882 = vunpack.c.h.b16 %v3792
        %v3883 = vunpack.c.l.b16 %v3793
        %v3884 = vunpack.c.h.b16 %v3793
        %v3885 = vunpack.c.l.b16 %v3794
        %v3886 = vunpack.c.h.b16 %v3794
        %v3887 = vunpack.c.l.b16 %v3795
        %v3888 = vunpack.c.h.b16 %v3795
        %v3889 = vunpack.c.l.b16 %v3796
        %v3890 = vunpack.c.h.b16 %v3796
        %v3891 = vunpack.c.l.b16 %v3797
        %v3892 = vunpack.c.h.b16 %v3797
        %v3893 = vunpack.c.l.b16 %v3798
        %v3894 = vunpack.c.h.b16 %v3798
        %v3895 = vunpack.c.l.b16 %v3799
        %v3896 = vunpack.c.h.b16 %v3799
        %v3897 = vunpack.c.l.b16 %v3800
        %v3898 = vunpack.c.h.b16 %v3800
        %v3899 = vunpack.c.l.b16 %v3801
        %v3900 = vunpack.c.h.b16 %v3801
        %v3901 = vunpack.c.l.b16 %v3802
        %v3902 = vunpack.c.h.b16 %v3802
        %v3903 = vunpack.c.l.b16 %v3803
        %v3904 = vunpack.c.h.b16 %v3803
        %v3905 = vunpack.c.l.b16 %v3804
        %v3906 = vunpack.c.h.b16 %v3804
        %v3907 = vunpack.c.l.b16 %v3805
        %v3908 = vunpack.c.h.b16 %v3805
        %v3909 = vunpack.c.l.b16 %v3806
        %v3910 = vunpack.c.h.b16 %v3806
        %v3911 = vunpack.c.l.b16 %v3807
        %v3912 = vunpack.c.h.b16 %v3807
        %v3913 = vunpack.c.l.b16 %v3808
        %v3914 = vunpack.c.h.b16 %v3808
        %v3915 = vunpack.c.l.b16 %v3809
        %v3916 = vunpack.c.h.b16 %v3809
        %v3917 = vunpack.c.l.b16 %v3810
        %v3918 = vunpack.c.h.b16 %v3810
        %v3919 = vunpack.c.l.b16 %v3811
        %v3920 = vunpack.c.h.b16 %v3811
        %v3921 = vunpack.c.l.b16 %v3812
        %v3922 = vunpack.c.h.b16 %v3812
        %v3923 = vunpack.c.l.b16 %v3813
        %v3924 = vunpack.c.h.b16 %v3813
        %v3925 = vunpack.c.l.b16 %v3814
        %v3926 = vunpack.c.h.b16 %v3814
        %v3927 = vunpack.c.l.b16 %v3815
        %v3928 = vunpack.c.h.b16 %v3815
        %v3929 = vunpack.c.l.b16 %v3816
        %v3930 = vunpack.c.h.b16 %v3816
        %v3931 = vunpack.c.l.b16 %v3817
        %v3932 = vunpack.c.h.b16 %v3817
        %v3933 = vunpack.c.l.b16 %v3818
        %v3934 = vunpack.c.h.b16 %v3818
        %v3935 = vunpack.c.l.b16 %v3819
        %v3936 = vunpack.c.h.b16 %v3819
        %v3937 = vunpack.c.l.b16 %v3820
        %v3938 = vunpack.c.h.b16 %v3820
        %v3939 = vunpack.c.l.b16 %v3821
        %v3940 = vunpack.c.h.b16 %v3821
        %v3941 = vunpack.c.l.b16 %v3822
        %v3942 = vunpack.c.h.b16 %v3822
        %v3943 = vpack.c.b16 %v3883, %v3879
        %v3944 = vpack.c.b16 %v3884, %v3880
        %v3945 = vpack.c.b16 %v3885, %v3881
        %v3946 = vpack.c.b16 %v3886, %v3882
        %v3947 = vpack.c.b16 %v3891, %v3887
        %v3948 = vpack.c.b16 %v3892, %v3888
        %v3949 = vpack.c.b16 %v3893, %v3889
        %v3950 = vpack.c.b16 %v3894, %v3890
        %v3951 = vpack.c.b16 %v3899, %v3895
        %v3952 = vpack.c.b16 %v3900, %v3896
        %v3953 = vpack.c.b16 %v3901, %v3897
        %v3954 = vpack.c.b16 %v3902, %v3898
        %v3955 = vpack.c.b16 %v3907, %v3903
        %v3956 = vpack.c.b16 %v3908, %v3904
        %v3957 = vpack.c.b16 %v3909, %v3905
        %v3958 = vpack.c.b16 %v3910, %v3906
        %v3959 = vpack.c.b16 %v3915, %v3911
        %v3960 = vpack.c.b16 %v3916, %v3912
        %v3961 = vpack.c.b16 %v3917, %v3913
        %v3962 = vpack.c.b16 %v3918, %v3914
        %v3963 = vpack.c.b16 %v3923, %v3919
        %v3964 = vpack.c.b16 %v3924, %v3920
        %v3965 = vpack.c.b16 %v3925, %v3921
        %v3966 = vpack.c.b16 %v3926, %v3922
        %v3967 = vpack.c.b16 %v3931, %v3927
        %v3968 = vpack.c.b16 %v3932, %v3928
        %v3969 = vpack.c.b16 %v3933, %v3929
        %v3970 = vpack.c.b16 %v3934, %v3930
        %v3971 = vpack.c.b16 %v3939, %v3935
        %v3972 = vpack.c.b16 %v3940, %v3936
        %v3973 = vpack.c.b16 %v3941, %v3937
        %v3974 = vpack.c.b16 %v3942, %v3938
        %4007 = vmatprep.subr.bf16.mxu0 %v3944
        %4008 = vmatpush1.bf16.msra.mxu0 %v3943
        %4009 = vmatprep.subr.bf16.mxu0 %v3948
        %4010 = vmatpush1.bf16.msra.mxu0 %v3947
        %4011 = vmatprep.subr.bf16.mxu0 %v3952
        %4012 = vmatpush1.bf16.msra.mxu0 %v3951
        %4013 = vmatprep.subr.bf16.mxu0 %v3956
        %4014 = vmatpush1.bf16.msra.mxu0 %v3955
        %4015 = vmatprep.subr.bf16.mxu0 %v3960
        %4016 = vmatpush1.bf16.msra.mxu0 %v3959
        %4017 = vmatprep.subr.bf16.mxu0 %v3964
        %4018 = vmatpush1.bf16.msra.mxu0 %v3963
        %4019 = vmatprep.subr.bf16.mxu0 %v3968
        %4020 = vmatpush1.bf16.msra.mxu0 %v3967
        %4021 = vmatprep.subr.bf16.mxu0 %v3972
        %4022 = vmatpush1.bf16.msra.mxu0 %v3971
        %4023 = vmatprep.subr.bf16.mxu0 0
        %4024 = vmatpush1.bf16.msra.mxu0 0
        %4025 = vmatprep.subr.bf16.mxu0 0
        %4026 = vmatpush1.bf16.msra.mxu0 0
        %4027 = vmatprep.subr.bf16.mxu0 0
        %4028 = vmatpush1.bf16.msra.mxu0 0
        %4029 = vmatprep.subr.bf16.mxu0 0
        %4030 = vmatpush1.bf16.msra.mxu0 0
        %4031 = vmatprep.subr.bf16.mxu0 0
        %4032 = vmatpush1.bf16.msra.mxu0 0
        %4033 = vmatprep.subr.bf16.mxu0 0
        %4034 = vmatpush1.bf16.msra.mxu0 0
        %4035 = vmatprep.subr.bf16.mxu0 0
        %4036 = vmatpush1.bf16.msra.mxu0 0
        %4037 = vmatprep.subr.bf16.mxu0 0
        %4038 = vmatpush1.bf16.msra.mxu0 0
        %4039 = vmatprep.mubr.bf16.mxu0 0
        %4040 = vmatmul.mubr.bf16.gmra.mrb[0].mxu0 %v3823
        %v4041 = vpop.f32.mrb[0].mxu0
        %v4042 = vadd.f32 %v3830, %v4041
        %v4043 = vpop.f32.mrb[0].mxu0
        %v4044 = vadd.f32 %v3834, %v4043
        %v4045 = vpop.f32.mrb[0].mxu0
        %v4046 = vadd.f32 %v3830, %v4045
        %v4047 = vpop.f32.mrb[0].mxu0
        %v4048 = vadd.f32 %v3834, %v4047
        %4049 = vdwg.mxu0
        %4050 = vmatprep.subr.bf16.mxu0 %v3946
        %4051 = vmatpush1.bf16.msra.mxu0 %v3945
        %4052 = vmatprep.subr.bf16.mxu0 %v3950
        %4053 = vmatpush1.bf16.msra.mxu0 %v3949
        %4054 = vmatprep.subr.bf16.mxu0 %v3954
        %4055 = vmatpush1.bf16.msra.mxu0 %v3953
        %4056 = vmatprep.subr.bf16.mxu0 %v3958
        %4057 = vmatpush1.bf16.msra.mxu0 %v3957
        %4058 = vmatprep.subr.bf16.mxu0 %v3962
        %4059 = vmatpush1.bf16.msra.mxu0 %v3961
        %4060 = vmatprep.subr.bf16.mxu0 %v3966
        %4061 = vmatpush1.bf16.msra.mxu0 %v3965
        %4062 = vmatprep.subr.bf16.mxu0 %v3970
        %4063 = vmatpush1.bf16.msra.mxu0 %v3969
        %4064 = vmatprep.subr.bf16.mxu0 %v3974
        %4065 = vmatpush1.bf16.msra.mxu0 %v3973
        %4066 = vmatprep.subr.bf16.mxu0 0
        %4067 = vmatpush1.bf16.msra.mxu0 0
        %4068 = vmatprep.subr.bf16.mxu0 0
        %4069 = vmatpush1.bf16.msra.mxu0 0
        %4070 = vmatprep.subr.bf16.mxu0 0
        %4071 = vmatpush1.bf16.msra.mxu0 0
        %4072 = vmatprep.subr.bf16.mxu0 0
        %4073 = vmatpush1.bf16.msra.mxu0 0
        %4074 = vmatprep.subr.bf16.mxu0 0
        %4075 = vmatpush1.bf16.msra.mxu0 0
        %4076 = vmatprep.subr.bf16.mxu0 0
        %4077 = vmatpush1.bf16.msra.mxu0 0
        %4078 = vmatprep.subr.bf16.mxu0 0
        %4079 = vmatpush1.bf16.msra.mxu0 0
        %4080 = vmatprep.subr.bf16.mxu0 0
        %4081 = vmatpush1.bf16.msra.mxu0 0
        %4082 = vmatprep.mubr.bf16.mxu0 0
        %4083 = vmatmul.mubr.bf16.gmra.mrb[0].mxu0 %v3823
        %v4084 = vpop.f32.mrb[0].mxu0
        %v4085 = vadd.f32 %v3838, %v4084
        %v4086 = vpop.f32.mrb[0].mxu0
        %v4087 = vadd.f32 %v3842, %v4086
        %v4088 = vpop.f32.mrb[0].mxu0
        %v4089 = vadd.f32 %v3838, %v4088
        %v4090 = vpop.f32.mrb[0].mxu0
        %v4091 = vadd.f32 %v3842, %v4090
        %4092 = vdwg.mxu0
        %v4093 = vmul.f32 %v4042, %v4042
        %v4094 = vmul.f32 %v4044, %v4044
        %v4095 = vmul.f32 %v4085, %v4085
        %v4096 = vmul.f32 %v4087, %v4087
        %v4097 = vmul.f32 %v4046, %v4046
        %v4098 = vmul.f32 %v4048, %v4048
        %v4099 = vmul.f32 %v4089, %v4089
        %v4100 = vmul.f32 %v4091, %v4091
        %v4101 = vmul.f32 %v4042, %v4093
        %v4102 = vmul.f32 %v4044, %v4094
        %v4103 = vmul.f32 %v4085, %v4095
        %v4104 = vmul.f32 %v4087, %v4096
        %v4105 = vmul.f32 %v4046, %v4097
        %v4106 = vmul.f32 %v4048, %v4098
        %v4107 = vmul.f32 %v4089, %v4099
        %v4108 = vmul.f32 %v4091, %v4100
        %v4109 = vmul.f32 %v4101, 0.044715
        %v4110 = vmul.f32 %v4102, 0.044715
        %v4111 = vmul.f32 %v4103, 0.044715
        %v4112 = vmul.f32 %v4104, 0.044715
        %v4113 = vmul.f32 %v4105, 0.044715
        %v4114 = vmul.f32 %v4106, 0.044715
        %v4115 = vmul.f32 %v4107, 0.044715
        %v4116 = vmul.f32 %v4108, 0.044715
        %v4117 = vadd.f32 %v4042, %v4109
        %v4118 = vadd.f32 %v4044, %v4110
        %v4119 = vadd.f32 %v4085, %v4111
        %v4120 = vadd.f32 %v4087, %v4112
        %v4121 = vadd.f32 %v4046, %v4113
        %v4122 = vadd.f32 %v4048, %v4114
        %v4123 = vadd.f32 %v4089, %v4115
        %v4124 = vadd.f32 %v4091, %v4116
        %v4125 = vmul.f32 %v4117, 0.7978846
        %v4126 = vmul.f32 %v4118, 0.7978846
        %v4127 = vmul.f32 %v4119, 0.7978846
        %v4128 = vmul.f32 %v4120, 0.7978846
        %v4129 = vmul.f32 %v4121, 0.7978846
        %v4130 = vmul.f32 %v4122, 0.7978846
        %v4131 = vmul.f32 %v4123, 0.7978846
        %v4132 = vmul.f32 %v4124, 0.7978846
        %v4133 = vtanh.pop %v4125
        %v4134 = vtanh.pop %v4126
        %v4135 = vtanh.pop %v4127
        %v4136 = vtanh.pop %v4128
        %v4137 = vtanh.pop %v4129
        %v4138 = vtanh.pop %v4130
        %v4139 = vtanh.pop %v4131
        %v4140 = vtanh.pop %v4132
        %v4141 = vadd.f32 %v4133, 1.0
        %v4142 = vadd.f32 %v4134, 1.0
        %v4143 = vadd.f32 %v4135, 1.0
        %v4144 = vadd.f32 %v4136, 1.0
        %v4145 = vadd.f32 %v4137, 1.0
        %v4146 = vadd.f32 %v4138, 1.0
        %v4147 = vadd.f32 %v4139, 1.0
        %v4148 = vadd.f32 %v4140, 1.0
        %v4149 = vmul.f32 %v4141, 0.5
        %v4150 = vmul.f32 %v4142, 0.5
        %v4151 = vmul.f32 %v4143, 0.5
        %v4152 = vmul.f32 %v4144, 0.5
        %v4153 = vmul.f32 %v4145, 0.5
        %v4154 = vmul.f32 %v4146, 0.5
        %v4155 = vmul.f32 %v4147, 0.5
        %v4156 = vmul.f32 %v4148, 0.5
        %v4157 = vmul.f32 %v4042, %v4149
        %v4158 = vmul.f32 %v4044, %v4150
        %v4159 = vmul.f32 %v4085, %v4151
        %v4160 = vmul.f32 %v4087, %v4152
        %v4161 = vmul.f32 %v4046, %v4153
        %v4162 = vmul.f32 %v4048, %v4154
        %v4163 = vmul.f32 %v4089, %v4155
        %v4164 = vmul.f32 %v4091, %v4156
        %s4165 = scalar_lea.vmem [#allocation24], 256
        %v4166 = vld [vmem:[%s4165] sm:$0xf]
        %v4167 = vld [vmem:[%s4165 + $0x4] sm:$0xf]
        %v4168 = vld [vmem:[%s4165 + $0x8] sm:$0xf]
        %v4169 = vld [vmem:[%s4165 + $0xc] sm:$0xf]
        %v4170 = vld [vmem:[%s4165 + $0x10] sm:$0xf]
        %v4171 = vld [vmem:[%s4165 + $0x14] sm:$0xf]
        %v4172 = vld [vmem:[%s4165 + $0x18] sm:$0xf]
        %v4173 = vld [vmem:[%s4165 + $0x1c] sm:$0xf]
        %v4174 = vld [vmem:[%s4165 + $0x20] sm:$0xf]
        %v4175 = vld [vmem:[%s4165 + $0x24] sm:$0xf]
        %v4176 = vld [vmem:[%s4165 + $0x28] sm:$0xf]
        %v4177 = vld [vmem:[%s4165 + $0x2c] sm:$0xf]
        %v4178 = vld [vmem:[%s4165 + $0x30] sm:$0xf]
        %v4179 = vld [vmem:[%s4165 + $0x34] sm:$0xf]
        %v4180 = vld [vmem:[%s4165 + $0x38] sm:$0xf]
        %v4181 = vld [vmem:[%s4165 + $0x3c] sm:$0xf]
        %v4182 = vld [vmem:[%s4165 + $0x40] sm:$0xf]
        %v4183 = vld [vmem:[%s4165 + $0x44] sm:$0xf]
        %v4184 = vld [vmem:[%s4165 + $0x48] sm:$0xf]
        %v4185 = vld [vmem:[%s4165 + $0x4c] sm:$0xf]
        %v4186 = vld [vmem:[%s4165 + $0x50] sm:$0xf]
        %v4187 = vld [vmem:[%s4165 + $0x54] sm:$0xf]
        %v4188 = vld [vmem:[%s4165 + $0x58] sm:$0xf]
        %v4189 = vld [vmem:[%s4165 + $0x5c] sm:$0xf]
        %v4190 = vld [vmem:[%s4165 + $0x60] sm:$0xf]
        %v4191 = vld [vmem:[%s4165 + $0x64] sm:$0xf]
        %v4192 = vld [vmem:[%s4165 + $0x68] sm:$0xf]
        %v4193 = vld [vmem:[%s4165 + $0x6c] sm:$0xf]
        %v4194 = vld [vmem:[%s4165 + $0x70] sm:$0xf]
        %v4195 = vld [vmem:[%s4165 + $0x74] sm:$0xf]
        %v4196 = vld [vmem:[%s4165 + $0x78] sm:$0xf]
        %v4197 = vld [vmem:[%s4165 + $0x7c] sm:$0xf]
        %v4198 = vld [vmem:[%s4165 + $0x80] sm:$0xf]
        %v4199 = vld [vmem:[%s4165 + $0x84] sm:$0xf]
        %v4200 = vld [vmem:[%s4165 + $0x88] sm:$0xf]
        %v4201 = vld [vmem:[%s4165 + $0x8c] sm:$0xf]
        %v4202 = vld [vmem:[%s4165 + $0x90] sm:$0xf]
        %v4203 = vld [vmem:[%s4165 + $0x94] sm:$0xf]
        %v4204 = vld [vmem:[%s4165 + $0x98] sm:$0xf]
        %v4205 = vld [vmem:[%s4165 + $0x9c] sm:$0xf]
        %v4206 = vld [vmem:[%s4165 + $0xa0] sm:$0xf]
        %v4207 = vld [vmem:[%s4165 + $0xa4] sm:$0xf]
        %v4208 = vld [vmem:[%s4165 + $0xa8] sm:$0xf]
        %v4209 = vld [vmem:[%s4165 + $0xac] sm:$0xf]
        %v4210 = vld [vmem:[%s4165 + $0xb0] sm:$0xf]
        %v4211 = vld [vmem:[%s4165 + $0xb4] sm:$0xf]
        %v4212 = vld [vmem:[%s4165 + $0xb8] sm:$0xf]
        %v4213 = vld [vmem:[%s4165 + $0xbc] sm:$0xf]
        %v4214 = vld [vmem:[%s4165 + $0xc0] sm:$0xf]
        %v4215 = vld [vmem:[%s4165 + $0xc4] sm:$0xf]
        %v4216 = vld [vmem:[%s4165 + $0xc8] sm:$0xf]
        %v4217 = vld [vmem:[%s4165 + $0xcc] sm:$0xf]
        %v4218 = vld [vmem:[%s4165 + $0xd0] sm:$0xf]
        %v4219 = vld [vmem:[%s4165 + $0xd4] sm:$0xf]
        %v4220 = vld [vmem:[%s4165 + $0xd8] sm:$0xf]
        %v4221 = vld [vmem:[%s4165 + $0xdc] sm:$0xf]
        %v4222 = vld [vmem:[%s4165 + $0xe0] sm:$0xf]
        %v4223 = vld [vmem:[%s4165 + $0xe4] sm:$0xf]
        %v4224 = vld [vmem:[%s4165 + $0xe8] sm:$0xf]
        %v4225 = vld [vmem:[%s4165 + $0xec] sm:$0xf]
        %v4226 = vld [vmem:[%s4165 + $0xf0] sm:$0xf]
        %v4227 = vld [vmem:[%s4165 + $0xf4] sm:$0xf]
        %v4228 = vld [vmem:[%s4165 + $0xf8] sm:$0xf]
        %v4229 = vld [vmem:[%s4165 + $0xfc] sm:$0xf]
        %v4230 = vpack.c.bf16 %v4161, %v4157
        %v4231 = vpack.c.bf16 %v4162, %v4158
        %v4232 = vpack.c.bf16 %v4163, %v4159
        %v4233 = vpack.c.bf16 %v4164, %v4160
        %v4298 = vunpack.c.l.b16 %v4166
        %v4299 = vunpack.c.l.b16 %v4167
        %v4300 = vunpack.c.l.b16 %v4168
        %v4301 = vunpack.c.l.b16 %v4169
        %v4302 = vunpack.c.l.b16 %v4170
        %v4303 = vunpack.c.l.b16 %v4171
        %v4304 = vunpack.c.l.b16 %v4172
        %v4305 = vunpack.c.l.b16 %v4173
        %v4306 = vunpack.c.l.b16 %v4174
        %v4307 = vunpack.c.l.b16 %v4175
        %v4308 = vunpack.c.l.b16 %v4176
        %v4309 = vunpack.c.l.b16 %v4177
        %v4310 = vunpack.c.l.b16 %v4178
        %v4311 = vunpack.c.l.b16 %v4179
        %v4312 = vunpack.c.l.b16 %v4180
        %v4313 = vunpack.c.l.b16 %v4181
        %v4314 = vunpack.c.l.b16 %v4182
        %v4315 = vunpack.c.l.b16 %v4183
        %v4316 = vunpack.c.l.b16 %v4184
        %v4317 = vunpack.c.l.b16 %v4185
        %v4318 = vunpack.c.l.b16 %v4186
        %v4319 = vunpack.c.l.b16 %v4187
        %v4320 = vunpack.c.l.b16 %v4188
        %v4321 = vunpack.c.l.b16 %v4189
        %v4322 = vunpack.c.l.b16 %v4190
        %v4323 = vunpack.c.l.b16 %v4191
        %v4324 = vunpack.c.l.b16 %v4192
        %v4325 = vunpack.c.l.b16 %v4193
        %v4326 = vunpack.c.l.b16 %v4194
        %v4327 = vunpack.c.l.b16 %v4195
        %v4328 = vunpack.c.l.b16 %v4196
        %v4329 = vunpack.c.l.b16 %v4197
        %v4330 = vunpack.c.l.b16 %v4198
        %v4331 = vunpack.c.l.b16 %v4199
        %v4332 = vunpack.c.l.b16 %v4200
        %v4333 = vunpack.c.l.b16 %v4201
        %v4334 = vunpack.c.l.b16 %v4202
        %v4335 = vunpack.c.l.b16 %v4203
        %v4336 = vunpack.c.l.b16 %v4204
        %v4337 = vunpack.c.l.b16 %v4205
        %v4338 = vunpack.c.l.b16 %v4206
        %v4339 = vunpack.c.l.b16 %v4207
        %v4340 = vunpack.c.l.b16 %v4208
        %v4341 = vunpack.c.l.b16 %v4209
        %v4342 = vunpack.c.l.b16 %v4210
        %v4343 = vunpack.c.l.b16 %v4211
        %v4344 = vunpack.c.l.b16 %v4212
        %v4345 = vunpack.c.l.b16 %v4213
        %v4346 = vunpack.c.l.b16 %v4214
        %v4347 = vunpack.c.l.b16 %v4215
        %v4348 = vunpack.c.l.b16 %v4216
        %v4349 = vunpack.c.l.b16 %v4217
        %v4350 = vunpack.c.l.b16 %v4218
        %v4351 = vunpack.c.l.b16 %v4219
        %v4352 = vunpack.c.l.b16 %v4220
        %v4353 = vunpack.c.l.b16 %v4221
        %v4354 = vunpack.c.l.b16 %v4222
        %v4355 = vunpack.c.l.b16 %v4223
        %v4356 = vunpack.c.l.b16 %v4224
        %v4357 = vunpack.c.l.b16 %v4225
        %v4358 = vunpack.c.l.b16 %v4226
        %v4359 = vunpack.c.l.b16 %v4227
        %v4360 = vunpack.c.l.b16 %v4228
        %v4361 = vunpack.c.l.b16 %v4229
        %v4362 = vpack.c.b16 %v4299, %v4298
        %v4363 = vpack.c.b16 %v4301, %v4300
        %v4364 = vpack.c.b16 %v4303, %v4302
        %v4365 = vpack.c.b16 %v4305, %v4304
        %v4366 = vpack.c.b16 %v4307, %v4306
        %v4367 = vpack.c.b16 %v4309, %v4308
        %v4368 = vpack.c.b16 %v4311, %v4310
        %v4369 = vpack.c.b16 %v4313, %v4312
        %v4370 = vpack.c.b16 %v4315, %v4314
        %v4371 = vpack.c.b16 %v4317, %v4316
        %v4372 = vpack.c.b16 %v4319, %v4318
        %v4373 = vpack.c.b16 %v4321, %v4320
        %v4374 = vpack.c.b16 %v4323, %v4322
        %v4375 = vpack.c.b16 %v4325, %v4324
        %v4376 = vpack.c.b16 %v4327, %v4326
        %v4377 = vpack.c.b16 %v4329, %v4328
        %v4378 = vpack.c.b16 %v4331, %v4330
        %v4379 = vpack.c.b16 %v4333, %v4332
        %v4380 = vpack.c.b16 %v4335, %v4334
        %v4381 = vpack.c.b16 %v4337, %v4336
        %v4382 = vpack.c.b16 %v4339, %v4338
        %v4383 = vpack.c.b16 %v4341, %v4340
        %v4384 = vpack.c.b16 %v4343, %v4342
        %v4385 = vpack.c.b16 %v4345, %v4344
        %v4386 = vpack.c.b16 %v4347, %v4346
        %v4387 = vpack.c.b16 %v4349, %v4348
        %v4388 = vpack.c.b16 %v4351, %v4350
        %v4389 = vpack.c.b16 %v4353, %v4352
        %v4390 = vpack.c.b16 %v4355, %v4354
        %v4391 = vpack.c.b16 %v4357, %v4356
        %v4392 = vpack.c.b16 %v4359, %v4358
        %v4393 = vpack.c.b16 %v4361, %v4360
        %4426 = vmatprep.subr.bf16.mxu0 0
        %4427 = vmatpush1.bf16.msra.mxu0 %v4362
        %4428 = vmatprep.subr.bf16.mxu0 0
        %4429 = vmatpush1.bf16.msra.mxu0 %v4363
        %4430 = vmatprep.subr.bf16.mxu0 0
        %4431 = vmatpush1.bf16.msra.mxu0 %v4364
        %4432 = vmatprep.subr.bf16.mxu0 0
        %4433 = vmatpush1.bf16.msra.mxu0 %v4365
        %4434 = vmatprep.subr.bf16.mxu0 0
        %4435 = vmatpush1.bf16.msra.mxu0 %v4366
        %4436 = vmatprep.subr.bf16.mxu0 0
        %4437 = vmatpush1.bf16.msra.mxu0 %v4367
        %4438 = vmatprep.subr.bf16.mxu0 0
        %4439 = vmatpush1.bf16.msra.mxu0 %v4368
        %4440 = vmatprep.subr.bf16.mxu0 0
        %4441 = vmatpush1.bf16.msra.mxu0 %v4369
        %4442 = vmatprep.subr.bf16.mxu0 0
        %4443 = vmatpush1.bf16.msra.mxu0 %v4370
        %4444 = vmatprep.subr.bf16.mxu0 0
        %4445 = vmatpush1.bf16.msra.mxu0 %v4371
        %4446 = vmatprep.subr.bf16.mxu0 0
        %4447 = vmatpush1.bf16.msra.mxu0 %v4372
        %4448 = vmatprep.subr.bf16.mxu0 0
        %4449 = vmatpush1.bf16.msra.mxu0 %v4373
        %4450 = vmatprep.subr.bf16.mxu0 0
        %4451 = vmatpush1.bf16.msra.mxu0 %v4374
        %4452 = vmatprep.subr.bf16.mxu0 0
        %4453 = vmatpush1.bf16.msra.mxu0 %v4375
        %4454 = vmatprep.subr.bf16.mxu0 0
        %4455 = vmatpush1.bf16.msra.mxu0 %v4376
        %4456 = vmatprep.subr.bf16.mxu0 0
        %4457 = vmatpush1.bf16.msra.mxu0 %v4377
        %4458 = vmatprep.mubr.bf16.mxu0 %v4231
        %4459 = vmatmul.mubr.bf16.gmra.mrb[0].mxu0 %v4230
        %v4460 = vpop.f32.mrb[0].mxu0
        %v4461 = vpop.f32.mrb[0].mxu0
        %v4462 = vpop.f32.mrb[0].mxu0
        %v4463 = vadd.f32 0.0, %v4462
        %v4464 = vpop.f32.mrb[0].mxu0
        %4465 = vdwg.mxu0
        %4466 = vmatprep.subr.bf16.mxu0 0
        %4467 = vmatpush1.bf16.msra.mxu0 %v4378
        %4468 = vmatprep.subr.bf16.mxu0 0
        %4469 = vmatpush1.bf16.msra.mxu0 %v4379
        %4470 = vmatprep.subr.bf16.mxu0 0
        %4471 = vmatpush1.bf16.msra.mxu0 %v4380
        %4472 = vmatprep.subr.bf16.mxu0 0
        %4473 = vmatpush1.bf16.msra.mxu0 %v4381
        %4474 = vmatprep.subr.bf16.mxu0 0
        %4475 = vmatpush1.bf16.msra.mxu0 %v4382
        %4476 = vmatprep.subr.bf16.mxu0 0
        %4477 = vmatpush1.bf16.msra.mxu0 %v4383
        %4478 = vmatprep.subr.bf16.mxu0 0
        %4479 = vmatpush1.bf16.msra.mxu0 %v4384
        %4480 = vmatprep.subr.bf16.mxu0 0
        %4481 = vmatpush1.bf16.msra.mxu0 %v4385
        %4482 = vmatprep.subr.bf16.mxu0 0
        %4483 = vmatpush1.bf16.msra.mxu0 %v4386
        %4484 = vmatprep.subr.bf16.mxu0 0
        %4485 = vmatpush1.bf16.msra.mxu0 %v4387
        %4486 = vmatprep.subr.bf16.mxu0 0
        %4487 = vmatpush1.bf16.msra.mxu0 %v4388
        %4488 = vmatprep.subr.bf16.mxu0 0
        %4489 = vmatpush1.bf16.msra.mxu0 %v4389
        %4490 = vmatprep.subr.bf16.mxu0 0
        %4491 = vmatpush1.bf16.msra.mxu0 %v4390
        %4492 = vmatprep.subr.bf16.mxu0 0
        %4493 = vmatpush1.bf16.msra.mxu0 %v4391
        %4494 = vmatprep.subr.bf16.mxu0 0
        %4495 = vmatpush1.bf16.msra.mxu0 %v4392
        %4496 = vmatprep.subr.bf16.mxu0 0
        %4497 = vmatpush1.bf16.msra.mxu0 %v4393
        %4498 = vmatprep.mubr.bf16.mxu0 %v4233
        %4499 = vmatmul.mubr.bf16.gmra.mrb[0].mxu0 %v4232
        %v4500 = vpop.f32.mrb[0].mxu0
        %v4501 = vpop.f32.mrb[0].mxu0
        %v4502 = vpop.f32.mrb[0].mxu0
        %v4503 = vadd.f32 %v4463, %v4502
        %v4504 = vpop.f32.mrb[0].mxu0
        %4505 = vdwg.mxu0
        %v4506 = vadd.f32 %v3747, %v4503
        %s4507 = scalar_lea.vmem [#allocation26], 1
        %v4508 = vld [vmem:[%s4507] sm:$0x1]
        %v4510 = vlaneseq
        %v4511 = vshrl.u32 %v4510, 7
        %v4512 = vsub.s32 0, %v4511
        %v4513 = vrot.slane %v4508, %v4512
        %v4515 = vadd.f32 %v4506, %v4513
        %v4516 = vld [vmem:[#allocation27] sm:$0x1]
        %v4517 = vld [vmem:[#allocation29] sm:$0x1]
        %4518 = vadd.xlane.f32.xlu0 %v4515
        %v4519 = vpop.xlane.xlu0 %4518
        %v4520 = vmul.f32 %v4519, %v1108
        %v4521 = vsub.f32 %v4515, %v4520
        %v4522 = vmul.f32 %v4521, %v4521
        %4523 = vadd.xlane.f32.xlu0 %v4522
        %v4524 = vpop.xlane.xlu0 %4523
        %v4525 = vmul.f32 %v4524, %v1108
        %v4526 = vadd.f32 %v4525, 1e-05
        %v4527 = vrsqrt.pop %v4526
        %v4528 = vmul.f32 %v4521, %v4527
        %v4530 = vlaneseq
        %v4531 = vshrl.u32 %v4530, 7
        %v4532 = vsub.s32 0, %v4531
        %v4533 = vrot.slane %v4516, %v4532
        %v4535 = vmul.f32 %v4528, %v4533
        %v4537 = vlaneseq
        %v4538 = vshrl.u32 %v4537, 7
        %v4539 = vsub.s32 0, %v4538
        %v4540 = vrot.slane %v4517, %v4539
        %v4542 = vadd.f32 %v4535, %v4540
        %v4543 = vld [vmem:[#allocation30] sm:$0xf]
        %v4544 = vld [vmem:[#allocation30 + $0x4] sm:$0xf]
        %v4545 = vld [vmem:[#allocation30 + $0x8] sm:$0xf]
        %v4546 = vld [vmem:[#allocation30 + $0xc] sm:$0xf]
        %v4547 = vld [vmem:[#allocation30 + $0x10] sm:$0xf]
        %v4548 = vld [vmem:[#allocation30 + $0x14] sm:$0xf]
        %v4549 = vld [vmem:[#allocation30 + $0x18] sm:$0xf]
        %v4550 = vld [vmem:[#allocation30 + $0x1c] sm:$0xf]
        %v4551 = vld [vmem:[#allocation30 + $0x20] sm:$0xf]
        %v4552 = vld [vmem:[#allocation30 + $0x24] sm:$0xf]
        %v4553 = vld [vmem:[#allocation30 + $0x28] sm:$0xf]
        %v4554 = vld [vmem:[#allocation30 + $0x2c] sm:$0xf]
        %v4555 = vld [vmem:[#allocation30 + $0x30] sm:$0xf]
        %v4556 = vld [vmem:[#allocation30 + $0x34] sm:$0xf]
        %v4557 = vld [vmem:[#allocation30 + $0x38] sm:$0xf]
        %v4558 = vld [vmem:[#allocation30 + $0x3c] sm:$0xf]
        %v4559 = vpack.c.bf16 %v4542, %v4542
        %v4560 = vld [vmem:[#allocation32] sm:$0x1]
        %v4562 = vlaneseq
        %v4563 = vshrl.u32 %v4562, 7
        %v4564 = vsub.s32 0, %v4563
        %v4565 = vrot.slane %v4560, %v4564
        %v4583 = vunpack.c.l.b16 %v4543
        %v4584 = vunpack.c.l.b16 %v4544
        %v4585 = vunpack.c.l.b16 %v4545
        %v4586 = vunpack.c.l.b16 %v4546
        %v4587 = vunpack.c.l.b16 %v4547
        %v4588 = vunpack.c.l.b16 %v4548
        %v4589 = vunpack.c.l.b16 %v4549
        %v4590 = vunpack.c.l.b16 %v4550
        %v4591 = vunpack.c.l.b16 %v4551
        %v4592 = vunpack.c.l.b16 %v4552
        %v4593 = vunpack.c.l.b16 %v4553
        %v4594 = vunpack.c.l.b16 %v4554
        %v4595 = vunpack.c.l.b16 %v4555
        %v4596 = vunpack.c.l.b16 %v4556
        %v4597 = vunpack.c.l.b16 %v4557
        %v4598 = vunpack.c.l.b16 %v4558
        %v4599 = vpack.c.b16 %v4584, %v4583
        %v4600 = vpack.c.b16 %v4586, %v4585
        %v4601 = vpack.c.b16 %v4588, %v4587
        %v4602 = vpack.c.b16 %v4590, %v4589
        %v4603 = vpack.c.b16 %v4592, %v4591
        %v4604 = vpack.c.b16 %v4594, %v4593
        %v4605 = vpack.c.b16 %v4596, %v4595
        %v4606 = vpack.c.b16 %v4598, %v4597
        %4615 = vmatprep.subr.bf16.mxu0 0
        %4616 = vmatpush1.bf16.msra.mxu0 %v4599
        %4617 = vmatprep.subr.bf16.mxu0 0
        %4618 = vmatpush1.bf16.msra.mxu0 %v4600
        %4619 = vmatprep.subr.bf16.mxu0 0
        %4620 = vmatpush1.bf16.msra.mxu0 %v4601
        %4621 = vmatprep.subr.bf16.mxu0 0
        %4622 = vmatpush1.bf16.msra.mxu0 %v4602
        %4623 = vmatprep.subr.bf16.mxu0 0
        %4624 = vmatpush1.bf16.msra.mxu0 %v4603
        %4625 = vmatprep.subr.bf16.mxu0 0
        %4626 = vmatpush1.bf16.msra.mxu0 %v4604
        %4627 = vmatprep.subr.bf16.mxu0 0
        %4628 = vmatpush1.bf16.msra.mxu0 %v4605
        %4629 = vmatprep.subr.bf16.mxu0 0
        %4630 = vmatpush1.bf16.msra.mxu0 %v4606
        %4631 = vmatprep.subr.bf16.mxu0 0
        %4632 = vmatpush1.bf16.msra.mxu0 0
        %4633 = vmatprep.subr.bf16.mxu0 0
        %4634 = vmatpush1.bf16.msra.mxu0 0
        %4635 = vmatprep.subr.bf16.mxu0 0
        %4636 = vmatpush1.bf16.msra.mxu0 0
        %4637 = vmatprep.subr.bf16.mxu0 0
        %4638 = vmatpush1.bf16.msra.mxu0 0
        %4639 = vmatprep.subr.bf16.mxu0 0
        %4640 = vmatpush1.bf16.msra.mxu0 0
        %4641 = vmatprep.subr.bf16.mxu0 0
        %4642 = vmatpush1.bf16.msra.mxu0 0
        %4643 = vmatprep.subr.bf16.mxu0 0
        %4644 = vmatpush1.bf16.msra.mxu0 0
        %4645 = vmatprep.subr.bf16.mxu0 0
        %4646 = vmatpush1.bf16.msra.mxu0 0
        %4647 = vmatprep.mubr.bf16.mxu0 0
        %4648 = vmatmul.mubr.bf16.gmra.mrb[0].mxu0 %v4559
        %v4649 = vpop.f32.mrb[0].mxu0
        %v4650 = vadd.f32 %v4565, %v4649
        %v4651 = vpop.f32.mrb[0].mxu0
        %v4652 = vpop.f32.mrb[0].mxu0
        %v4653 = vpop.f32.mrb[0].mxu0
        %4654 = vdwg.mxu0
        %4655 = vst [vmem:[%s953] sm:$0xff] %v4650
        %v4656 = vld [vmem:[#allocation33] sm:$0x1]
        %v4658 = vlaneseq
        %v4659 = vshrl.u32 %v4658, 7
        %v4660 = vsub.s32 0, %v4659
        %v4661 = vrot.slane %v4656, %v4660
        %v4663 = vmul.f32 %v4542, %v4661
        %4664 = vadd.xlane.f32.xlu0 %v4663
        %v4665 = vpop.xlane.xlu0 %4664
        %v4666 = vld [vmem:[#allocation5] sm:$0x1]
        %v4668 = vlaneseq
        %v4669 = vshrl.u32 %v4668, 7
        %v4670 = vsub.s32 0, %v4669
        %v4671 = vrot.slane %v4666, %v4670
        %v4673 = vadd.f32 %v4665, %v4671
        %vm4674 = vcmask 7168
        %4675 = vst.msk [vmem:[%s973] sm:$0xff] %vm4674, %v4673
        %s4676 = sand.u32 %s513, 1
        %s4677 = scalar_lea.sflag [#allocation8], %s4676
        %s4678 = sand.u32 %s513, 1
        %s4679 = smul.addr %s4678, 8
        %s4680 = scalar_lea.vmem [#allocation35], %s4679
        %p4681 = scmp.lt.s32.totalorder %s54, 1
        %s4682 = scalar_select %p4681, %s54, 1
        %s4683 = smul.addr %s4682, 8
        %s4684 = scalar_lea.vmem %s23, %s4683
        // Predicated region
        $region177: #{tts_latent_gpt_forward.1} parent=103 // pred_check
          %p4685 = pneg %p523
        $region178: #{tts_latent_gpt_forward.1} parent=103 // pred_check_branch
          %4687 = sbr.rel (%p4685) target = $region180
        $region179: #{tts_latent_gpt_forward.1} parent=103 // pred_region
          %s4689 = ssub.s32 128, 128
          %4690 = vsyncadd %s4677, %s4689
          %s4691 = smul.addr %s54, 128
          %s4692 = scalar_lea.hbm %s22, %s4691
          %s4694 = sshll.u32 %s4680, 4
          %s4695 = int_to_ptr.vmem [resolvable:$true] %s4694
          %4697 = dma.vmem_to_hbm [thread:$0]  %s4695, 128, %s4692, %s4677
        $region180: #{tts_latent_gpt_forward.1} parent=103 // pred_fallthru
          _
        // Predicated region
        $region181: #{tts_latent_gpt_forward.1} parent=103 // pred_check
          %p4698 = pneg %p549
        $region182: #{tts_latent_gpt_forward.1} parent=103 // pred_check_branch
          %4700 = sbr.rel (%p4698) target = $region184
        $region183: #{tts_latent_gpt_forward.1} parent=103 // pred_region
          _
        $region184: #{tts_latent_gpt_forward.1} parent=103 // pred_fallthru
          _
      $region104: #{tts_latent_gpt_forward.1} parent=5 // pred_fallthru
        _
      %p4701 = scmp.le.s32.totalorder 2, %s49
      // Predicated region
      $region185: #{tts_latent_gpt_forward.1} parent=5 // pred_check
        %p4702 = pneg %p4701
      $region186: #{tts_latent_gpt_forward.1} parent=5 // pred_check_branch
        %4704 = sbr.rel (%p4702) target = $region188
      $region187: #{tts_latent_gpt_forward.1} parent=5 // pred_region
        %s4705 = ssub.s32 %s49, 2
        // Predicated region
        $region189: #{tts_latent_gpt_forward.1} parent=187 // pred_check
          %p4706 = pneg %p529
        $region190: #{tts_latent_gpt_forward.1} parent=187 // pred_check_branch
          %4708 = sbr.rel (%p4706) target = $region192
        $region191: #{tts_latent_gpt_forward.1} parent=187 // pred_region
          %s4709 = sand.u32 %s514, 1
          %s4710 = scalar_lea.sflag [#allocation8], %s4709
          %s4711 = sand.u32 %s514, 1
          %s4712 = smul.addr %s4711, 8
          %s4713 = scalar_lea.vmem [#allocation35], %s4712
          %4714 = dma.done %s4710, 128
        $region192: #{tts_latent_gpt_forward.1} parent=187 // pred_fallthru
          _
        // Predicated region
        $region193: #{tts_latent_gpt_forward.1} parent=187 // pred_check
          %p4715 = pneg %p555
        $region194: #{tts_latent_gpt_forward.1} parent=187 // pred_check_branch
          %4717 = sbr.rel (%p4715) target = $region196
        $region195: #{tts_latent_gpt_forward.1} parent=187 // pred_region
          %p4718 = scmp.lt.s32.totalorder %s55, 1
          %s4719 = scalar_select %p4718, %s55, 1
          %s4720 = smul.addr %s4719, 8
          %s4721 = scalar_lea.vmem %s23, %s4720
        $region196: #{tts_latent_gpt_forward.1} parent=187 // pred_fallthru
          _
      $region188: #{tts_latent_gpt_forward.1} parent=5 // pred_fallthru
        _
    $region6: #{tts_latent_gpt_forward.1} parent=1 // loop_footer
      %s53 = sadd.s32 1, %s49
    $region7: #{tts_latent_gpt_forward.1} parent=1 // loop_footer_branch
      %48 = sbr.rel target = $region3
    $region8: #{tts_latent_gpt_forward.1} parent=1 // loop_exit
      _
    %4722 = vsyncpa [#allocation7], 1
    %s4723 = scalar_lea.sflag [#allocation7], 1
    %4724 = vsyncpa %s4723, 1
    %4725 = vsyncpa [#allocation10], 1
    %4726 = vsyncpa [#allocation13], 1
    %4727 = vsyncpa [#allocation16], 1
    %4728 = vsyncpa [#allocation19], 1
    %4729 = vsyncpa [#allocation22], 1
    %4730 = vsyncpa [#allocation25], 1
    %4731 = vsyncpa [#allocation28], 1
    %4732 = vsyncpa [#allocation31], 1
    %4733 = vsyncpa [#allocation34], 1
    %4734 = vsyncpa [#allocation8], 1
    %s4735 = scalar_lea.sflag [#allocation8], 1
    %4736 = vsyncpa %s4735, 1

</llo_original>
